<compile_context>
chip_gen: v6e
topology: v6e:2x2x1
jax: 0.10.0
libtpu: 0.0.40
codegen_flags: <defaults>
</compile_context>

<pallas_src>
import functools

import jax
import jax.numpy as jnp
from jax.experimental import pallas as pl
from jax.experimental.pallas import tpu as pltpu


def _silu(x):
    return x * jax.nn.sigmoid(x)


def bottleneck_kernel(x_ref, w1_ref, b1_ref, w2_ref, b2_ref, o_ref,
                      y1p_ref, cols_ref, *, nb, H, W, C_, add):
    x = x_ref[...]                                             # (nb*H*W, C1) bf16

    # ---- cv1: 1x1 conv (BN scale pre-folded into w1) + bias + SiLU (f32) -----
    y1 = jnp.dot(x, w1_ref[...], preferred_element_type=jnp.float32)
    y1 = y1 + b1_ref[...]
    y1 = y1 * jax.nn.sigmoid(y1)                               # SiLU on EUP, f32

    # ---- padded y1 scratch (nb, H+2, W+2, C_) bf16 ----------------------------
    # Left/right zero columns folded into the interior write (one tile-aligned
    # store spanning the full W+2 sublane extent); top/bottom rows are two
    # full-width stores.  Re-done every grid step -> safe under megacore.
    y1_img = y1.reshape(nb, H, W, C_).astype(jnp.bfloat16)
    zcol = jnp.zeros((nb, H, 1, C_), jnp.bfloat16)
    y1p_ref[:, 1:H + 1, :, :] = jnp.concatenate([zcol, y1_img, zcol], axis=2)
    zrow = jnp.zeros((nb, 1, W + 2, C_), jnp.bfloat16)
    y1p_ref[:, 0:1, :, :] = zrow
    y1p_ref[:, H + 1:H + 2, :, :] = zrow

    # ---- cv2: 3x3 conv (pad=1) as one deep-K matmul via im2col ---------------
    # Each tap is a pure slice copy off the padded scratch (no reshape here).
    for t in range(9):
        ky, kx = divmod(t, 3)
        cols_ref[:, :, :, t * C_:(t + 1) * C_] = \
            y1p_ref[:, ky:ky + H, kx:kx + W, :]

    cols = cols_ref[...].reshape(nb * H * W, 9 * C_)           # free leading collapse
    y2 = jnp.dot(cols, w2_ref[...], preferred_element_type=jnp.float32)
    y2 = y2 + b2_ref[...]
    y2 = y2 * jax.nn.sigmoid(y2)

    if add:
        y2 = y2 + x.astype(jnp.float32)                        # shortcut (C1 == C2)

    o_ref[...] = y2.astype(o_ref.dtype)


def bottleneck_base(x, w1, s1, b1, w2, s2, b2, *, shortcut=True):
    """x: (N, H, W, C1) f32 NHWC.  w1: (C1, C_).  w2: (3, 3, C_, C2) HWIO.
    s*/b* are folded-BN scale / bias.  Returns (N, H, W, C2) f32."""
    N, H, W, C1 = x.shape
    C_ = w1.shape[1]
    C2 = w2.shape[-1]
    add = bool(shortcut and (C1 == C2))

    # Fold BN scale into the conv weights; bf16 operands for the MXU.
    w1f = (w1 * s1.reshape(1, C_)).astype(jnp.bfloat16)                       # (C1, C_)
    w2f = (w2 * s2.reshape(1, 1, 1, C2)).reshape(9 * C_, C2).astype(jnp.bfloat16)
    b1f = b1.reshape(1, C_).astype(jnp.float32)
    b2f = b2.reshape(1, C2).astype(jnp.float32)

    # Fold the batch into the matmul M dimension; stream activations as bf16.
    xf = x.astype(jnp.bfloat16).reshape(N * H * W, C1)

    # At most 2 grid steps: enough to feed both TensorCores on v7x and it
    # removes per-image grid-step overhead on v5e/v6e (single TC = serial loop).
    nsteps = 2 if (N % 2 == 0 and N >= 2) else 1
    nb = N // nsteps
    TB = nb * H * W

    kernel = functools.partial(
        bottleneck_kernel, nb=nb, H=H, W=W, C_=C_, add=add)

    flops = int(2 * N * H * W * (C1 * C_ + 9 * C_ * C2))
    transcendentals = int(N * H * W * (C_ + C2))
    # HBM traffic only (in-VMEM im2col / padded-scratch traffic intentionally
    # excluded — advisory hint for XLA scheduling around the custom call).
    bytes_accessed = int(N * H * W * C1 * 2          # x in (bf16)
                         + N * H * W * C2 * 4        # y out (f32)
                         + (C1 * C_ + 9 * C_ * C2) * 2
                         + (C_ + C2) * 4)

    out = pl.pallas_call(
        kernel,
        out_shape=jax.ShapeDtypeStruct((N * H * W, C2), jnp.float32),
        grid=(nsteps,),
        in_specs=[
            pl.BlockSpec((TB, C1), lambda i: (i, 0)),
            pl.BlockSpec((C1, C_), lambda i: (0, 0)),
            pl.BlockSpec((1, C_), lambda i: (0, 0)),
            pl.BlockSpec((9 * C_, C2), lambda i: (0, 0)),
            pl.BlockSpec((1, C2), lambda i: (0, 0)),
        ],
        out_specs=pl.BlockSpec((TB, C2), lambda i: (i, 0)),
        scratch_shapes=[
            pltpu.VMEM((nb, H + 2, W + 2, C_), jnp.bfloat16),   # padded y1
            pltpu.VMEM((nb, H, W, 9 * C_), jnp.bfloat16),       # im2col slab
        ],
        compiler_params=pltpu.CompilerParams(
            dimension_semantics=("parallel",),
            vmem_limit_bytes=48 * 1024 * 1024),   # headroom below v7x 64 MiB
        cost_estimate=pl.CostEstimate(
            flops=flops, transcendentals=transcendentals,
            bytes_accessed=bytes_accessed),
    )(xf, w1f, b1f, w2f, b2f)

    return out.reshape(N, H, W, C2)


def _fold_bn(gamma, beta, mean, var, eps=1e-5):
    scale = gamma / jnp.sqrt(var + eps)
    bias = beta - mean * scale
    return scale.reshape(1, -1), bias.reshape(1, -1)


def _reference(x, w1f, b1, w2f, b2, add):
    # Pure-JAX NHWC reference (BN scale already folded into the weights).
    dn = ("NHWC", "HWIO", "NHWC")
    y1 = jax.lax.conv_general_dilated(
        x, w1f.reshape(1, 1, *w1f.shape), (1, 1), "VALID", dimension_numbers=dn)
    y1 = _silu(y1 + b1.reshape(1, 1, 1, -1))
    y2 = jax.lax.conv_general_dilated(
        y1, w2f, (1, 1), ((1, 1), (1, 1)), dimension_numbers=dn)
    y2 = _silu(y2 + b2.reshape(1, 1, 1, -1))
    return x + y2 if add else y2


if __name__ == "__main__":
    # BottleneckBase(c1=16, c2=16, shortcut=True, g=1, k=(1, 3), e=0.5) -> c_=8
    N, H, W = 2, 16, 16
    c1, c2, e = 16, 16, 0.5
    c_ = int(c2 * e)

    key = jax.random.PRNGKey(0)
    ks = jax.random.split(key, 11)

    x = jax.random.normal(ks[0], (N, H, W, c1), jnp.float32)

    # cv1: Conv2d(c1, c_, 1, bias=False) -> weight [c1, c_]
    w1 = jax.random.normal(ks[1], (c1, c_), jnp.float32) * 0.1
    g1 = 1.0 + 0.1 * jax.random.normal(ks[2], (c_,), jnp.float32)
    be1 = 0.1 * jax.random.normal(ks[3], (c_,), jnp.float32)
    m1 = 0.1 * jax.random.normal(ks[4], (c_,), jnp.float32)
    v1 = jnp.abs(jax.random.normal(ks[5], (c_,), jnp.float32)) + 0.5
    s1, b1 = _fold_bn(g1, be1, m1, v1)

    # cv2: Conv2d(c_, c2, 3, padding=1, bias=False) -> weight [3, 3, c_, c2]
    w2 = jax.random.normal(ks[6], (3, 3, c_, c2), jnp.float32) * 0.1
    g2 = 1.0 + 0.1 * jax.random.normal(ks[7], (c2,), jnp.float32)
    be2 = 0.1 * jax.random.normal(ks[8], (c2,), jnp.float32)
    m2 = 0.1 * jax.random.normal(ks[9], (c2,), jnp.float32)
    v2 = jnp.abs(jax.random.normal(ks[10], (c2,), jnp.float32)) + 0.5
    s2, b2 = _fold_bn(g2, be2, m2, v2)

    out = bottleneck_base(x, w1, s1, b1, w2, s2, b2, shortcut=True)
    out = jax.block_until_ready(out)

    # Reference uses the same bf16-rounded folded weights and bf16-rounded input
    # the kernel consumes (intentional quantization); the tolerance absorbs the
    # kernel's additional bf16 rounding of the cv1 activation before cv2.
    xq = x.astype(jnp.bfloat16).astype(jnp.float32)
    w1q = (w1 * s1.reshape(1, -1)).astype(jnp.bfloat16).astype(jnp.float32)
    w2q = (w2 * s2.reshape(1, 1, 1, -1)).astype(jnp.bfloat16).astype(jnp.float32)
    ref = _reference(xq, w1q, b1, w2q, b2, add=(c1 == c2))

    assert out.shape == (N, H, W, c2)
    err = jnp.max(jnp.abs(out - ref))
    assert jnp.allclose(out, ref, rtol=2e-2, atol=2e-2), f"max abs diff {err}"

    print("KERNEL_OK")
</pallas_src>

<mosaic_0001>
module attributes {stable_mosaic.version = 11 : i64} {
  func.func @bottleneck_kernel(%arg0: i32, %arg1: memref<256x16xbf16, #tpu.memory_space<vmem>>, %arg2: memref<16x8xbf16, #tpu.memory_space<vmem>>, %arg3: memref<1x8xf32, #tpu.memory_space<vmem>>, %arg4: memref<72x16xbf16, #tpu.memory_space<vmem>>, %arg5: memref<1x16xf32, #tpu.memory_space<vmem>>, %arg6: memref<256x16xf32, #tpu.memory_space<vmem>>, %arg7: memref<1x18x18x8xbf16, #tpu.memory_space<vmem>>, %arg8: memref<1x16x16x72xbf16, #tpu.memory_space<vmem>>) attributes {dimension_semantics = [#tpu.dimension_semantics<parallel>], iteration_bounds = array<i64: 2>, scalar_prefetch = 0 : i64, scratch_operands = 2 : i64, tpu.core_type = #tpu.core_type<tc>, window_params = [{transform_indices = @transform_0, window_bounds = array<i64: 256, 16>}, {pipeline_mode = #tpu.pipeline_mode<synchronous>, transform_indices = @transform_1, window_bounds = array<i64: 16, 8>}, {pipeline_mode = #tpu.pipeline_mode<synchronous>, transform_indices = @transform_2, window_bounds = array<i64: 1, 8>}, {pipeline_mode = #tpu.pipeline_mode<synchronous>, transform_indices = @transform_3, window_bounds = array<i64: 72, 16>}, {pipeline_mode = #tpu.pipeline_mode<synchronous>, transform_indices = @transform_4, window_bounds = array<i64: 1, 16>}, {transform_indices = @transform_5, window_bounds = array<i64: 256, 16>}]} {
    %c0 = arith.constant 0 : index
    %c0_0 = arith.constant 0 : index
    %0 = vector.load %arg1[%c0, %c0_0] : memref<256x16xbf16, #tpu.memory_space<vmem>>, vector<256x16xbf16>
    %c0_1 = arith.constant 0 : index
    %c0_2 = arith.constant 0 : index
    %1 = vector.load %arg2[%c0_1, %c0_2] : memref<16x8xbf16, #tpu.memory_space<vmem>>, vector<16x8xbf16>
    %cst = arith.constant dense<0.000000e+00> : vector<256x8xf32>
    %2 = tpu.matmul %0, %1, %cst {dimension_numbers = #tpu.dot_dimension_numbers<[1], [0], [0], [1], [0, 0, 1, 1], [], []>} : vector<256x16xbf16>, vector<16x8xbf16>, vector<256x8xf32> -> vector<256x8xf32>
    %c0_3 = arith.constant 0 : index
    %c0_4 = arith.constant 0 : index
    %3 = vector.load %arg3[%c0_3, %c0_4] : memref<1x8xf32, #tpu.memory_space<vmem>>, vector<1x8xf32>
    %4 = vector.broadcast %3 : vector<1x8xf32> to vector<256x8xf32>
    %5 = arith.addf %2, %4 : vector<256x8xf32>
    %6 = arith.negf %5 : vector<256x8xf32>
    %7 = math.exp %6 : vector<256x8xf32>
    %cst_5 = arith.constant 1.000000e+00 : f32
    %8 = vector.broadcast %cst_5 : f32 to vector<256x8xf32>
    %9 = arith.addf %8, %7 : vector<256x8xf32>
    %10 = arith.divf %8, %9 : vector<256x8xf32>
    %11 = arith.mulf %5, %10 : vector<256x8xf32>
    %12 = vector.shape_cast %11 : vector<256x8xf32> to vector<1x16x16x8xf32>
    %13 = arith.truncf %12 : vector<1x16x16x8xf32> to vector<1x16x16x8xbf16>
    %cst_6 = arith.constant 0.000000e+00 : bf16
    %14 = vector.broadcast %cst_6 : bf16 to vector<1x16x1x8xbf16>
    %15 = tpu.concatenate %14, %13, %14 in 2 : vector<1x16x1x8xbf16>, vector<1x16x16x8xbf16>, vector<1x16x1x8xbf16> -> vector<1x16x18x8xbf16>
    %c0_7 = arith.constant 0 : index
    %c1 = arith.constant 1 : index
    %c0_8 = arith.constant 0 : index
    %c0_9 = arith.constant 0 : index
    %16 = vector.load %arg7[%c0_7, %c1, %c0_8, %c0_9] : memref<1x18x18x8xbf16, #tpu.memory_space<vmem>>, vector<1x16x18x8xbf16>
    tpu.vector_store %arg7[%c0_7, %c1, %c0_8, %c0_9], %15 {strides = array<i32>} : memref<1x18x18x8xbf16, #tpu.memory_space<vmem>>, vector<1x16x18x8xbf16>,
    %cst_10 = arith.constant 0.000000e+00 : bf16
    %17 = vector.broadcast %cst_10 : bf16 to vector<1x1x18x8xbf16>
    %c0_11 = arith.constant 0 : index
    %c0_12 = arith.constant 0 : index
    %c0_13 = arith.constant 0 : index
    %c0_14 = arith.constant 0 : index
    %18 = vector.load %arg7[%c0_11, %c0_12, %c0_13, %c0_14] : memref<1x18x18x8xbf16, #tpu.memory_space<vmem>>, vector<1x1x18x8xbf16>
    tpu.vector_store %arg7[%c0_11, %c0_12, %c0_13, %c0_14], %17 {strides = array<i32>} : memref<1x18x18x8xbf16, #tpu.memory_space<vmem>>, vector<1x1x18x8xbf16>,
    %c0_15 = arith.constant 0 : index
    %c17 = arith.constant 17 : index
    %c0_16 = arith.constant 0 : index
    %c0_17 = arith.constant 0 : index
    %19 = vector.load %arg7[%c0_15, %c17, %c0_16, %c0_17] : memref<1x18x18x8xbf16, #tpu.memory_space<vmem>>, vector<1x1x18x8xbf16>
    tpu.vector_store %arg7[%c0_15, %c17, %c0_16, %c0_17], %17 {strides = array<i32>} : memref<1x18x18x8xbf16, #tpu.memory_space<vmem>>, vector<1x1x18x8xbf16>,
    %c0_18 = arith.constant 0 : index
    %c0_19 = arith.constant 0 : index
    %c0_20 = arith.constant 0 : index
    %c0_21 = arith.constant 0 : index
    %20 = vector.load %arg7[%c0_18, %c0_19, %c0_20, %c0_21] : memref<1x18x18x8xbf16, #tpu.memory_space<vmem>>, vector<1x16x16x8xbf16>
    %c0_22 = arith.constant 0 : index
    %c0_23 = arith.constant 0 : index
    %c0_24 = arith.constant 0 : index
    %c0_25 = arith.constant 0 : index
    %21 = vector.load %arg8[%c0_22, %c0_23, %c0_24, %c0_25] : memref<1x16x16x72xbf16, #tpu.memory_space<vmem>>, vector<1x16x16x8xbf16>
    tpu.vector_store %arg8[%c0_22, %c0_23, %c0_24, %c0_25], %20 {strides = array<i32>} : memref<1x16x16x72xbf16, #tpu.memory_space<vmem>>, vector<1x16x16x8xbf16>,
    %c0_26 = arith.constant 0 : index
    %c0_27 = arith.constant 0 : index
    %c1_28 = arith.constant 1 : index
    %c0_29 = arith.constant 0 : index
    %22 = vector.load %arg7[%c0_26, %c0_27, %c1_28, %c0_29] : memref<1x18x18x8xbf16, #tpu.memory_space<vmem>>, vector<1x16x16x8xbf16>
    %c0_30 = arith.constant 0 : index
    %c0_31 = arith.constant 0 : index
    %c0_32 = arith.constant 0 : index
    %c8 = arith.constant 8 : index
    %23 = vector.load %arg8[%c0_30, %c0_31, %c0_32, %c8] : memref<1x16x16x72xbf16, #tpu.memory_space<vmem>>, vector<1x16x16x8xbf16>
    tpu.vector_store %arg8[%c0_30, %c0_31, %c0_32, %c8], %22 {strides = array<i32>} : memref<1x16x16x72xbf16, #tpu.memory_space<vmem>>, vector<1x16x16x8xbf16>,
    %c0_33 = arith.constant 0 : index
    %c0_34 = arith.constant 0 : index
    %c2 = arith.constant 2 : index
    %c0_35 = arith.constant 0 : index
    %24 = vector.load %arg7[%c0_33, %c0_34, %c2, %c0_35] : memref<1x18x18x8xbf16, #tpu.memory_space<vmem>>, vector<1x16x16x8xbf16>
    %c0_36 = arith.constant 0 : index
    %c0_37 = arith.constant 0 : index
    %c0_38 = arith.constant 0 : index
    %c16 = arith.constant 16 : index
    %25 = vector.load %arg8[%c0_36, %c0_37, %c0_38, %c16] : memref<1x16x16x72xbf16, #tpu.memory_space<vmem>>, vector<1x16x16x8xbf16>
    tpu.vector_store %arg8[%c0_36, %c0_37, %c0_38, %c16], %24 {strides = array<i32>} : memref<1x16x16x72xbf16, #tpu.memory_space<vmem>>, vector<1x16x16x8xbf16>,
    %c0_39 = arith.constant 0 : index
    %c1_40 = arith.constant 1 : index
    %c0_41 = arith.constant 0 : index
    %c0_42 = arith.constant 0 : index
    %26 = vector.load %arg7[%c0_39, %c1_40, %c0_41, %c0_42] : memref<1x18x18x8xbf16, #tpu.memory_space<vmem>>, vector<1x16x16x8xbf16>
    %c0_43 = arith.constant 0 : index
    %c0_44 = arith.constant 0 : index
    %c0_45 = arith.constant 0 : index
    %c24 = arith.constant 24 : index
    %27 = vector.load %arg8[%c0_43, %c0_44, %c0_45, %c24] : memref<1x16x16x72xbf16, #tpu.memory_space<vmem>>, vector<1x16x16x8xbf16>
    tpu.vector_store %arg8[%c0_43, %c0_44, %c0_45, %c24], %26 {strides = array<i32>} : memref<1x16x16x72xbf16, #tpu.memory_space<vmem>>, vector<1x16x16x8xbf16>,
    %c0_46 = arith.constant 0 : index
    %c1_47 = arith.constant 1 : index
    %c1_48 = arith.constant 1 : index
    %c0_49 = arith.constant 0 : index
    %28 = vector.load %arg7[%c0_46, %c1_47, %c1_48, %c0_49] : memref<1x18x18x8xbf16, #tpu.memory_space<vmem>>, vector<1x16x16x8xbf16>
    %c0_50 = arith.constant 0 : index
    %c0_51 = arith.constant 0 : index
    %c0_52 = arith.constant 0 : index
    %c32 = arith.constant 32 : index
    %29 = vector.load %arg8[%c0_50, %c0_51, %c0_52, %c32] : memref<1x16x16x72xbf16, #tpu.memory_space<vmem>>, vector<1x16x16x8xbf16>
    tpu.vector_store %arg8[%c0_50, %c0_51, %c0_52, %c32], %28 {strides = array<i32>} : memref<1x16x16x72xbf16, #tpu.memory_space<vmem>>, vector<1x16x16x8xbf16>,
    %c0_53 = arith.constant 0 : index
    %c1_54 = arith.constant 1 : index
    %c2_55 = arith.constant 2 : index
    %c0_56 = arith.constant 0 : index
    %30 = vector.load %arg7[%c0_53, %c1_54, %c2_55, %c0_56] : memref<1x18x18x8xbf16, #tpu.memory_space<vmem>>, vector<1x16x16x8xbf16>
    %c0_57 = arith.constant 0 : index
    %c0_58 = arith.constant 0 : index
    %c0_59 = arith.constant 0 : index
    %c40 = arith.constant 40 : index
    %31 = vector.load %arg8[%c0_57, %c0_58, %c0_59, %c40] : memref<1x16x16x72xbf16, #tpu.memory_space<vmem>>, vector<1x16x16x8xbf16>
    tpu.vector_store %arg8[%c0_57, %c0_58, %c0_59, %c40], %30 {strides = array<i32>} : memref<1x16x16x72xbf16, #tpu.memory_space<vmem>>, vector<1x16x16x8xbf16>,
    %c0_60 = arith.constant 0 : index
    %c2_61 = arith.constant 2 : index
    %c0_62 = arith.constant 0 : index
    %c0_63 = arith.constant 0 : index
    %32 = vector.load %arg7[%c0_60, %c2_61, %c0_62, %c0_63] : memref<1x18x18x8xbf16, #tpu.memory_space<vmem>>, vector<1x16x16x8xbf16>
    %c0_64 = arith.constant 0 : index
    %c0_65 = arith.constant 0 : index
    %c0_66 = arith.constant 0 : index
    %c48 = arith.constant 48 : index
    %33 = vector.load %arg8[%c0_64, %c0_65, %c0_66, %c48] : memref<1x16x16x72xbf16, #tpu.memory_space<vmem>>, vector<1x16x16x8xbf16>
    tpu.vector_store %arg8[%c0_64, %c0_65, %c0_66, %c48], %32 {strides = array<i32>} : memref<1x16x16x72xbf16, #tpu.memory_space<vmem>>, vector<1x16x16x8xbf16>,
    %c0_67 = arith.constant 0 : index
    %c2_68 = arith.constant 2 : index
    %c1_69 = arith.constant 1 : index
    %c0_70 = arith.constant 0 : index
    %34 = vector.load %arg7[%c0_67, %c2_68, %c1_69, %c0_70] : memref<1x18x18x8xbf16, #tpu.memory_space<vmem>>, vector<1x16x16x8xbf16>
    %c0_71 = arith.constant 0 : index
    %c0_72 = arith.constant 0 : index
    %c0_73 = arith.constant 0 : index
    %c56 = arith.constant 56 : index
    %35 = vector.load %arg8[%c0_71, %c0_72, %c0_73, %c56] : memref<1x16x16x72xbf16, #tpu.memory_space<vmem>>, vector<1x16x16x8xbf16>
    tpu.vector_store %arg8[%c0_71, %c0_72, %c0_73, %c56], %34 {strides = array<i32>} : memref<1x16x16x72xbf16, #tpu.memory_space<vmem>>, vector<1x16x16x8xbf16>,
    %c0_74 = arith.constant 0 : index
    %c2_75 = arith.constant 2 : index
    %c2_76 = arith.constant 2 : index
    %c0_77 = arith.constant 0 : index
    %36 = vector.load %arg7[%c0_74, %c2_75, %c2_76, %c0_77] : memref<1x18x18x8xbf16, #tpu.memory_space<vmem>>, vector<1x16x16x8xbf16>
    %c0_78 = arith.constant 0 : index
    %c0_79 = arith.constant 0 : index
    %c0_80 = arith.constant 0 : index
    %c64 = arith.constant 64 : index
    %37 = vector.load %arg8[%c0_78, %c0_79, %c0_80, %c64] : memref<1x16x16x72xbf16, #tpu.memory_space<vmem>>, vector<1x16x16x8xbf16>
    tpu.vector_store %arg8[%c0_78, %c0_79, %c0_80, %c64], %36 {strides = array<i32>} : memref<1x16x16x72xbf16, #tpu.memory_space<vmem>>, vector<1x16x16x8xbf16>,
    %c0_81 = arith.constant 0 : index
    %c0_82 = arith.constant 0 : index
    %c0_83 = arith.constant 0 : index
    %c0_84 = arith.constant 0 : index
    %38 = vector.load %arg8[%c0_81, %c0_82, %c0_83, %c0_84] : memref<1x16x16x72xbf16, #tpu.memory_space<vmem>>, vector<1x16x16x72xbf16>
    %39 = vector.shape_cast %38 : vector<1x16x16x72xbf16> to vector<256x72xbf16>
    %c0_85 = arith.constant 0 : index
    %c0_86 = arith.constant 0 : index
    %40 = vector.load %arg4[%c0_85, %c0_86] : memref<72x16xbf16, #tpu.memory_space<vmem>>, vector<72x16xbf16>
    %cst_87 = arith.constant dense<0.000000e+00> : vector<256x16xf32>
    %41 = tpu.matmul %39, %40, %cst_87 {dimension_numbers = #tpu.dot_dimension_numbers<[1], [0], [0], [1], [0, 0, 1, 1], [], []>} : vector<256x72xbf16>, vector<72x16xbf16>, vector<256x16xf32> -> vector<256x16xf32>
    %c0_88 = arith.constant 0 : index
    %c0_89 = arith.constant 0 : index
    %42 = vector.load %arg5[%c0_88, %c0_89] : memref<1x16xf32, #tpu.memory_space<vmem>>, vector<1x16xf32>
    %43 = vector.broadcast %42 : vector<1x16xf32> to vector<256x16xf32>
    %44 = arith.addf %41, %43 : vector<256x16xf32>
    %45 = arith.negf %44 : vector<256x16xf32>
    %46 = math.exp %45 : vector<256x16xf32>
    %cst_90 = arith.constant 1.000000e+00 : f32
    %47 = vector.broadcast %cst_90 : f32 to vector<256x16xf32>
    %48 = arith.addf %47, %46 : vector<256x16xf32>
    %49 = arith.divf %47, %48 : vector<256x16xf32>
    %50 = arith.mulf %44, %49 : vector<256x16xf32>
    %51 = arith.extf %0 : vector<256x16xbf16> to vector<256x16xf32>
    %52 = arith.addf %50, %51 : vector<256x16xf32>
    %c0_91 = arith.constant 0 : index
    %c0_92 = arith.constant 0 : index
    %53 = vector.load %arg6[%c0_91, %c0_92] : memref<256x16xf32, #tpu.memory_space<vmem>>, vector<256x16xf32>
    tpu.vector_store %arg6[%c0_91, %c0_92], %52 {strides = array<i32>} : memref<256x16xf32, #tpu.memory_space<vmem>>, vector<256x16xf32>,
    return
  }
  func.func @transform_0(%arg0: i32) -> (i32, i32) {
    %c0_i32 = arith.constant 0 : i32
    %c0_i32_0 = arith.constant 0 : i32
    return %arg0, %c0_i32 : i32, i32
  }
  func.func @transform_1(%arg0: i32) -> (i32, i32) {
    %c0_i32 = arith.constant 0 : i32
    %c0_i32_0 = arith.constant 0 : i32
    %c0_i32_1 = arith.constant 0 : i32
    return %c0_i32, %c0_i32_0 : i32, i32
  }
  func.func @transform_2(%arg0: i32) -> (i32, i32) {
    %c0_i32 = arith.constant 0 : i32
    %c0_i32_0 = arith.constant 0 : i32
    %c0_i32_1 = arith.constant 0 : i32
    return %c0_i32, %c0_i32_0 : i32, i32
  }
  func.func @transform_3(%arg0: i32) -> (i32, i32) {
    %c0_i32 = arith.constant 0 : i32
    %c0_i32_0 = arith.constant 0 : i32
    %c0_i32_1 = arith.constant 0 : i32
    return %c0_i32, %c0_i32_0 : i32, i32
  }
  func.func @transform_4(%arg0: i32) -> (i32, i32) {
    %c0_i32 = arith.constant 0 : i32
    %c0_i32_0 = arith.constant 0 : i32
    %c0_i32_1 = arith.constant 0 : i32
    return %c0_i32, %c0_i32_0 : i32, i32
  }
  func.func @transform_5(%arg0: i32) -> (i32, i32) {
    %c0_i32 = arith.constant 0 : i32
    %c0_i32_0 = arith.constant 0 : i32
    return %arg0, %c0_i32 : i32, i32
  }
}

</mosaic_0001>

<llo_original>
// kernel: tpu_custom_call.1
$region0: #{tpu_custom_call.1}
  #allocation0 [shape = 'u32[]', space=smem, size = 0x4, offset = 0x4, fixed_abs, tag = 'smem constant byte address 0x4 - core index']
  #allocation1 [shape = 'u32[144,128]{1,0:T(1,128)}', space=vmem, size = 0x12000, scoped, tag = 'internal scratch']
  #allocation2 [shape = 'bf16[1,18,18,8]{3,2,1,0:T(8,128)(2,1)}', space=vmem, size = 0x1b000, scoped, tag = 'scratch operand']
  #allocation3 [shape = 'bf16[1,16,16,72]{3,2,1,0:T(8,128)(2,1)}', space=vmem, size = 0x10000, scoped, tag = 'scratch operand']
  %s0 = inlined_call_operand.vmem [shape: bf16[512,16], index: 0, kind: input, shape index: {}]
  %s1 = inlined_call_operand.vmem [shape: bf16[16,8], index: 1, kind: input, shape index: {}]
  %s2 = inlined_call_operand.vmem [shape: f32[1,8], index: 2, kind: input, shape index: {}]
  %s3 = inlined_call_operand.vmem [shape: bf16[72,16], index: 3, kind: input, shape index: {}]
  %s4 = inlined_call_operand.vmem [shape: f32[1,16], index: 4, kind: input, shape index: {}]
  %s5 = inlined_call_operand.vmem [shape: f32[512,16], index: 5, kind: output, shape index: {}]
  %s6 = sld [smem:[#allocation0]]
  $region53: #{tpu_custom_call.1} parent=0
    _
  %s8 = ssub.s32 1, %s6
  %s9 = scalar_select 0, %s8, %s6
  loop: start=0, step=1, limit=4
  $region2: #{tpu_custom_call.1} parent=0 // loop_pre_header
    _
  $region3: #{tpu_custom_call.1} parent=0 // loop_header
    %s11 = sphi 0, %s15
    %p12 = scmp.ge.s32.totalorder %s11, 4
    %s21 = sphi 0, %s23
    %s24 = sphi 0, %s21
    %s25 = sphi 0, %s24
    %s41 = sphi 0, %s25
    %s45 = sphi 0, %s45
    %s47 = sphi 0, %s45
    %s48 = sphi 0, %s47
    %s62 = sphi 0, %s48
    %s66 = sphi 0, %s66
    %s68 = sphi 0, %s66
    %s69 = sphi 0, %s68
    %s83 = sphi 0, %s69
    %s87 = sphi 0, %s87
    %s89 = sphi 0, %s87
    %s90 = sphi 0, %s89
    %s104 = sphi 0, %s90
    %s108 = sphi 0, %s108
    %s110 = sphi 0, %s108
    %s111 = sphi 0, %s110
    %s125 = sphi 0, %s111
    %s131 = sphi 0, %s133
    %s134 = sphi 0, %s131
    %s135 = sphi 0, %s134
    %s151 = sphi 0, %s135
  $region4: #{tpu_custom_call.1} parent=0 // loop_header_branch
    %14 = sbr.rel (%p12) target = $region8
  $region5: #{tpu_custom_call.1} parent=0 // loop_body
    %s16 = ssub.s32 %s11, 1
    %s17 = ssub.s32 %s11, 2
    %s18 = sadd.s32 %s11, 1
    %s19 = ssub.s32 %s11, %s18
    %p20 = scmp.eq.s32.totalorder %s19, 0
    %s22 = sadd.s32 %s21, 1
    %s23 = scalar_select %p20, %s21, %s22
    %p26 = pneg %p20
    %p27 = scmp.eq.s32.totalorder %s11, 1
    %p28 = por %p26, %p27
    %p29 = scmp.ne.s32.totalorder %s21, %s24
    %p30 = scmp.eq.s32.totalorder %s11, 0
    %p31 = por %p29, %p30
    %p32 = scmp.ne.s32.totalorder %s21, %s24
    %p33 = scmp.eq.s32.totalorder %s16, 1
    %p34 = por %p32, %p33
    %p35 = scmp.ne.s32.totalorder %s24, %s25
    %p36 = scmp.eq.s32.totalorder %s16, 0
    %p37 = por %p35, %p36
    %p38 = scmp.ne.s32.totalorder %s24, %s25
    %p39 = scmp.eq.s32.totalorder %s17, 1
    %p40 = por %p38, %p39
    %p42 = scmp.ne.s32.totalorder %s25, %s41
    %p43 = scmp.eq.s32.totalorder %s17, 0
    %p44 = por %p42, %p43
    %s46 = sadd.s32 %s45, 1
    %p49 = scmp.eq.s32.totalorder %s11, 1
    %p50 = scmp.ne.s32.totalorder %s45, %s47
    %p51 = scmp.eq.s32.totalorder %s11, 0
    %p52 = por %p50, %p51
    %p53 = scmp.ne.s32.totalorder %s45, %s47
    %p54 = scmp.eq.s32.totalorder %s16, 1
    %p55 = por %p53, %p54
    %p56 = scmp.ne.s32.totalorder %s47, %s48
    %p57 = scmp.eq.s32.totalorder %s16, 0
    %p58 = por %p56, %p57
    %p59 = scmp.ne.s32.totalorder %s47, %s48
    %p60 = scmp.eq.s32.totalorder %s17, 1
    %p61 = por %p59, %p60
    %p63 = scmp.ne.s32.totalorder %s48, %s62
    %p64 = scmp.eq.s32.totalorder %s17, 0
    %p65 = por %p63, %p64
    %s67 = sadd.s32 %s66, 1
    %p70 = scmp.eq.s32.totalorder %s11, 1
    %p71 = scmp.ne.s32.totalorder %s66, %s68
    %p72 = scmp.eq.s32.totalorder %s11, 0
    %p73 = por %p71, %p72
    %p74 = scmp.ne.s32.totalorder %s66, %s68
    %p75 = scmp.eq.s32.totalorder %s16, 1
    %p76 = por %p74, %p75
    %p77 = scmp.ne.s32.totalorder %s68, %s69
    %p78 = scmp.eq.s32.totalorder %s16, 0
    %p79 = por %p77, %p78
    %p80 = scmp.ne.s32.totalorder %s68, %s69
    %p81 = scmp.eq.s32.totalorder %s17, 1
    %p82 = por %p80, %p81
    %p84 = scmp.ne.s32.totalorder %s69, %s83
    %p85 = scmp.eq.s32.totalorder %s17, 0
    %p86 = por %p84, %p85
    %s88 = sadd.s32 %s87, 1
    %p91 = scmp.eq.s32.totalorder %s11, 1
    %p92 = scmp.ne.s32.totalorder %s87, %s89
    %p93 = scmp.eq.s32.totalorder %s11, 0
    %p94 = por %p92, %p93
    %p95 = scmp.ne.s32.totalorder %s87, %s89
    %p96 = scmp.eq.s32.totalorder %s16, 1
    %p97 = por %p95, %p96
    %p98 = scmp.ne.s32.totalorder %s89, %s90
    %p99 = scmp.eq.s32.totalorder %s16, 0
    %p100 = por %p98, %p99
    %p101 = scmp.ne.s32.totalorder %s89, %s90
    %p102 = scmp.eq.s32.totalorder %s17, 1
    %p103 = por %p101, %p102
    %p105 = scmp.ne.s32.totalorder %s90, %s104
    %p106 = scmp.eq.s32.totalorder %s17, 0
    %p107 = por %p105, %p106
    %s109 = sadd.s32 %s108, 1
    %p112 = scmp.eq.s32.totalorder %s11, 1
    %p113 = scmp.ne.s32.totalorder %s108, %s110
    %p114 = scmp.eq.s32.totalorder %s11, 0
    %p115 = por %p113, %p114
    %p116 = scmp.ne.s32.totalorder %s108, %s110
    %p117 = scmp.eq.s32.totalorder %s16, 1
    %p118 = por %p116, %p117
    %p119 = scmp.ne.s32.totalorder %s110, %s111
    %p120 = scmp.eq.s32.totalorder %s16, 0
    %p121 = por %p119, %p120
    %p122 = scmp.ne.s32.totalorder %s110, %s111
    %p123 = scmp.eq.s32.totalorder %s17, 1
    %p124 = por %p122, %p123
    %p126 = scmp.ne.s32.totalorder %s111, %s125
    %p127 = scmp.eq.s32.totalorder %s17, 0
    %p128 = por %p126, %p127
    %s129 = ssub.s32 %s11, %s18
    %p130 = scmp.eq.s32.totalorder %s129, 0
    %s132 = sadd.s32 %s131, 1
    %s133 = scalar_select %p130, %s131, %s132
    %p136 = pneg %p130
    %p137 = scmp.eq.s32.totalorder %s11, 1
    %p138 = por %p136, %p137
    %p139 = scmp.ne.s32.totalorder %s131, %s134
    %p140 = scmp.eq.s32.totalorder %s11, 0
    %p141 = por %p139, %p140
    %p142 = scmp.ne.s32.totalorder %s131, %s134
    %p143 = scmp.eq.s32.totalorder %s16, 1
    %p144 = por %p142, %p143
    %p145 = scmp.ne.s32.totalorder %s134, %s135
    %p146 = scmp.eq.s32.totalorder %s16, 0
    %p147 = por %p145, %p146
    %p148 = scmp.ne.s32.totalorder %s134, %s135
    %p149 = scmp.eq.s32.totalorder %s17, 1
    %p150 = por %p148, %p149
    %p152 = scmp.ne.s32.totalorder %s135, %s151
    %p153 = scmp.eq.s32.totalorder %s17, 0
    %p154 = por %p152, %p153
    %p155 = scmp.le.s32.totalorder 1, %s11
    %p156 = scmp.lt.s32.totalorder %s11, 3
    %p157 = pnand %p155, %p156
    %p158 = pneg %p157
    // Predicated region
    $region9: #{tpu_custom_call.1} parent=5 // pred_check
      _
    $region10: #{tpu_custom_call.1} parent=5 // pred_check_branch
      %160 = sbr.rel (%p157) target = $region12
    $region11: #{tpu_custom_call.1} parent=5 // pred_region
      %s161 = ssub.s32 %s11, 1
      // Predicated region
      $region13: #{tpu_custom_call.1} parent=11 // pred_check
        %p162 = pneg %p58
      $region14: #{tpu_custom_call.1} parent=11 // pred_check_branch
        %164 = sbr.rel (%p162) target = $region16
      $region15: #{tpu_custom_call.1} parent=11 // pred_region
        _
      $region16: #{tpu_custom_call.1} parent=11 // pred_fallthru
        _
      // Predicated region
      $region17: #{tpu_custom_call.1} parent=11 // pred_check
        %p165 = pneg %p79
      $region18: #{tpu_custom_call.1} parent=11 // pred_check_branch
        %167 = sbr.rel (%p165) target = $region20
      $region19: #{tpu_custom_call.1} parent=11 // pred_region
        _
      $region20: #{tpu_custom_call.1} parent=11 // pred_fallthru
        _
      // Predicated region
      $region21: #{tpu_custom_call.1} parent=11 // pred_check
        %p168 = pneg %p100
      $region22: #{tpu_custom_call.1} parent=11 // pred_check_branch
        %170 = sbr.rel (%p168) target = $region24
      $region23: #{tpu_custom_call.1} parent=11 // pred_region
        _
      $region24: #{tpu_custom_call.1} parent=11 // pred_fallthru
        _
      // Predicated region
      $region25: #{tpu_custom_call.1} parent=11 // pred_check
        %p171 = pneg %p121
      $region26: #{tpu_custom_call.1} parent=11 // pred_check_branch
        %173 = sbr.rel (%p171) target = $region28
      $region27: #{tpu_custom_call.1} parent=11 // pred_region
        _
      $region28: #{tpu_custom_call.1} parent=11 // pred_fallthru
        _
    $region12: #{tpu_custom_call.1} parent=5 // pred_fallthru
      _
    %p174 = scmp.lt.s32.totalorder %s11, 2
    // Predicated region
    $region29: #{tpu_custom_call.1} parent=5 // pred_check
      %p175 = pneg %p174
    $region30: #{tpu_custom_call.1} parent=5 // pred_check_branch
      %177 = sbr.rel (%p175) target = $region32
    $region31: #{tpu_custom_call.1} parent=5 // pred_region
      // Predicated region
      $region33: #{tpu_custom_call.1} parent=31 // pred_check
        %p178 = pneg %p31
      $region34: #{tpu_custom_call.1} parent=31 // pred_check_branch
        %180 = sbr.rel (%p178) target = $region36
      $region35: #{tpu_custom_call.1} parent=31 // pred_region
        %s181 = smul.u32 32, %s11
        %p182 = scmp.lt.s32.totalorder %s181, 63
        %s183 = scalar_select %p182, %s181, 63
        %s184 = smul.addr %s183, 4
        %s185 = scalar_lea.vmem %s0, %s184
        %s186 = smul.u32 32, %s11
      $region36: #{tpu_custom_call.1} parent=31 // pred_fallthru
        _
    $region32: #{tpu_custom_call.1} parent=5 // pred_fallthru
      _
    %p187 = scmp.le.s32.totalorder 1, %s11
    %p188 = scmp.lt.s32.totalorder %s11, 3
    %p189 = pnand %p187, %p188
    %p190 = pneg %p189
    // Predicated region
    $region37: #{tpu_custom_call.1} parent=5 // pred_check
      _
    $region38: #{tpu_custom_call.1} parent=5 // pred_check_branch
      %192 = sbr.rel (%p189) target = $region40
    $region39: #{tpu_custom_call.1} parent=5 // pred_region
      %s193 = ssub.s32 %s11, 1
      %s194 = smul.u32 32, %s16
      %p195 = scmp.lt.s32.totalorder %s194, 63
      %s196 = scalar_select %p195, %s194, 63
      %s197 = smul.addr %s196, 4
      %s198 = scalar_lea.vmem %s0, %s197
      %p199 = pneg %p37
      %p200 = pneg %p34
      %p201 = pneg %p58
      %p202 = pneg %p55
      %p203 = pneg %p79
      %p204 = pneg %p76
      %p205 = pneg %p100
      %p206 = pneg %p97
      %p207 = pneg %p121
      %p208 = pneg %p118
      %p209 = pneg %p147
      %p210 = pneg %p144
      %s211 = smul.u32 32, %s16
      %p212 = scmp.lt.s32.totalorder %s211, 63
      %s213 = scalar_select %p212, %s211, 63
      %s214 = smul.addr %s213, 8
      %s215 = scalar_lea.vmem %s5, %s214
      %s216 = smul.u32 32, %s16
      %p217 = scmp.lt.s32.totalorder %s216, 63
      %s218 = scalar_select %p217, %s216, 63
      %s219 = smul.addr %s218, 4
      %s220 = scalar_lea.vmem %s0, %s219
      %s221 = smul.u32 32, %s16
      %s222 = smul.u32 32, %s16
      %p223 = scmp.lt.s32.totalorder %s222, 63
      %s224 = scalar_select %p223, %s222, 63
      %s225 = smul.addr %s224, 8
      %s226 = scalar_lea.vmem %s5, %s225
      %s227 = smul.u32 32, %s16
      %v229 = vld [vmem:[%s220] sm:$0xf]
      %v230 = vld [vmem:[%s220 + $0x4] sm:$0xf]
      %v231 = vld [vmem:[%s220 + $0x8] sm:$0xf]
      %v232 = vld [vmem:[%s220 + $0xc] sm:$0xf]
      %v233 = vld [vmem:[%s220 + $0x10] sm:$0xf]
      %v234 = vld [vmem:[%s220 + $0x14] sm:$0xf]
      %v235 = vld [vmem:[%s220 + $0x18] sm:$0xf]
      %v236 = vld [vmem:[%s220 + $0x1c] sm:$0xf]
      %v237 = vld [vmem:[%s220 + $0x20] sm:$0xf]
      %v238 = vld [vmem:[%s220 + $0x24] sm:$0xf]
      %v239 = vld [vmem:[%s220 + $0x28] sm:$0xf]
      %v240 = vld [vmem:[%s220 + $0x2c] sm:$0xf]
      %v241 = vld [vmem:[%s220 + $0x30] sm:$0xf]
      %v242 = vld [vmem:[%s220 + $0x34] sm:$0xf]
      %v243 = vld [vmem:[%s220 + $0x38] sm:$0xf]
      %v244 = vld [vmem:[%s220 + $0x3c] sm:$0xf]
      %v245 = vld [vmem:[%s220 + $0x40] sm:$0xf]
      %v246 = vld [vmem:[%s220 + $0x44] sm:$0xf]
      %v247 = vld [vmem:[%s220 + $0x48] sm:$0xf]
      %v248 = vld [vmem:[%s220 + $0x4c] sm:$0xf]
      %v249 = vld [vmem:[%s220 + $0x50] sm:$0xf]
      %v250 = vld [vmem:[%s220 + $0x54] sm:$0xf]
      %v251 = vld [vmem:[%s220 + $0x58] sm:$0xf]
      %v252 = vld [vmem:[%s220 + $0x5c] sm:$0xf]
      %v253 = vld [vmem:[%s220 + $0x60] sm:$0xf]
      %v254 = vld [vmem:[%s220 + $0x64] sm:$0xf]
      %v255 = vld [vmem:[%s220 + $0x68] sm:$0xf]
      %v256 = vld [vmem:[%s220 + $0x6c] sm:$0xf]
      %v257 = vld [vmem:[%s220 + $0x70] sm:$0xf]
      %v258 = vld [vmem:[%s220 + $0x74] sm:$0xf]
      %v259 = vld [vmem:[%s220 + $0x78] sm:$0xf]
      %v260 = vld [vmem:[%s220 + $0x7c] sm:$0xf]
      %v261 = vld [vmem:[%s1] sm:$0xf]
      %v262 = vld [vmem:[%s1 + $0x4] sm:$0xf]
      %v263 = vld [vmem:[%s2] sm:$0x1]
      %v265 = vlaneseq
      %v266 = vshrl.u32 %v265, 7
      %v267 = vsub.s32 0, %v266
      %v268 = vrot.slane %v263, %v267
      %v302 = vunpack.c.l.b16 %v229
      %v303 = vunpack.c.l.b16 %v230
      %v304 = vunpack.c.l.b16 %v231
      %v305 = vunpack.c.l.b16 %v232
      %v306 = vunpack.c.l.b16 %v233
      %v307 = vunpack.c.l.b16 %v234
      %v308 = vunpack.c.l.b16 %v235
      %v309 = vunpack.c.l.b16 %v236
      %v310 = vunpack.c.l.b16 %v237
      %v311 = vunpack.c.l.b16 %v238
      %v312 = vunpack.c.l.b16 %v239
      %v313 = vunpack.c.l.b16 %v240
      %v314 = vunpack.c.l.b16 %v241
      %v315 = vunpack.c.l.b16 %v242
      %v316 = vunpack.c.l.b16 %v243
      %v317 = vunpack.c.l.b16 %v244
      %v318 = vunpack.c.l.b16 %v245
      %v319 = vunpack.c.l.b16 %v246
      %v320 = vunpack.c.l.b16 %v247
      %v321 = vunpack.c.l.b16 %v248
      %v322 = vunpack.c.l.b16 %v249
      %v323 = vunpack.c.l.b16 %v250
      %v324 = vunpack.c.l.b16 %v251
      %v325 = vunpack.c.l.b16 %v252
      %v326 = vunpack.c.l.b16 %v253
      %v327 = vunpack.c.l.b16 %v254
      %v328 = vunpack.c.l.b16 %v255
      %v329 = vunpack.c.l.b16 %v256
      %v330 = vunpack.c.l.b16 %v257
      %v331 = vunpack.c.l.b16 %v258
      %v332 = vunpack.c.l.b16 %v259
      %v333 = vunpack.c.l.b16 %v260
      %v334 = vpack.c.b16 %v303, %v302
      %v335 = vpack.c.b16 %v305, %v304
      %v336 = vpack.c.b16 %v307, %v306
      %v337 = vpack.c.b16 %v309, %v308
      %v338 = vpack.c.b16 %v311, %v310
      %v339 = vpack.c.b16 %v313, %v312
      %v340 = vpack.c.b16 %v315, %v314
      %v341 = vpack.c.b16 %v317, %v316
      %v342 = vpack.c.b16 %v319, %v318
      %v343 = vpack.c.b16 %v321, %v320
      %v344 = vpack.c.b16 %v323, %v322
      %v345 = vpack.c.b16 %v325, %v324
      %v346 = vpack.c.b16 %v327, %v326
      %v347 = vpack.c.b16 %v329, %v328
      %v348 = vpack.c.b16 %v331, %v330
      %v349 = vpack.c.b16 %v333, %v332
      %v352 = vunpack.c.l.b16 %v261
      %v353 = vunpack.c.l.b16 %v262
      %v354 = vpack.c.b16 %v353, %v352
      %vm356 = vcmask 130048
      %v358 = vsel %vm356, %v334, 0
      %v361 = vsel %vm356, %v335, 0
      %v364 = vsel %vm356, %v336, 0
      %v367 = vsel %vm356, %v337, 0
      %v370 = vsel %vm356, %v338, 0
      %v373 = vsel %vm356, %v339, 0
      %v376 = vsel %vm356, %v340, 0
      %v379 = vsel %vm356, %v341, 0
      %v382 = vsel %vm356, %v342, 0
      %v385 = vsel %vm356, %v343, 0
      %v388 = vsel %vm356, %v344, 0
      %v391 = vsel %vm356, %v345, 0
      %v394 = vsel %vm356, %v346, 0
      %v397 = vsel %vm356, %v347, 0
      %v400 = vsel %vm356, %v348, 0
      %v403 = vsel %vm356, %v349, 0
      %405 = vmatprep.subr.bf16.mxu0 0
      %406 = vmatpush1.bf16.msra.mxu0 0
      %407 = vmatprep.subr.bf16.mxu0 0
      %408 = vmatpush1.bf16.msra.mxu0 0
      %409 = vmatprep.subr.bf16.mxu0 0
      %410 = vmatpush1.bf16.msra.mxu0 0
      %411 = vmatprep.subr.bf16.mxu0 0
      %412 = vmatpush1.bf16.msra.mxu0 0
      %413 = vmatprep.subr.bf16.mxu0 0
      %414 = vmatpush1.bf16.msra.mxu0 0
      %415 = vmatprep.subr.bf16.mxu0 0
      %416 = vmatpush1.bf16.msra.mxu0 0
      %417 = vmatprep.subr.bf16.mxu0 0
      %418 = vmatpush1.bf16.msra.mxu0 0
      %419 = vmatprep.subr.bf16.mxu0 0
      %420 = vmatpush1.bf16.msra.mxu0 %v354
      %421 = vmatprep.subr.bf16.mxu0 0
      %422 = vmatpush2.bf16.msra.mxu0 0
      %423 = vmatprep.subr.bf16.mxu0 0
      %424 = vmatpush2.bf16.msra.mxu0 0
      %425 = vmatprep.subr.bf16.mxu0 0
      %426 = vmatpush2.bf16.msra.mxu0 0
      %427 = vmatprep.subr.bf16.mxu0 0
      %428 = vmatpush2.bf16.msra.mxu0 0
      %429 = vmatprep.subr.bf16.mxu0 0
      %430 = vmatpush2.bf16.msra.mxu0 0
      %431 = vmatprep.subr.bf16.mxu0 0
      %432 = vmatpush2.bf16.msra.mxu0 0
      %433 = vmatprep.subr.bf16.mxu0 0
      %434 = vmatpush2.bf16.msra.mxu0 0
      %435 = vmatprep.subr.bf16.mxu0 0
      %436 = vmatpush2.bf16.msra.mxu0 0
      %437 = vmatprep.mubr.bf16.mxu0 0
      %438 = vmatmul.mubr.bf16.gmra.mxu0 %v358
      %v439 = vpop.f32.mrf.mxu0
      %v440 = vadd.f32 %v268, %v439
      %v441 = vpop.f32.mrf.mxu0
      %v442 = vpop.f32.mrf.mxu0
      %v443 = vadd.f32 %v268, %v442
      %v444 = vpop.f32.mrf.mxu0
      %445 = vmatprep.mubr.bf16.mxu0 0
      %446 = vmatmul.mubr.bf16.gmra.mxu0 %v361
      %v447 = vpop.f32.mrf.mxu0
      %v448 = vadd.f32 %v268, %v447
      %v449 = vpop.f32.mrf.mxu0
      %v450 = vpop.f32.mrf.mxu0
      %v451 = vadd.f32 %v268, %v450
      %v452 = vpop.f32.mrf.mxu0
      %453 = vmatprep.mubr.bf16.mxu0 0
      %454 = vmatmul.mubr.bf16.gmra.mxu0 %v364
      %v455 = vpop.f32.mrf.mxu0
      %v456 = vadd.f32 %v268, %v455
      %v457 = vpop.f32.mrf.mxu0
      %v458 = vpop.f32.mrf.mxu0
      %v459 = vadd.f32 %v268, %v458
      %v460 = vpop.f32.mrf.mxu0
      %461 = vmatprep.mubr.bf16.mxu0 0
      %462 = vmatmul.mubr.bf16.gmra.mxu0 %v367
      %v463 = vpop.f32.mrf.mxu0
      %v464 = vadd.f32 %v268, %v463
      %v465 = vpop.f32.mrf.mxu0
      %v466 = vpop.f32.mrf.mxu0
      %v467 = vadd.f32 %v268, %v466
      %v468 = vpop.f32.mrf.mxu0
      %469 = vmatprep.mubr.bf16.mxu0 0
      %470 = vmatmul.mubr.bf16.gmra.mxu0 %v370
      %v471 = vpop.f32.mrf.mxu0
      %v472 = vadd.f32 %v268, %v471
      %v473 = vpop.f32.mrf.mxu0
      %v474 = vpop.f32.mrf.mxu0
      %v475 = vadd.f32 %v268, %v474
      %v476 = vpop.f32.mrf.mxu0
      %477 = vmatprep.mubr.bf16.mxu0 0
      %478 = vmatmul.mubr.bf16.gmra.mxu0 %v373
      %v479 = vpop.f32.mrf.mxu0
      %v480 = vadd.f32 %v268, %v479
      %v481 = vpop.f32.mrf.mxu0
      %v482 = vpop.f32.mrf.mxu0
      %v483 = vadd.f32 %v268, %v482
      %v484 = vpop.f32.mrf.mxu0
      %485 = vmatprep.mubr.bf16.mxu0 0
      %486 = vmatmul.mubr.bf16.gmra.mxu0 %v376
      %v487 = vpop.f32.mrf.mxu0
      %v488 = vadd.f32 %v268, %v487
      %v489 = vpop.f32.mrf.mxu0
      %v490 = vpop.f32.mrf.mxu0
      %v491 = vadd.f32 %v268, %v490
      %v492 = vpop.f32.mrf.mxu0
      %493 = vmatprep.mubr.bf16.mxu0 0
      %494 = vmatmul.mubr.bf16.gmra.mxu0 %v379
      %v495 = vpop.f32.mrf.mxu0
      %v496 = vadd.f32 %v268, %v495
      %v497 = vpop.f32.mrf.mxu0
      %v498 = vpop.f32.mrf.mxu0
      %v499 = vadd.f32 %v268, %v498
      %v500 = vpop.f32.mrf.mxu0
      %501 = vmatprep.mubr.bf16.mxu0 0
      %502 = vmatmul.mubr.bf16.gmra.mxu0 %v382
      %v503 = vpop.f32.mrf.mxu0
      %v504 = vadd.f32 %v268, %v503
      %v505 = vpop.f32.mrf.mxu0
      %v506 = vpop.f32.mrf.mxu0
      %v507 = vadd.f32 %v268, %v506
      %v508 = vpop.f32.mrf.mxu0
      %509 = vmatprep.mubr.bf16.mxu0 0
      %510 = vmatmul.mubr.bf16.gmra.mxu0 %v385
      %v511 = vpop.f32.mrf.mxu0
      %v512 = vadd.f32 %v268, %v511
      %v513 = vpop.f32.mrf.mxu0
      %v514 = vpop.f32.mrf.mxu0
      %v515 = vadd.f32 %v268, %v514
      %v516 = vpop.f32.mrf.mxu0
      %517 = vmatprep.mubr.bf16.mxu0 0
      %518 = vmatmul.mubr.bf16.gmra.mxu0 %v388
      %v519 = vpop.f32.mrf.mxu0
      %v520 = vadd.f32 %v268, %v519
      %v521 = vpop.f32.mrf.mxu0
      %v522 = vpop.f32.mrf.mxu0
      %v523 = vadd.f32 %v268, %v522
      %v524 = vpop.f32.mrf.mxu0
      %525 = vmatprep.mubr.bf16.mxu0 0
      %526 = vmatmul.mubr.bf16.gmra.mxu0 %v391
      %v527 = vpop.f32.mrf.mxu0
      %v528 = vadd.f32 %v268, %v527
      %v529 = vpop.f32.mrf.mxu0
      %v530 = vpop.f32.mrf.mxu0
      %v531 = vadd.f32 %v268, %v530
      %v532 = vpop.f32.mrf.mxu0
      %533 = vmatprep.mubr.bf16.mxu0 0
      %534 = vmatmul.mubr.bf16.gmra.mxu0 %v394
      %v535 = vpop.f32.mrf.mxu0
      %v536 = vadd.f32 %v268, %v535
      %v537 = vpop.f32.mrf.mxu0
      %v538 = vpop.f32.mrf.mxu0
      %v539 = vadd.f32 %v268, %v538
      %v540 = vpop.f32.mrf.mxu0
      %541 = vmatprep.mubr.bf16.mxu0 0
      %542 = vmatmul.mubr.bf16.gmra.mxu0 %v397
      %v543 = vpop.f32.mrf.mxu0
      %v544 = vadd.f32 %v268, %v543
      %v545 = vpop.f32.mrf.mxu0
      %v546 = vpop.f32.mrf.mxu0
      %v547 = vadd.f32 %v268, %v546
      %v548 = vpop.f32.mrf.mxu0
      %549 = vmatprep.mubr.bf16.mxu0 0
      %550 = vmatmul.mubr.bf16.gmra.mxu0 %v400
      %v551 = vpop.f32.mrf.mxu0
      %v552 = vadd.f32 %v268, %v551
      %v553 = vpop.f32.mrf.mxu0
      %v554 = vpop.f32.mrf.mxu0
      %v555 = vadd.f32 %v268, %v554
      %v556 = vpop.f32.mrf.mxu0
      %557 = vmatprep.mubr.bf16.mxu0 0
      %558 = vmatmul.mubr.bf16.gmra.mxu0 %v403
      %v559 = vpop.f32.mrf.mxu0
      %v560 = vadd.f32 %v268, %v559
      %v561 = vpop.f32.mrf.mxu0
      %v562 = vpop.f32.mrf.mxu0
      %v563 = vadd.f32 %v268, %v562
      %v564 = vpop.f32.mrf.mxu0
      %565 = vdwg.mxu0
      %v566 = vxor.u32 %v440, 2147483648
      %v567 = vxor.u32 %v443, 2147483648
      %v568 = vxor.u32 %v448, 2147483648
      %v569 = vxor.u32 %v451, 2147483648
      %v570 = vxor.u32 %v456, 2147483648
      %v571 = vxor.u32 %v459, 2147483648
      %v572 = vxor.u32 %v464, 2147483648
      %v573 = vxor.u32 %v467, 2147483648
      %v574 = vxor.u32 %v472, 2147483648
      %v575 = vxor.u32 %v475, 2147483648
      %v576 = vxor.u32 %v480, 2147483648
      %v577 = vxor.u32 %v483, 2147483648
      %v578 = vxor.u32 %v488, 2147483648
      %v579 = vxor.u32 %v491, 2147483648
      %v580 = vxor.u32 %v496, 2147483648
      %v581 = vxor.u32 %v499, 2147483648
      %v582 = vxor.u32 %v504, 2147483648
      %v583 = vxor.u32 %v507, 2147483648
      %v584 = vxor.u32 %v512, 2147483648
      %v585 = vxor.u32 %v515, 2147483648
      %v586 = vxor.u32 %v520, 2147483648
      %v587 = vxor.u32 %v523, 2147483648
      %v588 = vxor.u32 %v528, 2147483648
      %v589 = vxor.u32 %v531, 2147483648
      %v590 = vxor.u32 %v536, 2147483648
      %v591 = vxor.u32 %v539, 2147483648
      %v592 = vxor.u32 %v544, 2147483648
      %v593 = vxor.u32 %v547, 2147483648
      %v594 = vxor.u32 %v552, 2147483648
      %v595 = vxor.u32 %v555, 2147483648
      %v596 = vxor.u32 %v560, 2147483648
      %v597 = vxor.u32 %v563, 2147483648
      %v598 = vmul.f32 %v566, 1.442695
      %v599 = vpow.pop %v598
      %v600 = vmul.f32 %v567, 1.442695
      %v601 = vpow.pop %v600
      %v602 = vmul.f32 %v568, 1.442695
      %v603 = vpow.pop %v602
      %v604 = vmul.f32 %v569, 1.442695
      %v605 = vpow.pop %v604
      %v606 = vmul.f32 %v570, 1.442695
      %v607 = vpow.pop %v606
      %v608 = vmul.f32 %v571, 1.442695
      %v609 = vpow.pop %v608
      %v610 = vmul.f32 %v572, 1.442695
      %v611 = vpow.pop %v610
      %v612 = vmul.f32 %v573, 1.442695
      %v613 = vpow.pop %v612
      %v614 = vmul.f32 %v574, 1.442695
      %v615 = vpow.pop %v614
      %v616 = vmul.f32 %v575, 1.442695
      %v617 = vpow.pop %v616
      %v618 = vmul.f32 %v576, 1.442695
      %v619 = vpow.pop %v618
      %v620 = vmul.f32 %v577, 1.442695
      %v621 = vpow.pop %v620
      %v622 = vmul.f32 %v578, 1.442695
      %v623 = vpow.pop %v622
      %v624 = vmul.f32 %v579, 1.442695
      %v625 = vpow.pop %v624
      %v626 = vmul.f32 %v580, 1.442695
      %v627 = vpow.pop %v626
      %v628 = vmul.f32 %v581, 1.442695
      %v629 = vpow.pop %v628
      %v630 = vmul.f32 %v582, 1.442695
      %v631 = vpow.pop %v630
      %v632 = vmul.f32 %v583, 1.442695
      %v633 = vpow.pop %v632
      %v634 = vmul.f32 %v584, 1.442695
      %v635 = vpow.pop %v634
      %v636 = vmul.f32 %v585, 1.442695
      %v637 = vpow.pop %v636
      %v638 = vmul.f32 %v586, 1.442695
      %v639 = vpow.pop %v638
      %v640 = vmul.f32 %v587, 1.442695
      %v641 = vpow.pop %v640
      %v642 = vmul.f32 %v588, 1.442695
      %v643 = vpow.pop %v642
      %v644 = vmul.f32 %v589, 1.442695
      %v645 = vpow.pop %v644
      %v646 = vmul.f32 %v590, 1.442695
      %v647 = vpow.pop %v646
      %v648 = vmul.f32 %v591, 1.442695
      %v649 = vpow.pop %v648
      %v650 = vmul.f32 %v592, 1.442695
      %v651 = vpow.pop %v650
      %v652 = vmul.f32 %v593, 1.442695
      %v653 = vpow.pop %v652
      %v654 = vmul.f32 %v594, 1.442695
      %v655 = vpow.pop %v654
      %v656 = vmul.f32 %v595, 1.442695
      %v657 = vpow.pop %v656
      %v658 = vmul.f32 %v596, 1.442695
      %v659 = vpow.pop %v658
      %v660 = vmul.f32 %v597, 1.442695
      %v661 = vpow.pop %v660
      %v662 = vadd.f32 %v599, 1.0
      %v663 = vadd.f32 %v601, 1.0
      %v664 = vadd.f32 %v603, 1.0
      %v665 = vadd.f32 %v605, 1.0
      %v666 = vadd.f32 %v607, 1.0
      %v667 = vadd.f32 %v609, 1.0
      %v668 = vadd.f32 %v611, 1.0
      %v669 = vadd.f32 %v613, 1.0
      %v670 = vadd.f32 %v615, 1.0
      %v671 = vadd.f32 %v617, 1.0
      %v672 = vadd.f32 %v619, 1.0
      %v673 = vadd.f32 %v621, 1.0
      %v674 = vadd.f32 %v623, 1.0
      %v675 = vadd.f32 %v625, 1.0
      %v676 = vadd.f32 %v627, 1.0
      %v677 = vadd.f32 %v629, 1.0
      %v678 = vadd.f32 %v631, 1.0
      %v679 = vadd.f32 %v633, 1.0
      %v680 = vadd.f32 %v635, 1.0
      %v681 = vadd.f32 %v637, 1.0
      %v682 = vadd.f32 %v639, 1.0
      %v683 = vadd.f32 %v641, 1.0
      %v684 = vadd.f32 %v643, 1.0
      %v685 = vadd.f32 %v645, 1.0
      %v686 = vadd.f32 %v647, 1.0
      %v687 = vadd.f32 %v649, 1.0
      %v688 = vadd.f32 %v651, 1.0
      %v689 = vadd.f32 %v653, 1.0
      %v690 = vadd.f32 %v655, 1.0
      %v691 = vadd.f32 %v657, 1.0
      %v692 = vadd.f32 %v659, 1.0
      %v693 = vadd.f32 %v661, 1.0
      %v694 = vrcp.pop %v662
      %v695 = vmul.f32 1.0, %v694
      %v696 = vrcp.pop %v663
      %v697 = vmul.f32 1.0, %v696
      %v698 = vrcp.pop %v664
      %v699 = vmul.f32 1.0, %v698
      %v700 = vrcp.pop %v665
      %v701 = vmul.f32 1.0, %v700
      %v702 = vrcp.pop %v666
      %v703 = vmul.f32 1.0, %v702
      %v704 = vrcp.pop %v667
      %v705 = vmul.f32 1.0, %v704
      %v706 = vrcp.pop %v668
      %v707 = vmul.f32 1.0, %v706
      %v708 = vrcp.pop %v669
      %v709 = vmul.f32 1.0, %v708
      %v710 = vrcp.pop %v670
      %v711 = vmul.f32 1.0, %v710
      %v712 = vrcp.pop %v671
      %v713 = vmul.f32 1.0, %v712
      %v714 = vrcp.pop %v672
      %v715 = vmul.f32 1.0, %v714
      %v716 = vrcp.pop %v673
      %v717 = vmul.f32 1.0, %v716
      %v718 = vrcp.pop %v674
      %v719 = vmul.f32 1.0, %v718
      %v720 = vrcp.pop %v675
      %v721 = vmul.f32 1.0, %v720
      %v722 = vrcp.pop %v676
      %v723 = vmul.f32 1.0, %v722
      %v724 = vrcp.pop %v677
      %v725 = vmul.f32 1.0, %v724
      %v726 = vrcp.pop %v678
      %v727 = vmul.f32 1.0, %v726
      %v728 = vrcp.pop %v679
      %v729 = vmul.f32 1.0, %v728
      %v730 = vrcp.pop %v680
      %v731 = vmul.f32 1.0, %v730
      %v732 = vrcp.pop %v681
      %v733 = vmul.f32 1.0, %v732
      %v734 = vrcp.pop %v682
      %v735 = vmul.f32 1.0, %v734
      %v736 = vrcp.pop %v683
      %v737 = vmul.f32 1.0, %v736
      %v738 = vrcp.pop %v684
      %v739 = vmul.f32 1.0, %v738
      %v740 = vrcp.pop %v685
      %v741 = vmul.f32 1.0, %v740
      %v742 = vrcp.pop %v686
      %v743 = vmul.f32 1.0, %v742
      %v744 = vrcp.pop %v687
      %v745 = vmul.f32 1.0, %v744
      %v746 = vrcp.pop %v688
      %v747 = vmul.f32 1.0, %v746
      %v748 = vrcp.pop %v689
      %v749 = vmul.f32 1.0, %v748
      %v750 = vrcp.pop %v690
      %v751 = vmul.f32 1.0, %v750
      %v752 = vrcp.pop %v691
      %v753 = vmul.f32 1.0, %v752
      %v754 = vrcp.pop %v692
      %v755 = vmul.f32 1.0, %v754
      %v756 = vrcp.pop %v693
      %v757 = vmul.f32 1.0, %v756
      %v758 = vmul.f32 %v440, %v695
      %v759 = vmul.f32 %v443, %v697
      %v760 = vmul.f32 %v448, %v699
      %v761 = vmul.f32 %v451, %v701
      %v762 = vmul.f32 %v456, %v703
      %v763 = vmul.f32 %v459, %v705
      %v764 = vmul.f32 %v464, %v707
      %v765 = vmul.f32 %v467, %v709
      %v766 = vmul.f32 %v472, %v711
      %v767 = vmul.f32 %v475, %v713
      %v768 = vmul.f32 %v480, %v715
      %v769 = vmul.f32 %v483, %v717
      %v770 = vmul.f32 %v488, %v719
      %v771 = vmul.f32 %v491, %v721
      %v772 = vmul.f32 %v496, %v723
      %v773 = vmul.f32 %v499, %v725
      %v774 = vmul.f32 %v504, %v727
      %v775 = vmul.f32 %v507, %v729
      %v776 = vmul.f32 %v512, %v731
      %v777 = vmul.f32 %v515, %v733
      %v778 = vmul.f32 %v520, %v735
      %v779 = vmul.f32 %v523, %v737
      %v780 = vmul.f32 %v528, %v739
      %v781 = vmul.f32 %v531, %v741
      %v782 = vmul.f32 %v536, %v743
      %v783 = vmul.f32 %v539, %v745
      %v784 = vmul.f32 %v544, %v747
      %v785 = vmul.f32 %v547, %v749
      %v786 = vmul.f32 %v552, %v751
      %v787 = vmul.f32 %v555, %v753
      %v788 = vmul.f32 %v560, %v755
      %v789 = vmul.f32 %v563, %v757
      %v790 = vpack.c.bf16 %v759, %v758
      %v791 = vpack.c.bf16 %v761, %v760
      %v792 = vpack.c.bf16 %v763, %v762
      %v793 = vpack.c.bf16 %v765, %v764
      %v794 = vpack.c.bf16 %v767, %v766
      %v795 = vpack.c.bf16 %v769, %v768
      %v796 = vpack.c.bf16 %v771, %v770
      %v797 = vpack.c.bf16 %v773, %v772
      %v798 = vpack.c.bf16 %v775, %v774
      %v799 = vpack.c.bf16 %v777, %v776
      %v800 = vpack.c.bf16 %v779, %v778
      %v801 = vpack.c.bf16 %v781, %v780
      %v802 = vpack.c.bf16 %v783, %v782
      %v803 = vpack.c.bf16 %v785, %v784
      %v804 = vpack.c.bf16 %v787, %v786
      %v805 = vpack.c.bf16 %v789, %v788
      %v807 = vshrl.u32 %v790, 16
      %v809 = vrot.slane %v807, 7
      %v810 = vshll.u32 %v790, 16
      %v812 = vor.u32 %v809, %v810
      %v814 = vshrl.u32 %v791, 16
      %v816 = vrot.slane %v814, 7
      %v817 = vshll.u32 %v791, 16
      %v819 = vor.u32 %v816, %v817
      %v821 = vshrl.u32 %v792, 16
      %v823 = vrot.slane %v821, 7
      %v824 = vshll.u32 %v792, 16
      %v826 = vor.u32 %v823, %v824
      %v828 = vshrl.u32 %v793, 16
      %v830 = vrot.slane %v828, 7
      %v831 = vshll.u32 %v793, 16
      %v833 = vor.u32 %v830, %v831
      %v835 = vshrl.u32 %v794, 16
      %v837 = vrot.slane %v835, 7
      %v838 = vshll.u32 %v794, 16
      %v840 = vor.u32 %v837, %v838
      %v842 = vshrl.u32 %v795, 16
      %v844 = vrot.slane %v842, 7
      %v845 = vshll.u32 %v795, 16
      %v847 = vor.u32 %v844, %v845
      %v849 = vshrl.u32 %v796, 16
      %v851 = vrot.slane %v849, 7
      %v852 = vshll.u32 %v796, 16
      %v854 = vor.u32 %v851, %v852
      %v856 = vshrl.u32 %v797, 16
      %v858 = vrot.slane %v856, 7
      %v859 = vshll.u32 %v797, 16
      %v861 = vor.u32 %v858, %v859
      %v863 = vshrl.u32 %v798, 16
      %v865 = vrot.slane %v863, 7
      %v866 = vshll.u32 %v798, 16
      %v868 = vor.u32 %v865, %v866
      %v870 = vshrl.u32 %v799, 16
      %v872 = vrot.slane %v870, 7
      %v873 = vshll.u32 %v799, 16
      %v875 = vor.u32 %v872, %v873
      %v877 = vshrl.u32 %v800, 16
      %v879 = vrot.slane %v877, 7
      %v880 = vshll.u32 %v800, 16
      %v882 = vor.u32 %v879, %v880
      %v884 = vshrl.u32 %v801, 16
      %v886 = vrot.slane %v884, 7
      %v887 = vshll.u32 %v801, 16
      %v889 = vor.u32 %v886, %v887
      %v891 = vshrl.u32 %v802, 16
      %v893 = vrot.slane %v891, 7
      %v894 = vshll.u32 %v802, 16
      %v896 = vor.u32 %v893, %v894
      %v898 = vshrl.u32 %v803, 16
      %v900 = vrot.slane %v898, 7
      %v901 = vshll.u32 %v803, 16
      %v903 = vor.u32 %v900, %v901
      %v905 = vshrl.u32 %v804, 16
      %v907 = vrot.slane %v905, 7
      %v908 = vshll.u32 %v804, 16
      %v910 = vor.u32 %v907, %v908
      %v912 = vshrl.u32 %v805, 16
      %v914 = vrot.slane %v912, 7
      %v915 = vshll.u32 %v805, 16
      %v917 = vor.u32 %v914, %v915
      %vm950 = vcmask 1040384
      %vm951 = vsmask.f32 256
      %vm952 = vmand %vm950, %vm951
      %v953 = vsel %vm952, 0, %v812
      %v954 = vsel %vm952, 0, %v819
      %v955 = vsel %vm952, 0, %v826
      %v956 = vsel %vm952, 0, %v833
      %v957 = vsel %vm952, 0, %v840
      %v958 = vsel %vm952, 0, %v847
      %v959 = vsel %vm952, 0, %v854
      %v960 = vsel %vm952, 0, %v861
      %v961 = vsel %vm952, 0, %v868
      %v962 = vsel %vm952, 0, %v875
      %v963 = vsel %vm952, 0, %v882
      %v964 = vsel %vm952, 0, %v889
      %v965 = vsel %vm952, 0, %v896
      %v966 = vsel %vm952, 0, %v903
      %v967 = vsel %vm952, 0, %v910
      %v968 = vsel %vm952, 0, %v917
      %v969 = vsel %vm952, %v809, 0
      %v970 = vsel %vm952, %v816, 0
      %v971 = vsel %vm952, %v823, 0
      %v972 = vsel %vm952, %v830, 0
      %v973 = vsel %vm952, %v837, 0
      %v974 = vsel %vm952, %v844, 0
      %v975 = vsel %vm952, %v851, 0
      %v976 = vsel %vm952, %v858, 0
      %v977 = vsel %vm952, %v865, 0
      %v978 = vsel %vm952, %v872, 0
      %v979 = vsel %vm952, %v879, 0
      %v980 = vsel %vm952, %v886, 0
      %v981 = vsel %vm952, %v893, 0
      %v982 = vsel %vm952, %v900, 0
      %v983 = vsel %vm952, %v907, 0
      %v984 = vsel %vm952, %v914, 0
      %v1017 = vunpack.c.l.b16 %v953
      %v1018 = vunpack.c.h.b16 %v953
      %v1019 = vunpack.c.l.b16 %v969
      %v1020 = vunpack.c.l.b16 %v954
      %v1021 = vunpack.c.h.b16 %v954
      %v1022 = vunpack.c.l.b16 %v970
      %v1023 = vunpack.c.l.b16 %v955
      %v1024 = vunpack.c.h.b16 %v955
      %v1025 = vunpack.c.l.b16 %v971
      %v1026 = vunpack.c.l.b16 %v956
      %v1027 = vunpack.c.h.b16 %v956
      %v1028 = vunpack.c.l.b16 %v972
      %v1029 = vunpack.c.l.b16 %v957
      %v1030 = vunpack.c.h.b16 %v957
      %v1031 = vunpack.c.l.b16 %v973
      %v1032 = vunpack.c.l.b16 %v958
      %v1033 = vunpack.c.h.b16 %v958
      %v1034 = vunpack.c.l.b16 %v974
      %v1035 = vunpack.c.l.b16 %v959
      %v1036 = vunpack.c.h.b16 %v959
      %v1037 = vunpack.c.l.b16 %v975
      %v1038 = vunpack.c.l.b16 %v960
      %v1039 = vunpack.c.h.b16 %v960
      %v1040 = vunpack.c.l.b16 %v976
      %v1041 = vunpack.c.l.b16 %v961
      %v1042 = vunpack.c.h.b16 %v961
      %v1043 = vunpack.c.l.b16 %v977
      %v1044 = vunpack.c.l.b16 %v962
      %v1045 = vunpack.c.h.b16 %v962
      %v1046 = vunpack.c.l.b16 %v978
      %v1047 = vunpack.c.l.b16 %v963
      %v1048 = vunpack.c.h.b16 %v963
      %v1049 = vunpack.c.l.b16 %v979
      %v1050 = vunpack.c.l.b16 %v964
      %v1051 = vunpack.c.h.b16 %v964
      %v1052 = vunpack.c.l.b16 %v980
      %v1053 = vunpack.c.l.b16 %v965
      %v1054 = vunpack.c.h.b16 %v965
      %v1055 = vunpack.c.l.b16 %v981
      %v1056 = vunpack.c.l.b16 %v966
      %v1057 = vunpack.c.h.b16 %v966
      %v1058 = vunpack.c.l.b16 %v982
      %v1059 = vunpack.c.l.b16 %v967
      %v1060 = vunpack.c.h.b16 %v967
      %v1061 = vunpack.c.l.b16 %v983
      %v1062 = vunpack.c.l.b16 %v968
      %v1063 = vunpack.c.h.b16 %v968
      %v1064 = vunpack.c.l.b16 %v984
      %v1065 = vpack.c.b16 %v1017, %v1017
      %v1066 = vpack.c.b16 %v1018, %v1018
      %v1067 = vpack.c.b16 %v1019, %v1019
      %v1068 = vpack.c.b16 %v1020, %v1020
      %v1069 = vpack.c.b16 %v1021, %v1021
      %v1070 = vpack.c.b16 %v1022, %v1022
      %v1071 = vpack.c.b16 %v1023, %v1023
      %v1072 = vpack.c.b16 %v1024, %v1024
      %v1073 = vpack.c.b16 %v1025, %v1025
      %v1074 = vpack.c.b16 %v1026, %v1026
      %v1075 = vpack.c.b16 %v1027, %v1027
      %v1076 = vpack.c.b16 %v1028, %v1028
      %v1077 = vpack.c.b16 %v1029, %v1029
      %v1078 = vpack.c.b16 %v1030, %v1030
      %v1079 = vpack.c.b16 %v1031, %v1031
      %v1080 = vpack.c.b16 %v1032, %v1032
      %v1081 = vpack.c.b16 %v1033, %v1033
      %v1082 = vpack.c.b16 %v1034, %v1034
      %v1083 = vpack.c.b16 %v1035, %v1035
      %v1084 = vpack.c.b16 %v1036, %v1036
      %v1085 = vpack.c.b16 %v1037, %v1037
      %v1086 = vpack.c.b16 %v1038, %v1038
      %v1087 = vpack.c.b16 %v1039, %v1039
      %v1088 = vpack.c.b16 %v1040, %v1040
      %v1089 = vpack.c.b16 %v1041, %v1041
      %v1090 = vpack.c.b16 %v1042, %v1042
      %v1091 = vpack.c.b16 %v1043, %v1043
      %v1092 = vpack.c.b16 %v1044, %v1044
      %v1093 = vpack.c.b16 %v1045, %v1045
      %v1094 = vpack.c.b16 %v1046, %v1046
      %v1095 = vpack.c.b16 %v1047, %v1047
      %v1096 = vpack.c.b16 %v1048, %v1048
      %v1097 = vpack.c.b16 %v1049, %v1049
      %v1098 = vpack.c.b16 %v1050, %v1050
      %v1099 = vpack.c.b16 %v1051, %v1051
      %v1100 = vpack.c.b16 %v1052, %v1052
      %v1101 = vpack.c.b16 %v1053, %v1053
      %v1102 = vpack.c.b16 %v1054, %v1054
      %v1103 = vpack.c.b16 %v1055, %v1055
      %v1104 = vpack.c.b16 %v1056, %v1056
      %v1105 = vpack.c.b16 %v1057, %v1057
      %v1106 = vpack.c.b16 %v1058, %v1058
      %v1107 = vpack.c.b16 %v1059, %v1059
      %v1108 = vpack.c.b16 %v1060, %v1060
      %v1109 = vpack.c.b16 %v1061, %v1061
      %v1110 = vpack.c.b16 %v1062, %v1062
      %v1111 = vpack.c.b16 %v1063, %v1063
      %v1112 = vpack.c.b16 %v1064, %v1064
      %s1161 = scalar_lea.vmem [#allocation2], 12
      %vm1162 = vcmask 60416
      %1163 = vst.msk [vmem:[%s1161] sm:$0xf] %vm1162, %v1065
      %1164 = vst.msk [vmem:[%s1161 + $0x4] sm:$0xf] %vm1162, %v1066
      %vm1165 = vcmask 57344
      %1166 = vst.msk [vmem:[%s1161 + $0x8] sm:$0x1] %vm1165, %v1067
      %1167 = vst.msk [vmem:[%s1161 + $0xc] sm:$0xf] %vm1162, %v1068
      %1168 = vst.msk [vmem:[%s1161 + $0x10] sm:$0xf] %vm1162, %v1069
      %1169 = vst.msk [vmem:[%s1161 + $0x14] sm:$0x1] %vm1165, %v1070
      %1170 = vst.msk [vmem:[%s1161 + $0x18] sm:$0xf] %vm1162, %v1071
      %1171 = vst.msk [vmem:[%s1161 + $0x1c] sm:$0xf] %vm1162, %v1072
      %1172 = vst.msk [vmem:[%s1161 + $0x20] sm:$0x1] %vm1165, %v1073
      %1173 = vst.msk [vmem:[%s1161 + $0x24] sm:$0xf] %vm1162, %v1074
      %1174 = vst.msk [vmem:[%s1161 + $0x28] sm:$0xf] %vm1162, %v1075
      %1175 = vst.msk [vmem:[%s1161 + $0x2c] sm:$0x1] %vm1165, %v1076
      %1176 = vst.msk [vmem:[%s1161 + $0x30] sm:$0xf] %vm1162, %v1077
      %1177 = vst.msk [vmem:[%s1161 + $0x34] sm:$0xf] %vm1162, %v1078
      %1178 = vst.msk [vmem:[%s1161 + $0x38] sm:$0x1] %vm1165, %v1079
      %1179 = vst.msk [vmem:[%s1161 + $0x3c] sm:$0xf] %vm1162, %v1080
      %1180 = vst.msk [vmem:[%s1161 + $0x40] sm:$0xf] %vm1162, %v1081
      %1181 = vst.msk [vmem:[%s1161 + $0x44] sm:$0x1] %vm1165, %v1082
      %1182 = vst.msk [vmem:[%s1161 + $0x48] sm:$0xf] %vm1162, %v1083
      %1183 = vst.msk [vmem:[%s1161 + $0x4c] sm:$0xf] %vm1162, %v1084
      %1184 = vst.msk [vmem:[%s1161 + $0x50] sm:$0x1] %vm1165, %v1085
      %1185 = vst.msk [vmem:[%s1161 + $0x54] sm:$0xf] %vm1162, %v1086
      %1186 = vst.msk [vmem:[%s1161 + $0x58] sm:$0xf] %vm1162, %v1087
      %1187 = vst.msk [vmem:[%s1161 + $0x5c] sm:$0x1] %vm1165, %v1088
      %1188 = vst.msk [vmem:[%s1161 + $0x60] sm:$0xf] %vm1162, %v1089
      %1189 = vst.msk [vmem:[%s1161 + $0x64] sm:$0xf] %vm1162, %v1090
      %1190 = vst.msk [vmem:[%s1161 + $0x68] sm:$0x1] %vm1165, %v1091
      %1191 = vst.msk [vmem:[%s1161 + $0x6c] sm:$0xf] %vm1162, %v1092
      %1192 = vst.msk [vmem:[%s1161 + $0x70] sm:$0xf] %vm1162, %v1093
      %1193 = vst.msk [vmem:[%s1161 + $0x74] sm:$0x1] %vm1165, %v1094
      %1194 = vst.msk [vmem:[%s1161 + $0x78] sm:$0xf] %vm1162, %v1095
      %1195 = vst.msk [vmem:[%s1161 + $0x7c] sm:$0xf] %vm1162, %v1096
      %1196 = vst.msk [vmem:[%s1161 + $0x80] sm:$0x1] %vm1165, %v1097
      %1197 = vst.msk [vmem:[%s1161 + $0x84] sm:$0xf] %vm1162, %v1098
      %1198 = vst.msk [vmem:[%s1161 + $0x88] sm:$0xf] %vm1162, %v1099
      %1199 = vst.msk [vmem:[%s1161 + $0x8c] sm:$0x1] %vm1165, %v1100
      %1200 = vst.msk [vmem:[%s1161 + $0x90] sm:$0xf] %vm1162, %v1101
      %1201 = vst.msk [vmem:[%s1161 + $0x94] sm:$0xf] %vm1162, %v1102
      %1202 = vst.msk [vmem:[%s1161 + $0x98] sm:$0x1] %vm1165, %v1103
      %1203 = vst.msk [vmem:[%s1161 + $0x9c] sm:$0xf] %vm1162, %v1104
      %1204 = vst.msk [vmem:[%s1161 + $0xa0] sm:$0xf] %vm1162, %v1105
      %1205 = vst.msk [vmem:[%s1161 + $0xa4] sm:$0x1] %vm1165, %v1106
      %1206 = vst.msk [vmem:[%s1161 + $0xa8] sm:$0xf] %vm1162, %v1107
      %1207 = vst.msk [vmem:[%s1161 + $0xac] sm:$0xf] %vm1162, %v1108
      %1208 = vst.msk [vmem:[%s1161 + $0xb0] sm:$0x1] %vm1165, %v1109
      %1209 = vst.msk [vmem:[%s1161 + $0xb4] sm:$0xf] %vm1162, %v1110
      %1210 = vst.msk [vmem:[%s1161 + $0xb8] sm:$0xf] %vm1162, %v1111
      %1211 = vst.msk [vmem:[%s1161 + $0xbc] sm:$0x1] %vm1165, %v1112
      %1212 = vst.msk [vmem:[#allocation2] sm:$0xf] %vm1162, 0
      %1213 = vst.msk [vmem:[#allocation2 + $0x4] sm:$0xf] %vm1162, 0
      %1214 = vst.msk [vmem:[#allocation2 + $0x8] sm:$0x1] %vm1165, 0
      %s1215 = scalar_lea.vmem [#allocation2], 204
      %1216 = vst.msk [vmem:[%s1215] sm:$0xf] %vm1162, 0
      %1217 = vst.msk [vmem:[%s1215 + $0x4] sm:$0xf] %vm1162, 0
      %1218 = vst.msk [vmem:[%s1215 + $0x8] sm:$0x1] %vm1165, 0
      %v1219 = vld [vmem:[#allocation2] sm:$0xf]
      %v1220 = vld [vmem:[#allocation2 + $0x4] sm:$0xf]
      %v1221 = vld [vmem:[#allocation2 + $0xc] sm:$0xf]
      %v1222 = vld [vmem:[#allocation2 + $0x10] sm:$0xf]
      %v1223 = vld [vmem:[#allocation2 + $0x18] sm:$0xf]
      %v1224 = vld [vmem:[#allocation2 + $0x1c] sm:$0xf]
      %v1225 = vld [vmem:[#allocation2 + $0x24] sm:$0xf]
      %v1226 = vld [vmem:[#allocation2 + $0x28] sm:$0xf]
      %v1227 = vld [vmem:[#allocation2 + $0x30] sm:$0xf]
      %v1228 = vld [vmem:[#allocation2 + $0x34] sm:$0xf]
      %v1229 = vld [vmem:[#allocation2 + $0x3c] sm:$0xf]
      %v1230 = vld [vmem:[#allocation2 + $0x40] sm:$0xf]
      %v1231 = vld [vmem:[#allocation2 + $0x48] sm:$0xf]
      %v1232 = vld [vmem:[#allocation2 + $0x4c] sm:$0xf]
      %v1233 = vld [vmem:[#allocation2 + $0x54] sm:$0xf]
      %v1234 = vld [vmem:[#allocation2 + $0x58] sm:$0xf]
      %v1235 = vld [vmem:[#allocation2 + $0x60] sm:$0xf]
      %v1236 = vld [vmem:[#allocation2 + $0x64] sm:$0xf]
      %v1237 = vld [vmem:[#allocation2 + $0x6c] sm:$0xf]
      %v1238 = vld [vmem:[#allocation2 + $0x70] sm:$0xf]
      %v1239 = vld [vmem:[#allocation2 + $0x78] sm:$0xf]
      %v1240 = vld [vmem:[#allocation2 + $0x7c] sm:$0xf]
      %v1241 = vld [vmem:[#allocation2 + $0x84] sm:$0xf]
      %v1242 = vld [vmem:[#allocation2 + $0x88] sm:$0xf]
      %v1243 = vld [vmem:[#allocation2 + $0x90] sm:$0xf]
      %v1244 = vld [vmem:[#allocation2 + $0x94] sm:$0xf]
      %v1245 = vld [vmem:[#allocation2 + $0x9c] sm:$0xf]
      %v1246 = vld [vmem:[#allocation2 + $0xa0] sm:$0xf]
      %v1247 = vld [vmem:[#allocation2 + $0xa8] sm:$0xf]
      %v1248 = vld [vmem:[#allocation2 + $0xac] sm:$0xf]
      %v1249 = vld [vmem:[#allocation2 + $0xb4] sm:$0xf]
      %v1250 = vld [vmem:[#allocation2 + $0xb8] sm:$0xf]
      %1251 = vst.msk [vmem:[#allocation3] sm:$0xf] %vm1162, %v1219
      %1252 = vst.msk [vmem:[#allocation3 + $0x4] sm:$0xf] %vm1162, %v1220
      %1253 = vst.msk [vmem:[#allocation3 + $0x8] sm:$0xf] %vm1162, %v1221
      %1254 = vst.msk [vmem:[#allocation3 + $0xc] sm:$0xf] %vm1162, %v1222
      %1255 = vst.msk [vmem:[#allocation3 + $0x10] sm:$0xf] %vm1162, %v1223
      %1256 = vst.msk [vmem:[#allocation3 + $0x14] sm:$0xf] %vm1162, %v1224
      %1257 = vst.msk [vmem:[#allocation3 + $0x18] sm:$0xf] %vm1162, %v1225
      %1258 = vst.msk [vmem:[#allocation3 + $0x1c] sm:$0xf] %vm1162, %v1226
      %1259 = vst.msk [vmem:[#allocation3 + $0x20] sm:$0xf] %vm1162, %v1227
      %1260 = vst.msk [vmem:[#allocation3 + $0x24] sm:$0xf] %vm1162, %v1228
      %1261 = vst.msk [vmem:[#allocation3 + $0x28] sm:$0xf] %vm1162, %v1229
      %1262 = vst.msk [vmem:[#allocation3 + $0x2c] sm:$0xf] %vm1162, %v1230
      %1263 = vst.msk [vmem:[#allocation3 + $0x30] sm:$0xf] %vm1162, %v1231
      %1264 = vst.msk [vmem:[#allocation3 + $0x34] sm:$0xf] %vm1162, %v1232
      %1265 = vst.msk [vmem:[#allocation3 + $0x38] sm:$0xf] %vm1162, %v1233
      %1266 = vst.msk [vmem:[#allocation3 + $0x3c] sm:$0xf] %vm1162, %v1234
      %1267 = vst.msk [vmem:[#allocation3 + $0x40] sm:$0xf] %vm1162, %v1235
      %1268 = vst.msk [vmem:[#allocation3 + $0x44] sm:$0xf] %vm1162, %v1236
      %1269 = vst.msk [vmem:[#allocation3 + $0x48] sm:$0xf] %vm1162, %v1237
      %1270 = vst.msk [vmem:[#allocation3 + $0x4c] sm:$0xf] %vm1162, %v1238
      %1271 = vst.msk [vmem:[#allocation3 + $0x50] sm:$0xf] %vm1162, %v1239
      %1272 = vst.msk [vmem:[#allocation3 + $0x54] sm:$0xf] %vm1162, %v1240
      %1273 = vst.msk [vmem:[#allocation3 + $0x58] sm:$0xf] %vm1162, %v1241
      %1274 = vst.msk [vmem:[#allocation3 + $0x5c] sm:$0xf] %vm1162, %v1242
      %1275 = vst.msk [vmem:[#allocation3 + $0x60] sm:$0xf] %vm1162, %v1243
      %1276 = vst.msk [vmem:[#allocation3 + $0x64] sm:$0xf] %vm1162, %v1244
      %1277 = vst.msk [vmem:[#allocation3 + $0x68] sm:$0xf] %vm1162, %v1245
      %1278 = vst.msk [vmem:[#allocation3 + $0x6c] sm:$0xf] %vm1162, %v1246
      %1279 = vst.msk [vmem:[#allocation3 + $0x70] sm:$0xf] %vm1162, %v1247
      %1280 = vst.msk [vmem:[#allocation3 + $0x74] sm:$0xf] %vm1162, %v1248
      %1281 = vst.msk [vmem:[#allocation3 + $0x78] sm:$0xf] %vm1162, %v1249
      %1282 = vst.msk [vmem:[#allocation3 + $0x7c] sm:$0xf] %vm1162, %v1250
      %v1283 = vld [vmem:[#allocation2] sm:$0xf]
      %v1284 = vld [vmem:[#allocation2 + $0x4] sm:$0xf]
      %v1285 = vld [vmem:[#allocation2 + $0x8] sm:$0x1]
      %v1286 = vld [vmem:[#allocation2 + $0xc] sm:$0xf]
      %v1287 = vld [vmem:[#allocation2 + $0x10] sm:$0xf]
      %v1288 = vld [vmem:[#allocation2 + $0x14] sm:$0x1]
      %v1289 = vld [vmem:[#allocation2 + $0x18] sm:$0xf]
      %v1290 = vld [vmem:[#allocation2 + $0x1c] sm:$0xf]
      %v1291 = vld [vmem:[#allocation2 + $0x20] sm:$0x1]
      %v1292 = vld [vmem:[#allocation2 + $0x24] sm:$0xf]
      %v1293 = vld [vmem:[#allocation2 + $0x28] sm:$0xf]
      %v1294 = vld [vmem:[#allocation2 + $0x2c] sm:$0x1]
      %v1295 = vld [vmem:[#allocation2 + $0x30] sm:$0xf]
      %v1296 = vld [vmem:[#allocation2 + $0x34] sm:$0xf]
      %v1297 = vld [vmem:[#allocation2 + $0x38] sm:$0x1]
      %v1298 = vld [vmem:[#allocation2 + $0x3c] sm:$0xf]
      %v1299 = vld [vmem:[#allocation2 + $0x40] sm:$0xf]
      %v1300 = vld [vmem:[#allocation2 + $0x44] sm:$0x1]
      %v1301 = vld [vmem:[#allocation2 + $0x48] sm:$0xf]
      %v1302 = vld [vmem:[#allocation2 + $0x4c] sm:$0xf]
      %v1303 = vld [vmem:[#allocation2 + $0x50] sm:$0x1]
      %v1304 = vld [vmem:[#allocation2 + $0x54] sm:$0xf]
      %v1305 = vld [vmem:[#allocation2 + $0x58] sm:$0xf]
      %v1306 = vld [vmem:[#allocation2 + $0x5c] sm:$0x1]
      %v1307 = vld [vmem:[#allocation2 + $0x60] sm:$0xf]
      %v1308 = vld [vmem:[#allocation2 + $0x64] sm:$0xf]
      %v1309 = vld [vmem:[#allocation2 + $0x68] sm:$0x1]
      %v1310 = vld [vmem:[#allocation2 + $0x6c] sm:$0xf]
      %v1311 = vld [vmem:[#allocation2 + $0x70] sm:$0xf]
      %v1312 = vld [vmem:[#allocation2 + $0x74] sm:$0x1]
      %v1313 = vld [vmem:[#allocation2 + $0x78] sm:$0xf]
      %v1314 = vld [vmem:[#allocation2 + $0x7c] sm:$0xf]
      %v1315 = vld [vmem:[#allocation2 + $0x80] sm:$0x1]
      %v1316 = vld [vmem:[#allocation2 + $0x84] sm:$0xf]
      %v1317 = vld [vmem:[#allocation2 + $0x88] sm:$0xf]
      %v1318 = vld [vmem:[#allocation2 + $0x8c] sm:$0x1]
      %v1319 = vld [vmem:[#allocation2 + $0x90] sm:$0xf]
      %v1320 = vld [vmem:[#allocation2 + $0x94] sm:$0xf]
      %v1321 = vld [vmem:[#allocation2 + $0x98] sm:$0x1]
      %v1322 = vld [vmem:[#allocation2 + $0x9c] sm:$0xf]
      %v1323 = vld [vmem:[#allocation2 + $0xa0] sm:$0xf]
      %v1324 = vld [vmem:[#allocation2 + $0xa4] sm:$0x1]
      %v1325 = vld [vmem:[#allocation2 + $0xa8] sm:$0xf]
      %v1326 = vld [vmem:[#allocation2 + $0xac] sm:$0xf]
      %v1327 = vld [vmem:[#allocation2 + $0xb0] sm:$0x1]
      %v1328 = vld [vmem:[#allocation2 + $0xb4] sm:$0xf]
      %v1329 = vld [vmem:[#allocation2 + $0xb8] sm:$0xf]
      %v1330 = vld [vmem:[#allocation2 + $0xbc] sm:$0x1]
      %vm1331 = vsmask.f32 3328
      %vm1332 = vsmask.f32 7440
      %vm1333 = vmor %vm1331, %vm1332
      %v1335 = vshrl.u32 %v1283, 16
      %v1337 = vrot.slane %v1335, 4
      %v1338 = vshll.u32 %v1283, 16
      %v1340 = vrot.slane %v1338, 5
      %v1341 = vor.u32 %v1337, %v1340
      %v1342 = vrot.slane %v1341, 4
      %v1344 = vshll.u32 %v1284, 16
      %v1346 = vrot.slane %v1344, 5
      %v1347 = vsel %vm1333, %v1342, %v1346
      %v1348 = vshrl.u32 %v1284, 16
      %v1350 = vrot.slane %v1348, 4
      %v1351 = vor.u32 %v1350, %v1346
      %v1352 = vrot.slane %v1351, 4
      %v1354 = vshll.u32 %v1285, 16
      %v1356 = vrot.slane %v1354, 5
      %v1357 = vsel %vm1333, %v1352, %v1356
      %v1359 = vshrl.u32 %v1286, 16
      %v1361 = vrot.slane %v1359, 4
      %v1362 = vshll.u32 %v1286, 16
      %v1364 = vrot.slane %v1362, 5
      %v1365 = vor.u32 %v1361, %v1364
      %v1366 = vrot.slane %v1365, 4
      %v1368 = vshll.u32 %v1287, 16
      %v1370 = vrot.slane %v1368, 5
      %v1371 = vsel %vm1333, %v1366, %v1370
      %v1372 = vshrl.u32 %v1287, 16
      %v1374 = vrot.slane %v1372, 4
      %v1375 = vor.u32 %v1374, %v1370
      %v1376 = vrot.slane %v1375, 4
      %v1378 = vshll.u32 %v1288, 16
      %v1380 = vrot.slane %v1378, 5
      %v1381 = vsel %vm1333, %v1376, %v1380
      %v1383 = vshrl.u32 %v1289, 16
      %v1385 = vrot.slane %v1383, 4
      %v1386 = vshll.u32 %v1289, 16
      %v1388 = vrot.slane %v1386, 5
      %v1389 = vor.u32 %v1385, %v1388
      %v1390 = vrot.slane %v1389, 4
      %v1392 = vshll.u32 %v1290, 16
      %v1394 = vrot.slane %v1392, 5
      %v1395 = vsel %vm1333, %v1390, %v1394
      %v1396 = vshrl.u32 %v1290, 16
      %v1398 = vrot.slane %v1396, 4
      %v1399 = vor.u32 %v1398, %v1394
      %v1400 = vrot.slane %v1399, 4
      %v1402 = vshll.u32 %v1291, 16
      %v1404 = vrot.slane %v1402, 5
      %v1405 = vsel %vm1333, %v1400, %v1404
      %v1407 = vshrl.u32 %v1292, 16
      %v1409 = vrot.slane %v1407, 4
      %v1410 = vshll.u32 %v1292, 16
      %v1412 = vrot.slane %v1410, 5
      %v1413 = vor.u32 %v1409, %v1412
      %v1414 = vrot.slane %v1413, 4
      %v1416 = vshll.u32 %v1293, 16
      %v1418 = vrot.slane %v1416, 5
      %v1419 = vsel %vm1333, %v1414, %v1418
      %v1420 = vshrl.u32 %v1293, 16
      %v1422 = vrot.slane %v1420, 4
      %v1423 = vor.u32 %v1422, %v1418
      %v1424 = vrot.slane %v1423, 4
      %v1426 = vshll.u32 %v1294, 16
      %v1428 = vrot.slane %v1426, 5
      %v1429 = vsel %vm1333, %v1424, %v1428
      %v1431 = vshrl.u32 %v1295, 16
      %v1433 = vrot.slane %v1431, 4
      %v1434 = vshll.u32 %v1295, 16
      %v1436 = vrot.slane %v1434, 5
      %v1437 = vor.u32 %v1433, %v1436
      %v1438 = vrot.slane %v1437, 4
      %v1440 = vshll.u32 %v1296, 16
      %v1442 = vrot.slane %v1440, 5
      %v1443 = vsel %vm1333, %v1438, %v1442
      %v1444 = vshrl.u32 %v1296, 16
      %v1446 = vrot.slane %v1444, 4
      %v1447 = vor.u32 %v1446, %v1442
      %v1448 = vrot.slane %v1447, 4
      %v1450 = vshll.u32 %v1297, 16
      %v1452 = vrot.slane %v1450, 5
      %v1453 = vsel %vm1333, %v1448, %v1452
      %v1455 = vshrl.u32 %v1298, 16
      %v1457 = vrot.slane %v1455, 4
      %v1458 = vshll.u32 %v1298, 16
      %v1460 = vrot.slane %v1458, 5
      %v1461 = vor.u32 %v1457, %v1460
      %v1462 = vrot.slane %v1461, 4
      %v1464 = vshll.u32 %v1299, 16
      %v1466 = vrot.slane %v1464, 5
      %v1467 = vsel %vm1333, %v1462, %v1466
      %v1468 = vshrl.u32 %v1299, 16
      %v1470 = vrot.slane %v1468, 4
      %v1471 = vor.u32 %v1470, %v1466
      %v1472 = vrot.slane %v1471, 4
      %v1474 = vshll.u32 %v1300, 16
      %v1476 = vrot.slane %v1474, 5
      %v1477 = vsel %vm1333, %v1472, %v1476
      %v1479 = vshrl.u32 %v1301, 16
      %v1481 = vrot.slane %v1479, 4
      %v1482 = vshll.u32 %v1301, 16
      %v1484 = vrot.slane %v1482, 5
      %v1485 = vor.u32 %v1481, %v1484
      %v1486 = vrot.slane %v1485, 4
      %v1488 = vshll.u32 %v1302, 16
      %v1490 = vrot.slane %v1488, 5
      %v1491 = vsel %vm1333, %v1486, %v1490
      %v1492 = vshrl.u32 %v1302, 16
      %v1494 = vrot.slane %v1492, 4
      %v1495 = vor.u32 %v1494, %v1490
      %v1496 = vrot.slane %v1495, 4
      %v1498 = vshll.u32 %v1303, 16
      %v1500 = vrot.slane %v1498, 5
      %v1501 = vsel %vm1333, %v1496, %v1500
      %v1503 = vshrl.u32 %v1304, 16
      %v1505 = vrot.slane %v1503, 4
      %v1506 = vshll.u32 %v1304, 16
      %v1508 = vrot.slane %v1506, 5
      %v1509 = vor.u32 %v1505, %v1508
      %v1510 = vrot.slane %v1509, 4
      %v1512 = vshll.u32 %v1305, 16
      %v1514 = vrot.slane %v1512, 5
      %v1515 = vsel %vm1333, %v1510, %v1514
      %v1516 = vshrl.u32 %v1305, 16
      %v1518 = vrot.slane %v1516, 4
      %v1519 = vor.u32 %v1518, %v1514
      %v1520 = vrot.slane %v1519, 4
      %v1522 = vshll.u32 %v1306, 16
      %v1524 = vrot.slane %v1522, 5
      %v1525 = vsel %vm1333, %v1520, %v1524
      %v1527 = vshrl.u32 %v1307, 16
      %v1529 = vrot.slane %v1527, 4
      %v1530 = vshll.u32 %v1307, 16
      %v1532 = vrot.slane %v1530, 5
      %v1533 = vor.u32 %v1529, %v1532
      %v1534 = vrot.slane %v1533, 4
      %v1536 = vshll.u32 %v1308, 16
      %v1538 = vrot.slane %v1536, 5
      %v1539 = vsel %vm1333, %v1534, %v1538
      %v1540 = vshrl.u32 %v1308, 16
      %v1542 = vrot.slane %v1540, 4
      %v1543 = vor.u32 %v1542, %v1538
      %v1544 = vrot.slane %v1543, 4
      %v1546 = vshll.u32 %v1309, 16
      %v1548 = vrot.slane %v1546, 5
      %v1549 = vsel %vm1333, %v1544, %v1548
      %v1551 = vshrl.u32 %v1310, 16
      %v1553 = vrot.slane %v1551, 4
      %v1554 = vshll.u32 %v1310, 16
      %v1556 = vrot.slane %v1554, 5
      %v1557 = vor.u32 %v1553, %v1556
      %v1558 = vrot.slane %v1557, 4
      %v1560 = vshll.u32 %v1311, 16
      %v1562 = vrot.slane %v1560, 5
      %v1563 = vsel %vm1333, %v1558, %v1562
      %v1564 = vshrl.u32 %v1311, 16
      %v1566 = vrot.slane %v1564, 4
      %v1567 = vor.u32 %v1566, %v1562
      %v1568 = vrot.slane %v1567, 4
      %v1570 = vshll.u32 %v1312, 16
      %v1572 = vrot.slane %v1570, 5
      %v1573 = vsel %vm1333, %v1568, %v1572
      %v1575 = vshrl.u32 %v1313, 16
      %v1577 = vrot.slane %v1575, 4
      %v1578 = vshll.u32 %v1313, 16
      %v1580 = vrot.slane %v1578, 5
      %v1581 = vor.u32 %v1577, %v1580
      %v1582 = vrot.slane %v1581, 4
      %v1584 = vshll.u32 %v1314, 16
      %v1586 = vrot.slane %v1584, 5
      %v1587 = vsel %vm1333, %v1582, %v1586
      %v1588 = vshrl.u32 %v1314, 16
      %v1590 = vrot.slane %v1588, 4
      %v1591 = vor.u32 %v1590, %v1586
      %v1592 = vrot.slane %v1591, 4
      %v1594 = vshll.u32 %v1315, 16
      %v1596 = vrot.slane %v1594, 5
      %v1597 = vsel %vm1333, %v1592, %v1596
      %v1599 = vshrl.u32 %v1316, 16
      %v1601 = vrot.slane %v1599, 4
      %v1602 = vshll.u32 %v1316, 16
      %v1604 = vrot.slane %v1602, 5
      %v1605 = vor.u32 %v1601, %v1604
      %v1606 = vrot.slane %v1605, 4
      %v1608 = vshll.u32 %v1317, 16
      %v1610 = vrot.slane %v1608, 5
      %v1611 = vsel %vm1333, %v1606, %v1610
      %v1612 = vshrl.u32 %v1317, 16
      %v1614 = vrot.slane %v1612, 4
      %v1615 = vor.u32 %v1614, %v1610
      %v1616 = vrot.slane %v1615, 4
      %v1618 = vshll.u32 %v1318, 16
      %v1620 = vrot.slane %v1618, 5
      %v1621 = vsel %vm1333, %v1616, %v1620
      %v1623 = vshrl.u32 %v1319, 16
      %v1625 = vrot.slane %v1623, 4
      %v1626 = vshll.u32 %v1319, 16
      %v1628 = vrot.slane %v1626, 5
      %v1629 = vor.u32 %v1625, %v1628
      %v1630 = vrot.slane %v1629, 4
      %v1632 = vshll.u32 %v1320, 16
      %v1634 = vrot.slane %v1632, 5
      %v1635 = vsel %vm1333, %v1630, %v1634
      %v1636 = vshrl.u32 %v1320, 16
      %v1638 = vrot.slane %v1636, 4
      %v1639 = vor.u32 %v1638, %v1634
      %v1640 = vrot.slane %v1639, 4
      %v1642 = vshll.u32 %v1321, 16
      %v1644 = vrot.slane %v1642, 5
      %v1645 = vsel %vm1333, %v1640, %v1644
      %v1647 = vshrl.u32 %v1322, 16
      %v1649 = vrot.slane %v1647, 4
      %v1650 = vshll.u32 %v1322, 16
      %v1652 = vrot.slane %v1650, 5
      %v1653 = vor.u32 %v1649, %v1652
      %v1654 = vrot.slane %v1653, 4
      %v1656 = vshll.u32 %v1323, 16
      %v1658 = vrot.slane %v1656, 5
      %v1659 = vsel %vm1333, %v1654, %v1658
      %v1660 = vshrl.u32 %v1323, 16
      %v1662 = vrot.slane %v1660, 4
      %v1663 = vor.u32 %v1662, %v1658
      %v1664 = vrot.slane %v1663, 4
      %v1666 = vshll.u32 %v1324, 16
      %v1668 = vrot.slane %v1666, 5
      %v1669 = vsel %vm1333, %v1664, %v1668
      %v1671 = vshrl.u32 %v1325, 16
      %v1673 = vrot.slane %v1671, 4
      %v1674 = vshll.u32 %v1325, 16
      %v1676 = vrot.slane %v1674, 5
      %v1677 = vor.u32 %v1673, %v1676
      %v1678 = vrot.slane %v1677, 4
      %v1680 = vshll.u32 %v1326, 16
      %v1682 = vrot.slane %v1680, 5
      %v1683 = vsel %vm1333, %v1678, %v1682
      %v1684 = vshrl.u32 %v1326, 16
      %v1686 = vrot.slane %v1684, 4
      %v1687 = vor.u32 %v1686, %v1682
      %v1688 = vrot.slane %v1687, 4
      %v1690 = vshll.u32 %v1327, 16
      %v1692 = vrot.slane %v1690, 5
      %v1693 = vsel %vm1333, %v1688, %v1692
      %v1695 = vshrl.u32 %v1328, 16
      %v1697 = vrot.slane %v1695, 4
      %v1698 = vshll.u32 %v1328, 16
      %v1700 = vrot.slane %v1698, 5
      %v1701 = vor.u32 %v1697, %v1700
      %v1702 = vrot.slane %v1701, 4
      %v1704 = vshll.u32 %v1329, 16
      %v1706 = vrot.slane %v1704, 5
      %v1707 = vsel %vm1333, %v1702, %v1706
      %v1708 = vshrl.u32 %v1329, 16
      %v1710 = vrot.slane %v1708, 4
      %v1711 = vor.u32 %v1710, %v1706
      %v1712 = vrot.slane %v1711, 4
      %v1714 = vshll.u32 %v1330, 16
      %v1716 = vrot.slane %v1714, 5
      %v1717 = vsel %vm1333, %v1712, %v1716
      %1718 = vrot.lane.b32.xlu0 %v1347, 8
      %v1719 = vpop.permute.xlu0 %1718
      %1720 = vrot.lane.b32.xlu0 %v1357, 8
      %v1721 = vpop.permute.xlu0 %1720
      %1722 = vrot.lane.b32.xlu0 %v1371, 8
      %v1723 = vpop.permute.xlu0 %1722
      %1724 = vrot.lane.b32.xlu0 %v1381, 8
      %v1725 = vpop.permute.xlu0 %1724
      %1726 = vrot.lane.b32.xlu0 %v1395, 8
      %v1727 = vpop.permute.xlu0 %1726
      %1728 = vrot.lane.b32.xlu0 %v1405, 8
      %v1729 = vpop.permute.xlu0 %1728
      %1730 = vrot.lane.b32.xlu0 %v1419, 8
      %v1731 = vpop.permute.xlu0 %1730
      %1732 = vrot.lane.b32.xlu0 %v1429, 8
      %v1733 = vpop.permute.xlu0 %1732
      %1734 = vrot.lane.b32.xlu0 %v1443, 8
      %v1735 = vpop.permute.xlu0 %1734
      %1736 = vrot.lane.b32.xlu0 %v1453, 8
      %v1737 = vpop.permute.xlu0 %1736
      %1738 = vrot.lane.b32.xlu0 %v1467, 8
      %v1739 = vpop.permute.xlu0 %1738
      %1740 = vrot.lane.b32.xlu0 %v1477, 8
      %v1741 = vpop.permute.xlu0 %1740
      %1742 = vrot.lane.b32.xlu0 %v1491, 8
      %v1743 = vpop.permute.xlu0 %1742
      %1744 = vrot.lane.b32.xlu0 %v1501, 8
      %v1745 = vpop.permute.xlu0 %1744
      %1746 = vrot.lane.b32.xlu0 %v1515, 8
      %v1747 = vpop.permute.xlu0 %1746
      %1748 = vrot.lane.b32.xlu0 %v1525, 8
      %v1749 = vpop.permute.xlu0 %1748
      %1750 = vrot.lane.b32.xlu0 %v1539, 8
      %v1751 = vpop.permute.xlu0 %1750
      %1752 = vrot.lane.b32.xlu0 %v1549, 8
      %v1753 = vpop.permute.xlu0 %1752
      %1754 = vrot.lane.b32.xlu0 %v1563, 8
      %v1755 = vpop.permute.xlu0 %1754
      %1756 = vrot.lane.b32.xlu0 %v1573, 8
      %v1757 = vpop.permute.xlu0 %1756
      %1758 = vrot.lane.b32.xlu0 %v1587, 8
      %v1759 = vpop.permute.xlu0 %1758
      %1760 = vrot.lane.b32.xlu0 %v1597, 8
      %v1761 = vpop.permute.xlu0 %1760
      %1762 = vrot.lane.b32.xlu0 %v1611, 8
      %v1763 = vpop.permute.xlu0 %1762
      %1764 = vrot.lane.b32.xlu0 %v1621, 8
      %v1765 = vpop.permute.xlu0 %1764
      %1766 = vrot.lane.b32.xlu0 %v1635, 8
      %v1767 = vpop.permute.xlu0 %1766
      %1768 = vrot.lane.b32.xlu0 %v1645, 8
      %v1769 = vpop.permute.xlu0 %1768
      %1770 = vrot.lane.b32.xlu0 %v1659, 8
      %v1771 = vpop.permute.xlu0 %1770
      %1772 = vrot.lane.b32.xlu0 %v1669, 8
      %v1773 = vpop.permute.xlu0 %1772
      %1774 = vrot.lane.b32.xlu0 %v1683, 8
      %v1775 = vpop.permute.xlu0 %1774
      %1776 = vrot.lane.b32.xlu0 %v1693, 8
      %v1777 = vpop.permute.xlu0 %1776
      %1778 = vrot.lane.b32.xlu0 %v1707, 8
      %v1779 = vpop.permute.xlu0 %1778
      %1780 = vrot.lane.b32.xlu0 %v1717, 8
      %v1781 = vpop.permute.xlu0 %1780
      %vm1814 = vcmask 126016
      %1815 = vst.msk [vmem:[#allocation3] sm:$0xf] %vm1814, %v1719
      %1816 = vst.msk [vmem:[#allocation3 + $0x4] sm:$0xf] %vm1814, %v1721
      %1817 = vst.msk [vmem:[#allocation3 + $0x8] sm:$0xf] %vm1814, %v1723
      %1818 = vst.msk [vmem:[#allocation3 + $0xc] sm:$0xf] %vm1814, %v1725
      %1819 = vst.msk [vmem:[#allocation3 + $0x10] sm:$0xf] %vm1814, %v1727
      %1820 = vst.msk [vmem:[#allocation3 + $0x14] sm:$0xf] %vm1814, %v1729
      %1821 = vst.msk [vmem:[#allocation3 + $0x18] sm:$0xf] %vm1814, %v1731
      %1822 = vst.msk [vmem:[#allocation3 + $0x1c] sm:$0xf] %vm1814, %v1733
      %1823 = vst.msk [vmem:[#allocation3 + $0x20] sm:$0xf] %vm1814, %v1735
      %1824 = vst.msk [vmem:[#allocation3 + $0x24] sm:$0xf] %vm1814, %v1737
      %1825 = vst.msk [vmem:[#allocation3 + $0x28] sm:$0xf] %vm1814, %v1739
      %1826 = vst.msk [vmem:[#allocation3 + $0x2c] sm:$0xf] %vm1814, %v1741
      %1827 = vst.msk [vmem:[#allocation3 + $0x30] sm:$0xf] %vm1814, %v1743
      %1828 = vst.msk [vmem:[#allocation3 + $0x34] sm:$0xf] %vm1814, %v1745
      %1829 = vst.msk [vmem:[#allocation3 + $0x38] sm:$0xf] %vm1814, %v1747
      %1830 = vst.msk [vmem:[#allocation3 + $0x3c] sm:$0xf] %vm1814, %v1749
      %1831 = vst.msk [vmem:[#allocation3 + $0x40] sm:$0xf] %vm1814, %v1751
      %1832 = vst.msk [vmem:[#allocation3 + $0x44] sm:$0xf] %vm1814, %v1753
      %1833 = vst.msk [vmem:[#allocation3 + $0x48] sm:$0xf] %vm1814, %v1755
      %1834 = vst.msk [vmem:[#allocation3 + $0x4c] sm:$0xf] %vm1814, %v1757
      %1835 = vst.msk [vmem:[#allocation3 + $0x50] sm:$0xf] %vm1814, %v1759
      %1836 = vst.msk [vmem:[#allocation3 + $0x54] sm:$0xf] %vm1814, %v1761
      %1837 = vst.msk [vmem:[#allocation3 + $0x58] sm:$0xf] %vm1814, %v1763
      %1838 = vst.msk [vmem:[#allocation3 + $0x5c] sm:$0xf] %vm1814, %v1765
      %1839 = vst.msk [vmem:[#allocation3 + $0x60] sm:$0xf] %vm1814, %v1767
      %1840 = vst.msk [vmem:[#allocation3 + $0x64] sm:$0xf] %vm1814, %v1769
      %1841 = vst.msk [vmem:[#allocation3 + $0x68] sm:$0xf] %vm1814, %v1771
      %1842 = vst.msk [vmem:[#allocation3 + $0x6c] sm:$0xf] %vm1814, %v1773
      %1843 = vst.msk [vmem:[#allocation3 + $0x70] sm:$0xf] %vm1814, %v1775
      %1844 = vst.msk [vmem:[#allocation3 + $0x74] sm:$0xf] %vm1814, %v1777
      %1845 = vst.msk [vmem:[#allocation3 + $0x78] sm:$0xf] %vm1814, %v1779
      %1846 = vst.msk [vmem:[#allocation3 + $0x7c] sm:$0xf] %vm1814, %v1781
      %v1847 = vld [vmem:[#allocation2] sm:$0xe]
      %v1848 = vld [vmem:[#allocation2 + $0x4] sm:$0xf]
      %v1849 = vld [vmem:[#allocation2 + $0x8] sm:$0x1]
      %v1850 = vld [vmem:[#allocation2 + $0xc] sm:$0xe]
      %v1851 = vld [vmem:[#allocation2 + $0x10] sm:$0xf]
      %v1852 = vld [vmem:[#allocation2 + $0x14] sm:$0x1]
      %v1853 = vld [vmem:[#allocation2 + $0x18] sm:$0xe]
      %v1854 = vld [vmem:[#allocation2 + $0x1c] sm:$0xf]
      %v1855 = vld [vmem:[#allocation2 + $0x20] sm:$0x1]
      %v1856 = vld [vmem:[#allocation2 + $0x24] sm:$0xe]
      %v1857 = vld [vmem:[#allocation2 + $0x28] sm:$0xf]
      %v1858 = vld [vmem:[#allocation2 + $0x2c] sm:$0x1]
      %v1859 = vld [vmem:[#allocation2 + $0x30] sm:$0xe]
      %v1860 = vld [vmem:[#allocation2 + $0x34] sm:$0xf]
      %v1861 = vld [vmem:[#allocation2 + $0x38] sm:$0x1]
      %v1862 = vld [vmem:[#allocation2 + $0x3c] sm:$0xe]
      %v1863 = vld [vmem:[#allocation2 + $0x40] sm:$0xf]
      %v1864 = vld [vmem:[#allocation2 + $0x44] sm:$0x1]
      %v1865 = vld [vmem:[#allocation2 + $0x48] sm:$0xe]
      %v1866 = vld [vmem:[#allocation2 + $0x4c] sm:$0xf]
      %v1867 = vld [vmem:[#allocation2 + $0x50] sm:$0x1]
      %v1868 = vld [vmem:[#allocation2 + $0x54] sm:$0xe]
      %v1869 = vld [vmem:[#allocation2 + $0x58] sm:$0xf]
      %v1870 = vld [vmem:[#allocation2 + $0x5c] sm:$0x1]
      %v1871 = vld [vmem:[#allocation2 + $0x60] sm:$0xe]
      %v1872 = vld [vmem:[#allocation2 + $0x64] sm:$0xf]
      %v1873 = vld [vmem:[#allocation2 + $0x68] sm:$0x1]
      %v1874 = vld [vmem:[#allocation2 + $0x6c] sm:$0xe]
      %v1875 = vld [vmem:[#allocation2 + $0x70] sm:$0xf]
      %v1876 = vld [vmem:[#allocation2 + $0x74] sm:$0x1]
      %v1877 = vld [vmem:[#allocation2 + $0x78] sm:$0xe]
      %v1878 = vld [vmem:[#allocation2 + $0x7c] sm:$0xf]
      %v1879 = vld [vmem:[#allocation2 + $0x80] sm:$0x1]
      %v1880 = vld [vmem:[#allocation2 + $0x84] sm:$0xe]
      %v1881 = vld [vmem:[#allocation2 + $0x88] sm:$0xf]
      %v1882 = vld [vmem:[#allocation2 + $0x8c] sm:$0x1]
      %v1883 = vld [vmem:[#allocation2 + $0x90] sm:$0xe]
      %v1884 = vld [vmem:[#allocation2 + $0x94] sm:$0xf]
      %v1885 = vld [vmem:[#allocation2 + $0x98] sm:$0x1]
      %v1886 = vld [vmem:[#allocation2 + $0x9c] sm:$0xe]
      %v1887 = vld [vmem:[#allocation2 + $0xa0] sm:$0xf]
      %v1888 = vld [vmem:[#allocation2 + $0xa4] sm:$0x1]
      %v1889 = vld [vmem:[#allocation2 + $0xa8] sm:$0xe]
      %v1890 = vld [vmem:[#allocation2 + $0xac] sm:$0xf]
      %v1891 = vld [vmem:[#allocation2 + $0xb0] sm:$0x1]
      %v1892 = vld [vmem:[#allocation2 + $0xb4] sm:$0xe]
      %v1893 = vld [vmem:[#allocation2 + $0xb8] sm:$0xf]
      %v1894 = vld [vmem:[#allocation2 + $0xbc] sm:$0x1]
      %vm1943 = vcmask 1042432
      %vm1944 = vcmask 1046532
      %vm1945 = vmor %vm1943, %vm1944
      %v1946 = vrot.slane %v1847, 5
      %v1947 = vrot.slane %v1946, 4
      %v1948 = vrot.slane %v1848, 5
      %v1949 = vsel %vm1945, %v1947, %v1948
      %v1950 = vrot.slane %v1948, 4
      %v1951 = vrot.slane %v1849, 5
      %v1952 = vsel %vm1945, %v1950, %v1951
      %v1953 = vrot.slane %v1850, 5
      %v1954 = vrot.slane %v1953, 4
      %v1955 = vrot.slane %v1851, 5
      %v1956 = vsel %vm1945, %v1954, %v1955
      %v1957 = vrot.slane %v1955, 4
      %v1958 = vrot.slane %v1852, 5
      %v1959 = vsel %vm1945, %v1957, %v1958
      %v1960 = vrot.slane %v1853, 5
      %v1961 = vrot.slane %v1960, 4
      %v1962 = vrot.slane %v1854, 5
      %v1963 = vsel %vm1945, %v1961, %v1962
      %v1964 = vrot.slane %v1962, 4
      %v1965 = vrot.slane %v1855, 5
      %v1966 = vsel %vm1945, %v1964, %v1965
      %v1967 = vrot.slane %v1856, 5
      %v1968 = vrot.slane %v1967, 4
      %v1969 = vrot.slane %v1857, 5
      %v1970 = vsel %vm1945, %v1968, %v1969
      %v1971 = vrot.slane %v1969, 4
      %v1972 = vrot.slane %v1858, 5
      %v1973 = vsel %vm1945, %v1971, %v1972
      %v1974 = vrot.slane %v1859, 5
      %v1975 = vrot.slane %v1974, 4
      %v1976 = vrot.slane %v1860, 5
      %v1977 = vsel %vm1945, %v1975, %v1976
      %v1978 = vrot.slane %v1976, 4
      %v1979 = vrot.slane %v1861, 5
      %v1980 = vsel %vm1945, %v1978, %v1979
      %v1981 = vrot.slane %v1862, 5
      %v1982 = vrot.slane %v1981, 4
      %v1983 = vrot.slane %v1863, 5
      %v1984 = vsel %vm1945, %v1982, %v1983
      %v1985 = vrot.slane %v1983, 4
      %v1986 = vrot.slane %v1864, 5
      %v1987 = vsel %vm1945, %v1985, %v1986
      %v1988 = vrot.slane %v1865, 5
      %v1989 = vrot.slane %v1988, 4
      %v1990 = vrot.slane %v1866, 5
      %v1991 = vsel %vm1945, %v1989, %v1990
      %v1992 = vrot.slane %v1990, 4
      %v1993 = vrot.slane %v1867, 5
      %v1994 = vsel %vm1945, %v1992, %v1993
      %v1995 = vrot.slane %v1868, 5
      %v1996 = vrot.slane %v1995, 4
      %v1997 = vrot.slane %v1869, 5
      %v1998 = vsel %vm1945, %v1996, %v1997
      %v1999 = vrot.slane %v1997, 4
      %v2000 = vrot.slane %v1870, 5
      %v2001 = vsel %vm1945, %v1999, %v2000
      %v2002 = vrot.slane %v1871, 5
      %v2003 = vrot.slane %v2002, 4
      %v2004 = vrot.slane %v1872, 5
      %v2005 = vsel %vm1945, %v2003, %v2004
      %v2006 = vrot.slane %v2004, 4
      %v2007 = vrot.slane %v1873, 5
      %v2008 = vsel %vm1945, %v2006, %v2007
      %v2009 = vrot.slane %v1874, 5
      %v2010 = vrot.slane %v2009, 4
      %v2011 = vrot.slane %v1875, 5
      %v2012 = vsel %vm1945, %v2010, %v2011
      %v2013 = vrot.slane %v2011, 4
      %v2014 = vrot.slane %v1876, 5
      %v2015 = vsel %vm1945, %v2013, %v2014
      %v2016 = vrot.slane %v1877, 5
      %v2017 = vrot.slane %v2016, 4
      %v2018 = vrot.slane %v1878, 5
      %v2019 = vsel %vm1945, %v2017, %v2018
      %v2020 = vrot.slane %v2018, 4
      %v2021 = vrot.slane %v1879, 5
      %v2022 = vsel %vm1945, %v2020, %v2021
      %v2023 = vrot.slane %v1880, 5
      %v2024 = vrot.slane %v2023, 4
      %v2025 = vrot.slane %v1881, 5
      %v2026 = vsel %vm1945, %v2024, %v2025
      %v2027 = vrot.slane %v2025, 4
      %v2028 = vrot.slane %v1882, 5
      %v2029 = vsel %vm1945, %v2027, %v2028
      %v2030 = vrot.slane %v1883, 5
      %v2031 = vrot.slane %v2030, 4
      %v2032 = vrot.slane %v1884, 5
      %v2033 = vsel %vm1945, %v2031, %v2032
      %v2034 = vrot.slane %v2032, 4
      %v2035 = vrot.slane %v1885, 5
      %v2036 = vsel %vm1945, %v2034, %v2035
      %v2037 = vrot.slane %v1886, 5
      %v2038 = vrot.slane %v2037, 4
      %v2039 = vrot.slane %v1887, 5
      %v2040 = vsel %vm1945, %v2038, %v2039
      %v2041 = vrot.slane %v2039, 4
      %v2042 = vrot.slane %v1888, 5
      %v2043 = vsel %vm1945, %v2041, %v2042
      %v2044 = vrot.slane %v1889, 5
      %v2045 = vrot.slane %v2044, 4
      %v2046 = vrot.slane %v1890, 5
      %v2047 = vsel %vm1945, %v2045, %v2046
      %v2048 = vrot.slane %v2046, 4
      %v2049 = vrot.slane %v1891, 5
      %v2050 = vsel %vm1945, %v2048, %v2049
      %v2051 = vrot.slane %v1892, 5
      %v2052 = vrot.slane %v2051, 4
      %v2053 = vrot.slane %v1893, 5
      %v2054 = vsel %vm1945, %v2052, %v2053
      %v2055 = vrot.slane %v2053, 4
      %v2056 = vrot.slane %v1894, 5
      %v2057 = vsel %vm1945, %v2055, %v2056
      %2058 = vrot.lane.b32.xlu0 %v1949, 16
      %v2059 = vpop.permute.xlu0 %2058
      %2060 = vrot.lane.b32.xlu0 %v1952, 16
      %v2061 = vpop.permute.xlu0 %2060
      %2062 = vrot.lane.b32.xlu0 %v1956, 16
      %v2063 = vpop.permute.xlu0 %2062
      %2064 = vrot.lane.b32.xlu0 %v1959, 16
      %v2065 = vpop.permute.xlu0 %2064
      %2066 = vrot.lane.b32.xlu0 %v1963, 16
      %v2067 = vpop.permute.xlu0 %2066
      %2068 = vrot.lane.b32.xlu0 %v1966, 16
      %v2069 = vpop.permute.xlu0 %2068
      %2070 = vrot.lane.b32.xlu0 %v1970, 16
      %v2071 = vpop.permute.xlu0 %2070
      %2072 = vrot.lane.b32.xlu0 %v1973, 16
      %v2073 = vpop.permute.xlu0 %2072
      %2074 = vrot.lane.b32.xlu0 %v1977, 16
      %v2075 = vpop.permute.xlu0 %2074
      %2076 = vrot.lane.b32.xlu0 %v1980, 16
      %v2077 = vpop.permute.xlu0 %2076
      %2078 = vrot.lane.b32.xlu0 %v1984, 16
      %v2079 = vpop.permute.xlu0 %2078
      %2080 = vrot.lane.b32.xlu0 %v1987, 16
      %v2081 = vpop.permute.xlu0 %2080
      %2082 = vrot.lane.b32.xlu0 %v1991, 16
      %v2083 = vpop.permute.xlu0 %2082
      %2084 = vrot.lane.b32.xlu0 %v1994, 16
      %v2085 = vpop.permute.xlu0 %2084
      %2086 = vrot.lane.b32.xlu0 %v1998, 16
      %v2087 = vpop.permute.xlu0 %2086
      %2088 = vrot.lane.b32.xlu0 %v2001, 16
      %v2089 = vpop.permute.xlu0 %2088
      %2090 = vrot.lane.b32.xlu0 %v2005, 16
      %v2091 = vpop.permute.xlu0 %2090
      %2092 = vrot.lane.b32.xlu0 %v2008, 16
      %v2093 = vpop.permute.xlu0 %2092
      %2094 = vrot.lane.b32.xlu0 %v2012, 16
      %v2095 = vpop.permute.xlu0 %2094
      %2096 = vrot.lane.b32.xlu0 %v2015, 16
      %v2097 = vpop.permute.xlu0 %2096
      %2098 = vrot.lane.b32.xlu0 %v2019, 16
      %v2099 = vpop.permute.xlu0 %2098
      %2100 = vrot.lane.b32.xlu0 %v2022, 16
      %v2101 = vpop.permute.xlu0 %2100
      %2102 = vrot.lane.b32.xlu0 %v2026, 16
      %v2103 = vpop.permute.xlu0 %2102
      %2104 = vrot.lane.b32.xlu0 %v2029, 16
      %v2105 = vpop.permute.xlu0 %2104
      %2106 = vrot.lane.b32.xlu0 %v2033, 16
      %v2107 = vpop.permute.xlu0 %2106
      %2108 = vrot.lane.b32.xlu0 %v2036, 16
      %v2109 = vpop.permute.xlu0 %2108
      %2110 = vrot.lane.b32.xlu0 %v2040, 16
      %v2111 = vpop.permute.xlu0 %2110
      %2112 = vrot.lane.b32.xlu0 %v2043, 16
      %v2113 = vpop.permute.xlu0 %2112
      %2114 = vrot.lane.b32.xlu0 %v2047, 16
      %v2115 = vpop.permute.xlu0 %2114
      %2116 = vrot.lane.b32.xlu0 %v2050, 16
      %v2117 = vpop.permute.xlu0 %2116
      %2118 = vrot.lane.b32.xlu0 %v2054, 16
      %v2119 = vpop.permute.xlu0 %2118
      %2120 = vrot.lane.b32.xlu0 %v2057, 16
      %v2121 = vpop.permute.xlu0 %2120
      %vm2154 = vcmask 191616
      %2155 = vst.msk [vmem:[#allocation3] sm:$0xf] %vm2154, %v2059
      %2156 = vst.msk [vmem:[#allocation3 + $0x4] sm:$0xf] %vm2154, %v2061
      %2157 = vst.msk [vmem:[#allocation3 + $0x8] sm:$0xf] %vm2154, %v2063
      %2158 = vst.msk [vmem:[#allocation3 + $0xc] sm:$0xf] %vm2154, %v2065
      %2159 = vst.msk [vmem:[#allocation3 + $0x10] sm:$0xf] %vm2154, %v2067
      %2160 = vst.msk [vmem:[#allocation3 + $0x14] sm:$0xf] %vm2154, %v2069
      %2161 = vst.msk [vmem:[#allocation3 + $0x18] sm:$0xf] %vm2154, %v2071
      %2162 = vst.msk [vmem:[#allocation3 + $0x1c] sm:$0xf] %vm2154, %v2073
      %2163 = vst.msk [vmem:[#allocation3 + $0x20] sm:$0xf] %vm2154, %v2075
      %2164 = vst.msk [vmem:[#allocation3 + $0x24] sm:$0xf] %vm2154, %v2077
      %2165 = vst.msk [vmem:[#allocation3 + $0x28] sm:$0xf] %vm2154, %v2079
      %2166 = vst.msk [vmem:[#allocation3 + $0x2c] sm:$0xf] %vm2154, %v2081
      %2167 = vst.msk [vmem:[#allocation3 + $0x30] sm:$0xf] %vm2154, %v2083
      %2168 = vst.msk [vmem:[#allocation3 + $0x34] sm:$0xf] %vm2154, %v2085
      %2169 = vst.msk [vmem:[#allocation3 + $0x38] sm:$0xf] %vm2154, %v2087
      %2170 = vst.msk [vmem:[#allocation3 + $0x3c] sm:$0xf] %vm2154, %v2089
      %2171 = vst.msk [vmem:[#allocation3 + $0x40] sm:$0xf] %vm2154, %v2091
      %2172 = vst.msk [vmem:[#allocation3 + $0x44] sm:$0xf] %vm2154, %v2093
      %2173 = vst.msk [vmem:[#allocation3 + $0x48] sm:$0xf] %vm2154, %v2095
      %2174 = vst.msk [vmem:[#allocation3 + $0x4c] sm:$0xf] %vm2154, %v2097
      %2175 = vst.msk [vmem:[#allocation3 + $0x50] sm:$0xf] %vm2154, %v2099
      %2176 = vst.msk [vmem:[#allocation3 + $0x54] sm:$0xf] %vm2154, %v2101
      %2177 = vst.msk [vmem:[#allocation3 + $0x58] sm:$0xf] %vm2154, %v2103
      %2178 = vst.msk [vmem:[#allocation3 + $0x5c] sm:$0xf] %vm2154, %v2105
      %2179 = vst.msk [vmem:[#allocation3 + $0x60] sm:$0xf] %vm2154, %v2107
      %2180 = vst.msk [vmem:[#allocation3 + $0x64] sm:$0xf] %vm2154, %v2109
      %2181 = vst.msk [vmem:[#allocation3 + $0x68] sm:$0xf] %vm2154, %v2111
      %2182 = vst.msk [vmem:[#allocation3 + $0x6c] sm:$0xf] %vm2154, %v2113
      %2183 = vst.msk [vmem:[#allocation3 + $0x70] sm:$0xf] %vm2154, %v2115
      %2184 = vst.msk [vmem:[#allocation3 + $0x74] sm:$0xf] %vm2154, %v2117
      %2185 = vst.msk [vmem:[#allocation3 + $0x78] sm:$0xf] %vm2154, %v2119
      %2186 = vst.msk [vmem:[#allocation3 + $0x7c] sm:$0xf] %vm2154, %v2121
      %v2187 = vld [vmem:[%s1161] sm:$0xf]
      %v2188 = vld [vmem:[%s1161 + $0x4] sm:$0xf]
      %v2189 = vld [vmem:[%s1161 + $0xc] sm:$0xf]
      %v2190 = vld [vmem:[%s1161 + $0x10] sm:$0xf]
      %v2191 = vld [vmem:[%s1161 + $0x18] sm:$0xf]
      %v2192 = vld [vmem:[%s1161 + $0x1c] sm:$0xf]
      %v2193 = vld [vmem:[%s1161 + $0x24] sm:$0xf]
      %v2194 = vld [vmem:[%s1161 + $0x28] sm:$0xf]
      %v2195 = vld [vmem:[%s1161 + $0x30] sm:$0xf]
      %v2196 = vld [vmem:[%s1161 + $0x34] sm:$0xf]
      %v2197 = vld [vmem:[%s1161 + $0x3c] sm:$0xf]
      %v2198 = vld [vmem:[%s1161 + $0x40] sm:$0xf]
      %v2199 = vld [vmem:[%s1161 + $0x48] sm:$0xf]
      %v2200 = vld [vmem:[%s1161 + $0x4c] sm:$0xf]
      %v2201 = vld [vmem:[%s1161 + $0x54] sm:$0xf]
      %v2202 = vld [vmem:[%s1161 + $0x58] sm:$0xf]
      %v2203 = vld [vmem:[%s1161 + $0x60] sm:$0xf]
      %v2204 = vld [vmem:[%s1161 + $0x64] sm:$0xf]
      %v2205 = vld [vmem:[%s1161 + $0x6c] sm:$0xf]
      %v2206 = vld [vmem:[%s1161 + $0x70] sm:$0xf]
      %v2207 = vld [vmem:[%s1161 + $0x78] sm:$0xf]
      %v2208 = vld [vmem:[%s1161 + $0x7c] sm:$0xf]
      %v2209 = vld [vmem:[%s1161 + $0x84] sm:$0xf]
      %v2210 = vld [vmem:[%s1161 + $0x88] sm:$0xf]
      %v2211 = vld [vmem:[%s1161 + $0x90] sm:$0xf]
      %v2212 = vld [vmem:[%s1161 + $0x94] sm:$0xf]
      %v2213 = vld [vmem:[%s1161 + $0x9c] sm:$0xf]
      %v2214 = vld [vmem:[%s1161 + $0xa0] sm:$0xf]
      %v2215 = vld [vmem:[%s1161 + $0xa8] sm:$0xf]
      %v2216 = vld [vmem:[%s1161 + $0xac] sm:$0xf]
      %v2217 = vld [vmem:[%s1161 + $0xb4] sm:$0xf]
      %v2218 = vld [vmem:[%s1161 + $0xb8] sm:$0xf]
      %2251 = vrot.lane.b32.xlu0 %v2187, 24
      %v2252 = vpop.permute.xlu0 %2251
      %2253 = vrot.lane.b32.xlu0 %v2188, 24
      %v2254 = vpop.permute.xlu0 %2253
      %2255 = vrot.lane.b32.xlu0 %v2189, 24
      %v2256 = vpop.permute.xlu0 %2255
      %2257 = vrot.lane.b32.xlu0 %v2190, 24
      %v2258 = vpop.permute.xlu0 %2257
      %2259 = vrot.lane.b32.xlu0 %v2191, 24
      %v2260 = vpop.permute.xlu0 %2259
      %2261 = vrot.lane.b32.xlu0 %v2192, 24
      %v2262 = vpop.permute.xlu0 %2261
      %2263 = vrot.lane.b32.xlu0 %v2193, 24
      %v2264 = vpop.permute.xlu0 %2263
      %2265 = vrot.lane.b32.xlu0 %v2194, 24
      %v2266 = vpop.permute.xlu0 %2265
      %2267 = vrot.lane.b32.xlu0 %v2195, 24
      %v2268 = vpop.permute.xlu0 %2267
      %2269 = vrot.lane.b32.xlu0 %v2196, 24
      %v2270 = vpop.permute.xlu0 %2269
      %2271 = vrot.lane.b32.xlu0 %v2197, 24
      %v2272 = vpop.permute.xlu0 %2271
      %2273 = vrot.lane.b32.xlu0 %v2198, 24
      %v2274 = vpop.permute.xlu0 %2273
      %2275 = vrot.lane.b32.xlu0 %v2199, 24
      %v2276 = vpop.permute.xlu0 %2275
      %2277 = vrot.lane.b32.xlu0 %v2200, 24
      %v2278 = vpop.permute.xlu0 %2277
      %2279 = vrot.lane.b32.xlu0 %v2201, 24
      %v2280 = vpop.permute.xlu0 %2279
      %2281 = vrot.lane.b32.xlu0 %v2202, 24
      %v2282 = vpop.permute.xlu0 %2281
      %2283 = vrot.lane.b32.xlu0 %v2203, 24
      %v2284 = vpop.permute.xlu0 %2283
      %2285 = vrot.lane.b32.xlu0 %v2204, 24
      %v2286 = vpop.permute.xlu0 %2285
      %2287 = vrot.lane.b32.xlu0 %v2205, 24
      %v2288 = vpop.permute.xlu0 %2287
      %2289 = vrot.lane.b32.xlu0 %v2206, 24
      %v2290 = vpop.permute.xlu0 %2289
      %2291 = vrot.lane.b32.xlu0 %v2207, 24
      %v2292 = vpop.permute.xlu0 %2291
      %2293 = vrot.lane.b32.xlu0 %v2208, 24
      %v2294 = vpop.permute.xlu0 %2293
      %2295 = vrot.lane.b32.xlu0 %v2209, 24
      %v2296 = vpop.permute.xlu0 %2295
      %2297 = vrot.lane.b32.xlu0 %v2210, 24
      %v2298 = vpop.permute.xlu0 %2297
      %2299 = vrot.lane.b32.xlu0 %v2211, 24
      %v2300 = vpop.permute.xlu0 %2299
      %2301 = vrot.lane.b32.xlu0 %v2212, 24
      %v2302 = vpop.permute.xlu0 %2301
      %2303 = vrot.lane.b32.xlu0 %v2213, 24
      %v2304 = vpop.permute.xlu0 %2303
      %2305 = vrot.lane.b32.xlu0 %v2214, 24
      %v2306 = vpop.permute.xlu0 %2305
      %2307 = vrot.lane.b32.xlu0 %v2215, 24
      %v2308 = vpop.permute.xlu0 %2307
      %2309 = vrot.lane.b32.xlu0 %v2216, 24
      %v2310 = vpop.permute.xlu0 %2309
      %2311 = vrot.lane.b32.xlu0 %v2217, 24
      %v2312 = vpop.permute.xlu0 %2311
      %2313 = vrot.lane.b32.xlu0 %v2218, 24
      %v2314 = vpop.permute.xlu0 %2313
      %vm2347 = vcmask 257216
      %2348 = vst.msk [vmem:[#allocation3] sm:$0xf] %vm2347, %v2252
      %2349 = vst.msk [vmem:[#allocation3 + $0x4] sm:$0xf] %vm2347, %v2254
      %2350 = vst.msk [vmem:[#allocation3 + $0x8] sm:$0xf] %vm2347, %v2256
      %2351 = vst.msk [vmem:[#allocation3 + $0xc] sm:$0xf] %vm2347, %v2258
      %2352 = vst.msk [vmem:[#allocation3 + $0x10] sm:$0xf] %vm2347, %v2260
      %2353 = vst.msk [vmem:[#allocation3 + $0x14] sm:$0xf] %vm2347, %v2262
      %2354 = vst.msk [vmem:[#allocation3 + $0x18] sm:$0xf] %vm2347, %v2264
      %2355 = vst.msk [vmem:[#allocation3 + $0x1c] sm:$0xf] %vm2347, %v2266
      %2356 = vst.msk [vmem:[#allocation3 + $0x20] sm:$0xf] %vm2347, %v2268
      %2357 = vst.msk [vmem:[#allocation3 + $0x24] sm:$0xf] %vm2347, %v2270
      %2358 = vst.msk [vmem:[#allocation3 + $0x28] sm:$0xf] %vm2347, %v2272
      %2359 = vst.msk [vmem:[#allocation3 + $0x2c] sm:$0xf] %vm2347, %v2274
      %2360 = vst.msk [vmem:[#allocation3 + $0x30] sm:$0xf] %vm2347, %v2276
      %2361 = vst.msk [vmem:[#allocation3 + $0x34] sm:$0xf] %vm2347, %v2278
      %2362 = vst.msk [vmem:[#allocation3 + $0x38] sm:$0xf] %vm2347, %v2280
      %2363 = vst.msk [vmem:[#allocation3 + $0x3c] sm:$0xf] %vm2347, %v2282
      %2364 = vst.msk [vmem:[#allocation3 + $0x40] sm:$0xf] %vm2347, %v2284
      %2365 = vst.msk [vmem:[#allocation3 + $0x44] sm:$0xf] %vm2347, %v2286
      %2366 = vst.msk [vmem:[#allocation3 + $0x48] sm:$0xf] %vm2347, %v2288
      %2367 = vst.msk [vmem:[#allocation3 + $0x4c] sm:$0xf] %vm2347, %v2290
      %2368 = vst.msk [vmem:[#allocation3 + $0x50] sm:$0xf] %vm2347, %v2292
      %2369 = vst.msk [vmem:[#allocation3 + $0x54] sm:$0xf] %vm2347, %v2294
      %2370 = vst.msk [vmem:[#allocation3 + $0x58] sm:$0xf] %vm2347, %v2296
      %2371 = vst.msk [vmem:[#allocation3 + $0x5c] sm:$0xf] %vm2347, %v2298
      %2372 = vst.msk [vmem:[#allocation3 + $0x60] sm:$0xf] %vm2347, %v2300
      %2373 = vst.msk [vmem:[#allocation3 + $0x64] sm:$0xf] %vm2347, %v2302
      %2374 = vst.msk [vmem:[#allocation3 + $0x68] sm:$0xf] %vm2347, %v2304
      %2375 = vst.msk [vmem:[#allocation3 + $0x6c] sm:$0xf] %vm2347, %v2306
      %2376 = vst.msk [vmem:[#allocation3 + $0x70] sm:$0xf] %vm2347, %v2308
      %2377 = vst.msk [vmem:[#allocation3 + $0x74] sm:$0xf] %vm2347, %v2310
      %2378 = vst.msk [vmem:[#allocation3 + $0x78] sm:$0xf] %vm2347, %v2312
      %2379 = vst.msk [vmem:[#allocation3 + $0x7c] sm:$0xf] %vm2347, %v2314
      %v2380 = vld [vmem:[%s1161] sm:$0xf]
      %v2381 = vld [vmem:[%s1161 + $0x4] sm:$0xf]
      %v2382 = vld [vmem:[%s1161 + $0x8] sm:$0x1]
      %v2383 = vld [vmem:[%s1161 + $0xc] sm:$0xf]
      %v2384 = vld [vmem:[%s1161 + $0x10] sm:$0xf]
      %v2385 = vld [vmem:[%s1161 + $0x14] sm:$0x1]
      %v2386 = vld [vmem:[%s1161 + $0x18] sm:$0xf]
      %v2387 = vld [vmem:[%s1161 + $0x1c] sm:$0xf]
      %v2388 = vld [vmem:[%s1161 + $0x20] sm:$0x1]
      %v2389 = vld [vmem:[%s1161 + $0x24] sm:$0xf]
      %v2390 = vld [vmem:[%s1161 + $0x28] sm:$0xf]
      %v2391 = vld [vmem:[%s1161 + $0x2c] sm:$0x1]
      %v2392 = vld [vmem:[%s1161 + $0x30] sm:$0xf]
      %v2393 = vld [vmem:[%s1161 + $0x34] sm:$0xf]
      %v2394 = vld [vmem:[%s1161 + $0x38] sm:$0x1]
      %v2395 = vld [vmem:[%s1161 + $0x3c] sm:$0xf]
      %v2396 = vld [vmem:[%s1161 + $0x40] sm:$0xf]
      %v2397 = vld [vmem:[%s1161 + $0x44] sm:$0x1]
      %v2398 = vld [vmem:[%s1161 + $0x48] sm:$0xf]
      %v2399 = vld [vmem:[%s1161 + $0x4c] sm:$0xf]
      %v2400 = vld [vmem:[%s1161 + $0x50] sm:$0x1]
      %v2401 = vld [vmem:[%s1161 + $0x54] sm:$0xf]
      %v2402 = vld [vmem:[%s1161 + $0x58] sm:$0xf]
      %v2403 = vld [vmem:[%s1161 + $0x5c] sm:$0x1]
      %v2404 = vld [vmem:[%s1161 + $0x60] sm:$0xf]
      %v2405 = vld [vmem:[%s1161 + $0x64] sm:$0xf]
      %v2406 = vld [vmem:[%s1161 + $0x68] sm:$0x1]
      %v2407 = vld [vmem:[%s1161 + $0x6c] sm:$0xf]
      %v2408 = vld [vmem:[%s1161 + $0x70] sm:$0xf]
      %v2409 = vld [vmem:[%s1161 + $0x74] sm:$0x1]
      %v2410 = vld [vmem:[%s1161 + $0x78] sm:$0xf]
      %v2411 = vld [vmem:[%s1161 + $0x7c] sm:$0xf]
      %v2412 = vld [vmem:[%s1161 + $0x80] sm:$0x1]
      %v2413 = vld [vmem:[%s1161 + $0x84] sm:$0xf]
      %v2414 = vld [vmem:[%s1161 + $0x88] sm:$0xf]
      %v2415 = vld [vmem:[%s1161 + $0x8c] sm:$0x1]
      %v2416 = vld [vmem:[%s1161 + $0x90] sm:$0xf]
      %v2417 = vld [vmem:[%s1161 + $0x94] sm:$0xf]
      %v2418 = vld [vmem:[%s1161 + $0x98] sm:$0x1]
      %v2419 = vld [vmem:[%s1161 + $0x9c] sm:$0xf]
      %v2420 = vld [vmem:[%s1161 + $0xa0] sm:$0xf]
      %v2421 = vld [vmem:[%s1161 + $0xa4] sm:$0x1]
      %v2422 = vld [vmem:[%s1161 + $0xa8] sm:$0xf]
      %v2423 = vld [vmem:[%s1161 + $0xac] sm:$0xf]
      %v2424 = vld [vmem:[%s1161 + $0xb0] sm:$0x1]
      %v2425 = vld [vmem:[%s1161 + $0xb4] sm:$0xf]
      %v2426 = vld [vmem:[%s1161 + $0xb8] sm:$0xf]
      %v2427 = vld [vmem:[%s1161 + $0xbc] sm:$0x1]
      %v2429 = vshrl.u32 %v2380, 16
      %v2431 = vrot.slane %v2429, 4
      %v2432 = vshll.u32 %v2380, 16
      %v2434 = vrot.slane %v2432, 5
      %v2435 = vor.u32 %v2431, %v2434
      %v2436 = vrot.slane %v2435, 4
      %v2438 = vshll.u32 %v2381, 16
      %v2440 = vrot.slane %v2438, 5
      %v2441 = vsel %vm1333, %v2436, %v2440
      %v2442 = vshrl.u32 %v2381, 16
      %v2444 = vrot.slane %v2442, 4
      %v2445 = vor.u32 %v2444, %v2440
      %v2446 = vrot.slane %v2445, 4
      %v2448 = vshll.u32 %v2382, 16
      %v2450 = vrot.slane %v2448, 5
      %v2451 = vsel %vm1333, %v2446, %v2450
      %v2453 = vshrl.u32 %v2383, 16
      %v2455 = vrot.slane %v2453, 4
      %v2456 = vshll.u32 %v2383, 16
      %v2458 = vrot.slane %v2456, 5
      %v2459 = vor.u32 %v2455, %v2458
      %v2460 = vrot.slane %v2459, 4
      %v2462 = vshll.u32 %v2384, 16
      %v2464 = vrot.slane %v2462, 5
      %v2465 = vsel %vm1333, %v2460, %v2464
      %v2466 = vshrl.u32 %v2384, 16
      %v2468 = vrot.slane %v2466, 4
      %v2469 = vor.u32 %v2468, %v2464
      %v2470 = vrot.slane %v2469, 4
      %v2472 = vshll.u32 %v2385, 16
      %v2474 = vrot.slane %v2472, 5
      %v2475 = vsel %vm1333, %v2470, %v2474
      %v2477 = vshrl.u32 %v2386, 16
      %v2479 = vrot.slane %v2477, 4
      %v2480 = vshll.u32 %v2386, 16
      %v2482 = vrot.slane %v2480, 5
      %v2483 = vor.u32 %v2479, %v2482
      %v2484 = vrot.slane %v2483, 4
      %v2486 = vshll.u32 %v2387, 16
      %v2488 = vrot.slane %v2486, 5
      %v2489 = vsel %vm1333, %v2484, %v2488
      %v2490 = vshrl.u32 %v2387, 16
      %v2492 = vrot.slane %v2490, 4
      %v2493 = vor.u32 %v2492, %v2488
      %v2494 = vrot.slane %v2493, 4
      %v2496 = vshll.u32 %v2388, 16
      %v2498 = vrot.slane %v2496, 5
      %v2499 = vsel %vm1333, %v2494, %v2498
      %v2501 = vshrl.u32 %v2389, 16
      %v2503 = vrot.slane %v2501, 4
      %v2504 = vshll.u32 %v2389, 16
      %v2506 = vrot.slane %v2504, 5
      %v2507 = vor.u32 %v2503, %v2506
      %v2508 = vrot.slane %v2507, 4
      %v2510 = vshll.u32 %v2390, 16
      %v2512 = vrot.slane %v2510, 5
      %v2513 = vsel %vm1333, %v2508, %v2512
      %v2514 = vshrl.u32 %v2390, 16
      %v2516 = vrot.slane %v2514, 4
      %v2517 = vor.u32 %v2516, %v2512
      %v2518 = vrot.slane %v2517, 4
      %v2520 = vshll.u32 %v2391, 16
      %v2522 = vrot.slane %v2520, 5
      %v2523 = vsel %vm1333, %v2518, %v2522
      %v2525 = vshrl.u32 %v2392, 16
      %v2527 = vrot.slane %v2525, 4
      %v2528 = vshll.u32 %v2392, 16
      %v2530 = vrot.slane %v2528, 5
      %v2531 = vor.u32 %v2527, %v2530
      %v2532 = vrot.slane %v2531, 4
      %v2534 = vshll.u32 %v2393, 16
      %v2536 = vrot.slane %v2534, 5
      %v2537 = vsel %vm1333, %v2532, %v2536
      %v2538 = vshrl.u32 %v2393, 16
      %v2540 = vrot.slane %v2538, 4
      %v2541 = vor.u32 %v2540, %v2536
      %v2542 = vrot.slane %v2541, 4
      %v2544 = vshll.u32 %v2394, 16
      %v2546 = vrot.slane %v2544, 5
      %v2547 = vsel %vm1333, %v2542, %v2546
      %v2549 = vshrl.u32 %v2395, 16
      %v2551 = vrot.slane %v2549, 4
      %v2552 = vshll.u32 %v2395, 16
      %v2554 = vrot.slane %v2552, 5
      %v2555 = vor.u32 %v2551, %v2554
      %v2556 = vrot.slane %v2555, 4
      %v2558 = vshll.u32 %v2396, 16
      %v2560 = vrot.slane %v2558, 5
      %v2561 = vsel %vm1333, %v2556, %v2560
      %v2562 = vshrl.u32 %v2396, 16
      %v2564 = vrot.slane %v2562, 4
      %v2565 = vor.u32 %v2564, %v2560
      %v2566 = vrot.slane %v2565, 4
      %v2568 = vshll.u32 %v2397, 16
      %v2570 = vrot.slane %v2568, 5
      %v2571 = vsel %vm1333, %v2566, %v2570
      %v2573 = vshrl.u32 %v2398, 16
      %v2575 = vrot.slane %v2573, 4
      %v2576 = vshll.u32 %v2398, 16
      %v2578 = vrot.slane %v2576, 5
      %v2579 = vor.u32 %v2575, %v2578
      %v2580 = vrot.slane %v2579, 4
      %v2582 = vshll.u32 %v2399, 16
      %v2584 = vrot.slane %v2582, 5
      %v2585 = vsel %vm1333, %v2580, %v2584
      %v2586 = vshrl.u32 %v2399, 16
      %v2588 = vrot.slane %v2586, 4
      %v2589 = vor.u32 %v2588, %v2584
      %v2590 = vrot.slane %v2589, 4
      %v2592 = vshll.u32 %v2400, 16
      %v2594 = vrot.slane %v2592, 5
      %v2595 = vsel %vm1333, %v2590, %v2594
      %v2597 = vshrl.u32 %v2401, 16
      %v2599 = vrot.slane %v2597, 4
      %v2600 = vshll.u32 %v2401, 16
      %v2602 = vrot.slane %v2600, 5
      %v2603 = vor.u32 %v2599, %v2602
      %v2604 = vrot.slane %v2603, 4
      %v2606 = vshll.u32 %v2402, 16
      %v2608 = vrot.slane %v2606, 5
      %v2609 = vsel %vm1333, %v2604, %v2608
      %v2610 = vshrl.u32 %v2402, 16
      %v2612 = vrot.slane %v2610, 4
      %v2613 = vor.u32 %v2612, %v2608
      %v2614 = vrot.slane %v2613, 4
      %v2616 = vshll.u32 %v2403, 16
      %v2618 = vrot.slane %v2616, 5
      %v2619 = vsel %vm1333, %v2614, %v2618
      %v2621 = vshrl.u32 %v2404, 16
      %v2623 = vrot.slane %v2621, 4
      %v2624 = vshll.u32 %v2404, 16
      %v2626 = vrot.slane %v2624, 5
      %v2627 = vor.u32 %v2623, %v2626
      %v2628 = vrot.slane %v2627, 4
      %v2630 = vshll.u32 %v2405, 16
      %v2632 = vrot.slane %v2630, 5
      %v2633 = vsel %vm1333, %v2628, %v2632
      %v2634 = vshrl.u32 %v2405, 16
      %v2636 = vrot.slane %v2634, 4
      %v2637 = vor.u32 %v2636, %v2632
      %v2638 = vrot.slane %v2637, 4
      %v2640 = vshll.u32 %v2406, 16
      %v2642 = vrot.slane %v2640, 5
      %v2643 = vsel %vm1333, %v2638, %v2642
      %v2645 = vshrl.u32 %v2407, 16
      %v2647 = vrot.slane %v2645, 4
      %v2648 = vshll.u32 %v2407, 16
      %v2650 = vrot.slane %v2648, 5
      %v2651 = vor.u32 %v2647, %v2650
      %v2652 = vrot.slane %v2651, 4
      %v2654 = vshll.u32 %v2408, 16
      %v2656 = vrot.slane %v2654, 5
      %v2657 = vsel %vm1333, %v2652, %v2656
      %v2658 = vshrl.u32 %v2408, 16
      %v2660 = vrot.slane %v2658, 4
      %v2661 = vor.u32 %v2660, %v2656
      %v2662 = vrot.slane %v2661, 4
      %v2664 = vshll.u32 %v2409, 16
      %v2666 = vrot.slane %v2664, 5
      %v2667 = vsel %vm1333, %v2662, %v2666
      %v2669 = vshrl.u32 %v2410, 16
      %v2671 = vrot.slane %v2669, 4
      %v2672 = vshll.u32 %v2410, 16
      %v2674 = vrot.slane %v2672, 5
      %v2675 = vor.u32 %v2671, %v2674
      %v2676 = vrot.slane %v2675, 4
      %v2678 = vshll.u32 %v2411, 16
      %v2680 = vrot.slane %v2678, 5
      %v2681 = vsel %vm1333, %v2676, %v2680
      %v2682 = vshrl.u32 %v2411, 16
      %v2684 = vrot.slane %v2682, 4
      %v2685 = vor.u32 %v2684, %v2680
      %v2686 = vrot.slane %v2685, 4
      %v2688 = vshll.u32 %v2412, 16
      %v2690 = vrot.slane %v2688, 5
      %v2691 = vsel %vm1333, %v2686, %v2690
      %v2693 = vshrl.u32 %v2413, 16
      %v2695 = vrot.slane %v2693, 4
      %v2696 = vshll.u32 %v2413, 16
      %v2698 = vrot.slane %v2696, 5
      %v2699 = vor.u32 %v2695, %v2698
      %v2700 = vrot.slane %v2699, 4
      %v2702 = vshll.u32 %v2414, 16
      %v2704 = vrot.slane %v2702, 5
      %v2705 = vsel %vm1333, %v2700, %v2704
      %v2706 = vshrl.u32 %v2414, 16
      %v2708 = vrot.slane %v2706, 4
      %v2709 = vor.u32 %v2708, %v2704
      %v2710 = vrot.slane %v2709, 4
      %v2712 = vshll.u32 %v2415, 16
      %v2714 = vrot.slane %v2712, 5
      %v2715 = vsel %vm1333, %v2710, %v2714
      %v2717 = vshrl.u32 %v2416, 16
      %v2719 = vrot.slane %v2717, 4
      %v2720 = vshll.u32 %v2416, 16
      %v2722 = vrot.slane %v2720, 5
      %v2723 = vor.u32 %v2719, %v2722
      %v2724 = vrot.slane %v2723, 4
      %v2726 = vshll.u32 %v2417, 16
      %v2728 = vrot.slane %v2726, 5
      %v2729 = vsel %vm1333, %v2724, %v2728
      %v2730 = vshrl.u32 %v2417, 16
      %v2732 = vrot.slane %v2730, 4
      %v2733 = vor.u32 %v2732, %v2728
      %v2734 = vrot.slane %v2733, 4
      %v2736 = vshll.u32 %v2418, 16
      %v2738 = vrot.slane %v2736, 5
      %v2739 = vsel %vm1333, %v2734, %v2738
      %v2741 = vshrl.u32 %v2419, 16
      %v2743 = vrot.slane %v2741, 4
      %v2744 = vshll.u32 %v2419, 16
      %v2746 = vrot.slane %v2744, 5
      %v2747 = vor.u32 %v2743, %v2746
      %v2748 = vrot.slane %v2747, 4
      %v2750 = vshll.u32 %v2420, 16
      %v2752 = vrot.slane %v2750, 5
      %v2753 = vsel %vm1333, %v2748, %v2752
      %v2754 = vshrl.u32 %v2420, 16
      %v2756 = vrot.slane %v2754, 4
      %v2757 = vor.u32 %v2756, %v2752
      %v2758 = vrot.slane %v2757, 4
      %v2760 = vshll.u32 %v2421, 16
      %v2762 = vrot.slane %v2760, 5
      %v2763 = vsel %vm1333, %v2758, %v2762
      %v2765 = vshrl.u32 %v2422, 16
      %v2767 = vrot.slane %v2765, 4
      %v2768 = vshll.u32 %v2422, 16
      %v2770 = vrot.slane %v2768, 5
      %v2771 = vor.u32 %v2767, %v2770
      %v2772 = vrot.slane %v2771, 4
      %v2774 = vshll.u32 %v2423, 16
      %v2776 = vrot.slane %v2774, 5
      %v2777 = vsel %vm1333, %v2772, %v2776
      %v2778 = vshrl.u32 %v2423, 16
      %v2780 = vrot.slane %v2778, 4
      %v2781 = vor.u32 %v2780, %v2776
      %v2782 = vrot.slane %v2781, 4
      %v2784 = vshll.u32 %v2424, 16
      %v2786 = vrot.slane %v2784, 5
      %v2787 = vsel %vm1333, %v2782, %v2786
      %v2789 = vshrl.u32 %v2425, 16
      %v2791 = vrot.slane %v2789, 4
      %v2792 = vshll.u32 %v2425, 16
      %v2794 = vrot.slane %v2792, 5
      %v2795 = vor.u32 %v2791, %v2794
      %v2796 = vrot.slane %v2795, 4
      %v2798 = vshll.u32 %v2426, 16
      %v2800 = vrot.slane %v2798, 5
      %v2801 = vsel %vm1333, %v2796, %v2800
      %v2802 = vshrl.u32 %v2426, 16
      %v2804 = vrot.slane %v2802, 4
      %v2805 = vor.u32 %v2804, %v2800
      %v2806 = vrot.slane %v2805, 4
      %v2808 = vshll.u32 %v2427, 16
      %v2810 = vrot.slane %v2808, 5
      %v2811 = vsel %vm1333, %v2806, %v2810
      %2812 = vrot.lane.b32.xlu0 %v2441, 32
      %v2813 = vpop.permute.xlu0 %2812
      %2814 = vrot.lane.b32.xlu0 %v2451, 32
      %v2815 = vpop.permute.xlu0 %2814
      %2816 = vrot.lane.b32.xlu0 %v2465, 32
      %v2817 = vpop.permute.xlu0 %2816
      %2818 = vrot.lane.b32.xlu0 %v2475, 32
      %v2819 = vpop.permute.xlu0 %2818
      %2820 = vrot.lane.b32.xlu0 %v2489, 32
      %v2821 = vpop.permute.xlu0 %2820
      %2822 = vrot.lane.b32.xlu0 %v2499, 32
      %v2823 = vpop.permute.xlu0 %2822
      %2824 = vrot.lane.b32.xlu0 %v2513, 32
      %v2825 = vpop.permute.xlu0 %2824
      %2826 = vrot.lane.b32.xlu0 %v2523, 32
      %v2827 = vpop.permute.xlu0 %2826
      %2828 = vrot.lane.b32.xlu0 %v2537, 32
      %v2829 = vpop.permute.xlu0 %2828
      %2830 = vrot.lane.b32.xlu0 %v2547, 32
      %v2831 = vpop.permute.xlu0 %2830
      %2832 = vrot.lane.b32.xlu0 %v2561, 32
      %v2833 = vpop.permute.xlu0 %2832
      %2834 = vrot.lane.b32.xlu0 %v2571, 32
      %v2835 = vpop.permute.xlu0 %2834
      %2836 = vrot.lane.b32.xlu0 %v2585, 32
      %v2837 = vpop.permute.xlu0 %2836
      %2838 = vrot.lane.b32.xlu0 %v2595, 32
      %v2839 = vpop.permute.xlu0 %2838
      %2840 = vrot.lane.b32.xlu0 %v2609, 32
      %v2841 = vpop.permute.xlu0 %2840
      %2842 = vrot.lane.b32.xlu0 %v2619, 32
      %v2843 = vpop.permute.xlu0 %2842
      %2844 = vrot.lane.b32.xlu0 %v2633, 32
      %v2845 = vpop.permute.xlu0 %2844
      %2846 = vrot.lane.b32.xlu0 %v2643, 32
      %v2847 = vpop.permute.xlu0 %2846
      %2848 = vrot.lane.b32.xlu0 %v2657, 32
      %v2849 = vpop.permute.xlu0 %2848
      %2850 = vrot.lane.b32.xlu0 %v2667, 32
      %v2851 = vpop.permute.xlu0 %2850
      %2852 = vrot.lane.b32.xlu0 %v2681, 32
      %v2853 = vpop.permute.xlu0 %2852
      %2854 = vrot.lane.b32.xlu0 %v2691, 32
      %v2855 = vpop.permute.xlu0 %2854
      %2856 = vrot.lane.b32.xlu0 %v2705, 32
      %v2857 = vpop.permute.xlu0 %2856
      %2858 = vrot.lane.b32.xlu0 %v2715, 32
      %v2859 = vpop.permute.xlu0 %2858
      %2860 = vrot.lane.b32.xlu0 %v2729, 32
      %v2861 = vpop.permute.xlu0 %2860
      %2862 = vrot.lane.b32.xlu0 %v2739, 32
      %v2863 = vpop.permute.xlu0 %2862
      %2864 = vrot.lane.b32.xlu0 %v2753, 32
      %v2865 = vpop.permute.xlu0 %2864
      %2866 = vrot.lane.b32.xlu0 %v2763, 32
      %v2867 = vpop.permute.xlu0 %2866
      %2868 = vrot.lane.b32.xlu0 %v2777, 32
      %v2869 = vpop.permute.xlu0 %2868
      %2870 = vrot.lane.b32.xlu0 %v2787, 32
      %v2871 = vpop.permute.xlu0 %2870
      %2872 = vrot.lane.b32.xlu0 %v2801, 32
      %v2873 = vpop.permute.xlu0 %2872
      %2874 = vrot.lane.b32.xlu0 %v2811, 32
      %v2875 = vpop.permute.xlu0 %2874
      %vm2908 = vcmask 322816
      %2909 = vst.msk [vmem:[#allocation3] sm:$0xf] %vm2908, %v2813
      %2910 = vst.msk [vmem:[#allocation3 + $0x4] sm:$0xf] %vm2908, %v2815
      %2911 = vst.msk [vmem:[#allocation3 + $0x8] sm:$0xf] %vm2908, %v2817
      %2912 = vst.msk [vmem:[#allocation3 + $0xc] sm:$0xf] %vm2908, %v2819
      %2913 = vst.msk [vmem:[#allocation3 + $0x10] sm:$0xf] %vm2908, %v2821
      %2914 = vst.msk [vmem:[#allocation3 + $0x14] sm:$0xf] %vm2908, %v2823
      %2915 = vst.msk [vmem:[#allocation3 + $0x18] sm:$0xf] %vm2908, %v2825
      %2916 = vst.msk [vmem:[#allocation3 + $0x1c] sm:$0xf] %vm2908, %v2827
      %2917 = vst.msk [vmem:[#allocation3 + $0x20] sm:$0xf] %vm2908, %v2829
      %2918 = vst.msk [vmem:[#allocation3 + $0x24] sm:$0xf] %vm2908, %v2831
      %2919 = vst.msk [vmem:[#allocation3 + $0x28] sm:$0xf] %vm2908, %v2833
      %2920 = vst.msk [vmem:[#allocation3 + $0x2c] sm:$0xf] %vm2908, %v2835
      %2921 = vst.msk [vmem:[#allocation3 + $0x30] sm:$0xf] %vm2908, %v2837
      %2922 = vst.msk [vmem:[#allocation3 + $0x34] sm:$0xf] %vm2908, %v2839
      %2923 = vst.msk [vmem:[#allocation3 + $0x38] sm:$0xf] %vm2908, %v2841
      %2924 = vst.msk [vmem:[#allocation3 + $0x3c] sm:$0xf] %vm2908, %v2843
      %2925 = vst.msk [vmem:[#allocation3 + $0x40] sm:$0xf] %vm2908, %v2845
      %2926 = vst.msk [vmem:[#allocation3 + $0x44] sm:$0xf] %vm2908, %v2847
      %2927 = vst.msk [vmem:[#allocation3 + $0x48] sm:$0xf] %vm2908, %v2849
      %2928 = vst.msk [vmem:[#allocation3 + $0x4c] sm:$0xf] %vm2908, %v2851
      %2929 = vst.msk [vmem:[#allocation3 + $0x50] sm:$0xf] %vm2908, %v2853
      %2930 = vst.msk [vmem:[#allocation3 + $0x54] sm:$0xf] %vm2908, %v2855
      %2931 = vst.msk [vmem:[#allocation3 + $0x58] sm:$0xf] %vm2908, %v2857
      %2932 = vst.msk [vmem:[#allocation3 + $0x5c] sm:$0xf] %vm2908, %v2859
      %2933 = vst.msk [vmem:[#allocation3 + $0x60] sm:$0xf] %vm2908, %v2861
      %2934 = vst.msk [vmem:[#allocation3 + $0x64] sm:$0xf] %vm2908, %v2863
      %2935 = vst.msk [vmem:[#allocation3 + $0x68] sm:$0xf] %vm2908, %v2865
      %2936 = vst.msk [vmem:[#allocation3 + $0x6c] sm:$0xf] %vm2908, %v2867
      %2937 = vst.msk [vmem:[#allocation3 + $0x70] sm:$0xf] %vm2908, %v2869
      %2938 = vst.msk [vmem:[#allocation3 + $0x74] sm:$0xf] %vm2908, %v2871
      %2939 = vst.msk [vmem:[#allocation3 + $0x78] sm:$0xf] %vm2908, %v2873
      %2940 = vst.msk [vmem:[#allocation3 + $0x7c] sm:$0xf] %vm2908, %v2875
      %v2941 = vld [vmem:[%s1161] sm:$0xe]
      %v2942 = vld [vmem:[%s1161 + $0x4] sm:$0xf]
      %v2943 = vld [vmem:[%s1161 + $0x8] sm:$0x1]
      %v2944 = vld [vmem:[%s1161 + $0xc] sm:$0xe]
      %v2945 = vld [vmem:[%s1161 + $0x10] sm:$0xf]
      %v2946 = vld [vmem:[%s1161 + $0x14] sm:$0x1]
      %v2947 = vld [vmem:[%s1161 + $0x18] sm:$0xe]
      %v2948 = vld [vmem:[%s1161 + $0x1c] sm:$0xf]
      %v2949 = vld [vmem:[%s1161 + $0x20] sm:$0x1]
      %v2950 = vld [vmem:[%s1161 + $0x24] sm:$0xe]
      %v2951 = vld [vmem:[%s1161 + $0x28] sm:$0xf]
      %v2952 = vld [vmem:[%s1161 + $0x2c] sm:$0x1]
      %v2953 = vld [vmem:[%s1161 + $0x30] sm:$0xe]
      %v2954 = vld [vmem:[%s1161 + $0x34] sm:$0xf]
      %v2955 = vld [vmem:[%s1161 + $0x38] sm:$0x1]
      %v2956 = vld [vmem:[%s1161 + $0x3c] sm:$0xe]
      %v2957 = vld [vmem:[%s1161 + $0x40] sm:$0xf]
      %v2958 = vld [vmem:[%s1161 + $0x44] sm:$0x1]
      %v2959 = vld [vmem:[%s1161 + $0x48] sm:$0xe]
      %v2960 = vld [vmem:[%s1161 + $0x4c] sm:$0xf]
      %v2961 = vld [vmem:[%s1161 + $0x50] sm:$0x1]
      %v2962 = vld [vmem:[%s1161 + $0x54] sm:$0xe]
      %v2963 = vld [vmem:[%s1161 + $0x58] sm:$0xf]
      %v2964 = vld [vmem:[%s1161 + $0x5c] sm:$0x1]
      %v2965 = vld [vmem:[%s1161 + $0x60] sm:$0xe]
      %v2966 = vld [vmem:[%s1161 + $0x64] sm:$0xf]
      %v2967 = vld [vmem:[%s1161 + $0x68] sm:$0x1]
      %v2968 = vld [vmem:[%s1161 + $0x6c] sm:$0xe]
      %v2969 = vld [vmem:[%s1161 + $0x70] sm:$0xf]
      %v2970 = vld [vmem:[%s1161 + $0x74] sm:$0x1]
      %v2971 = vld [vmem:[%s1161 + $0x78] sm:$0xe]
      %v2972 = vld [vmem:[%s1161 + $0x7c] sm:$0xf]
      %v2973 = vld [vmem:[%s1161 + $0x80] sm:$0x1]
      %v2974 = vld [vmem:[%s1161 + $0x84] sm:$0xe]
      %v2975 = vld [vmem:[%s1161 + $0x88] sm:$0xf]
      %v2976 = vld [vmem:[%s1161 + $0x8c] sm:$0x1]
      %v2977 = vld [vmem:[%s1161 + $0x90] sm:$0xe]
      %v2978 = vld [vmem:[%s1161 + $0x94] sm:$0xf]
      %v2979 = vld [vmem:[%s1161 + $0x98] sm:$0x1]
      %v2980 = vld [vmem:[%s1161 + $0x9c] sm:$0xe]
      %v2981 = vld [vmem:[%s1161 + $0xa0] sm:$0xf]
      %v2982 = vld [vmem:[%s1161 + $0xa4] sm:$0x1]
      %v2983 = vld [vmem:[%s1161 + $0xa8] sm:$0xe]
      %v2984 = vld [vmem:[%s1161 + $0xac] sm:$0xf]
      %v2985 = vld [vmem:[%s1161 + $0xb0] sm:$0x1]
      %v2986 = vld [vmem:[%s1161 + $0xb4] sm:$0xe]
      %v2987 = vld [vmem:[%s1161 + $0xb8] sm:$0xf]
      %v2988 = vld [vmem:[%s1161 + $0xbc] sm:$0x1]
      %v3037 = vrot.slane %v2941, 5
      %v3038 = vrot.slane %v3037, 4
      %v3039 = vrot.slane %v2942, 5
      %v3040 = vsel %vm1945, %v3038, %v3039
      %v3041 = vrot.slane %v3039, 4
      %v3042 = vrot.slane %v2943, 5
      %v3043 = vsel %vm1945, %v3041, %v3042
      %v3044 = vrot.slane %v2944, 5
      %v3045 = vrot.slane %v3044, 4
      %v3046 = vrot.slane %v2945, 5
      %v3047 = vsel %vm1945, %v3045, %v3046
      %v3048 = vrot.slane %v3046, 4
      %v3049 = vrot.slane %v2946, 5
      %v3050 = vsel %vm1945, %v3048, %v3049
      %v3051 = vrot.slane %v2947, 5
      %v3052 = vrot.slane %v3051, 4
      %v3053 = vrot.slane %v2948, 5
      %v3054 = vsel %vm1945, %v3052, %v3053
      %v3055 = vrot.slane %v3053, 4
      %v3056 = vrot.slane %v2949, 5
      %v3057 = vsel %vm1945, %v3055, %v3056
      %v3058 = vrot.slane %v2950, 5
      %v3059 = vrot.slane %v3058, 4
      %v3060 = vrot.slane %v2951, 5
      %v3061 = vsel %vm1945, %v3059, %v3060
      %v3062 = vrot.slane %v3060, 4
      %v3063 = vrot.slane %v2952, 5
      %v3064 = vsel %vm1945, %v3062, %v3063
      %v3065 = vrot.slane %v2953, 5
      %v3066 = vrot.slane %v3065, 4
      %v3067 = vrot.slane %v2954, 5
      %v3068 = vsel %vm1945, %v3066, %v3067
      %v3069 = vrot.slane %v3067, 4
      %v3070 = vrot.slane %v2955, 5
      %v3071 = vsel %vm1945, %v3069, %v3070
      %v3072 = vrot.slane %v2956, 5
      %v3073 = vrot.slane %v3072, 4
      %v3074 = vrot.slane %v2957, 5
      %v3075 = vsel %vm1945, %v3073, %v3074
      %v3076 = vrot.slane %v3074, 4
      %v3077 = vrot.slane %v2958, 5
      %v3078 = vsel %vm1945, %v3076, %v3077
      %v3079 = vrot.slane %v2959, 5
      %v3080 = vrot.slane %v3079, 4
      %v3081 = vrot.slane %v2960, 5
      %v3082 = vsel %vm1945, %v3080, %v3081
      %v3083 = vrot.slane %v3081, 4
      %v3084 = vrot.slane %v2961, 5
      %v3085 = vsel %vm1945, %v3083, %v3084
      %v3086 = vrot.slane %v2962, 5
      %v3087 = vrot.slane %v3086, 4
      %v3088 = vrot.slane %v2963, 5
      %v3089 = vsel %vm1945, %v3087, %v3088
      %v3090 = vrot.slane %v3088, 4
      %v3091 = vrot.slane %v2964, 5
      %v3092 = vsel %vm1945, %v3090, %v3091
      %v3093 = vrot.slane %v2965, 5
      %v3094 = vrot.slane %v3093, 4
      %v3095 = vrot.slane %v2966, 5
      %v3096 = vsel %vm1945, %v3094, %v3095
      %v3097 = vrot.slane %v3095, 4
      %v3098 = vrot.slane %v2967, 5
      %v3099 = vsel %vm1945, %v3097, %v3098
      %v3100 = vrot.slane %v2968, 5
      %v3101 = vrot.slane %v3100, 4
      %v3102 = vrot.slane %v2969, 5
      %v3103 = vsel %vm1945, %v3101, %v3102
      %v3104 = vrot.slane %v3102, 4
      %v3105 = vrot.slane %v2970, 5
      %v3106 = vsel %vm1945, %v3104, %v3105
      %v3107 = vrot.slane %v2971, 5
      %v3108 = vrot.slane %v3107, 4
      %v3109 = vrot.slane %v2972, 5
      %v3110 = vsel %vm1945, %v3108, %v3109
      %v3111 = vrot.slane %v3109, 4
      %v3112 = vrot.slane %v2973, 5
      %v3113 = vsel %vm1945, %v3111, %v3112
      %v3114 = vrot.slane %v2974, 5
      %v3115 = vrot.slane %v3114, 4
      %v3116 = vrot.slane %v2975, 5
      %v3117 = vsel %vm1945, %v3115, %v3116
      %v3118 = vrot.slane %v3116, 4
      %v3119 = vrot.slane %v2976, 5
      %v3120 = vsel %vm1945, %v3118, %v3119
      %v3121 = vrot.slane %v2977, 5
      %v3122 = vrot.slane %v3121, 4
      %v3123 = vrot.slane %v2978, 5
      %v3124 = vsel %vm1945, %v3122, %v3123
      %v3125 = vrot.slane %v3123, 4
      %v3126 = vrot.slane %v2979, 5
      %v3127 = vsel %vm1945, %v3125, %v3126
      %v3128 = vrot.slane %v2980, 5
      %v3129 = vrot.slane %v3128, 4
      %v3130 = vrot.slane %v2981, 5
      %v3131 = vsel %vm1945, %v3129, %v3130
      %v3132 = vrot.slane %v3130, 4
      %v3133 = vrot.slane %v2982, 5
      %v3134 = vsel %vm1945, %v3132, %v3133
      %v3135 = vrot.slane %v2983, 5
      %v3136 = vrot.slane %v3135, 4
      %v3137 = vrot.slane %v2984, 5
      %v3138 = vsel %vm1945, %v3136, %v3137
      %v3139 = vrot.slane %v3137, 4
      %v3140 = vrot.slane %v2985, 5
      %v3141 = vsel %vm1945, %v3139, %v3140
      %v3142 = vrot.slane %v2986, 5
      %v3143 = vrot.slane %v3142, 4
      %v3144 = vrot.slane %v2987, 5
      %v3145 = vsel %vm1945, %v3143, %v3144
      %v3146 = vrot.slane %v3144, 4
      %v3147 = vrot.slane %v2988, 5
      %v3148 = vsel %vm1945, %v3146, %v3147
      %3149 = vrot.lane.b32.xlu0 %v3040, 40
      %v3150 = vpop.permute.xlu0 %3149
      %3151 = vrot.lane.b32.xlu0 %v3043, 40
      %v3152 = vpop.permute.xlu0 %3151
      %3153 = vrot.lane.b32.xlu0 %v3047, 40
      %v3154 = vpop.permute.xlu0 %3153
      %3155 = vrot.lane.b32.xlu0 %v3050, 40
      %v3156 = vpop.permute.xlu0 %3155
      %3157 = vrot.lane.b32.xlu0 %v3054, 40
      %v3158 = vpop.permute.xlu0 %3157
      %3159 = vrot.lane.b32.xlu0 %v3057, 40
      %v3160 = vpop.permute.xlu0 %3159
      %3161 = vrot.lane.b32.xlu0 %v3061, 40
      %v3162 = vpop.permute.xlu0 %3161
      %3163 = vrot.lane.b32.xlu0 %v3064, 40
      %v3164 = vpop.permute.xlu0 %3163
      %3165 = vrot.lane.b32.xlu0 %v3068, 40
      %v3166 = vpop.permute.xlu0 %3165
      %3167 = vrot.lane.b32.xlu0 %v3071, 40
      %v3168 = vpop.permute.xlu0 %3167
      %3169 = vrot.lane.b32.xlu0 %v3075, 40
      %v3170 = vpop.permute.xlu0 %3169
      %3171 = vrot.lane.b32.xlu0 %v3078, 40
      %v3172 = vpop.permute.xlu0 %3171
      %3173 = vrot.lane.b32.xlu0 %v3082, 40
      %v3174 = vpop.permute.xlu0 %3173
      %3175 = vrot.lane.b32.xlu0 %v3085, 40
      %v3176 = vpop.permute.xlu0 %3175
      %3177 = vrot.lane.b32.xlu0 %v3089, 40
      %v3178 = vpop.permute.xlu0 %3177
      %3179 = vrot.lane.b32.xlu0 %v3092, 40
      %v3180 = vpop.permute.xlu0 %3179
      %3181 = vrot.lane.b32.xlu0 %v3096, 40
      %v3182 = vpop.permute.xlu0 %3181
      %3183 = vrot.lane.b32.xlu0 %v3099, 40
      %v3184 = vpop.permute.xlu0 %3183
      %3185 = vrot.lane.b32.xlu0 %v3103, 40
      %v3186 = vpop.permute.xlu0 %3185
      %3187 = vrot.lane.b32.xlu0 %v3106, 40
      %v3188 = vpop.permute.xlu0 %3187
      %3189 = vrot.lane.b32.xlu0 %v3110, 40
      %v3190 = vpop.permute.xlu0 %3189
      %3191 = vrot.lane.b32.xlu0 %v3113, 40
      %v3192 = vpop.permute.xlu0 %3191
      %3193 = vrot.lane.b32.xlu0 %v3117, 40
      %v3194 = vpop.permute.xlu0 %3193
      %3195 = vrot.lane.b32.xlu0 %v3120, 40
      %v3196 = vpop.permute.xlu0 %3195
      %3197 = vrot.lane.b32.xlu0 %v3124, 40
      %v3198 = vpop.permute.xlu0 %3197
      %3199 = vrot.lane.b32.xlu0 %v3127, 40
      %v3200 = vpop.permute.xlu0 %3199
      %3201 = vrot.lane.b32.xlu0 %v3131, 40
      %v3202 = vpop.permute.xlu0 %3201
      %3203 = vrot.lane.b32.xlu0 %v3134, 40
      %v3204 = vpop.permute.xlu0 %3203
      %3205 = vrot.lane.b32.xlu0 %v3138, 40
      %v3206 = vpop.permute.xlu0 %3205
      %3207 = vrot.lane.b32.xlu0 %v3141, 40
      %v3208 = vpop.permute.xlu0 %3207
      %3209 = vrot.lane.b32.xlu0 %v3145, 40
      %v3210 = vpop.permute.xlu0 %3209
      %3211 = vrot.lane.b32.xlu0 %v3148, 40
      %v3212 = vpop.permute.xlu0 %3211
      %vm3245 = vcmask 388416
      %3246 = vst.msk [vmem:[#allocation3] sm:$0xf] %vm3245, %v3150
      %3247 = vst.msk [vmem:[#allocation3 + $0x4] sm:$0xf] %vm3245, %v3152
      %3248 = vst.msk [vmem:[#allocation3 + $0x8] sm:$0xf] %vm3245, %v3154
      %3249 = vst.msk [vmem:[#allocation3 + $0xc] sm:$0xf] %vm3245, %v3156
      %3250 = vst.msk [vmem:[#allocation3 + $0x10] sm:$0xf] %vm3245, %v3158
      %3251 = vst.msk [vmem:[#allocation3 + $0x14] sm:$0xf] %vm3245, %v3160
      %3252 = vst.msk [vmem:[#allocation3 + $0x18] sm:$0xf] %vm3245, %v3162
      %3253 = vst.msk [vmem:[#allocation3 + $0x1c] sm:$0xf] %vm3245, %v3164
      %3254 = vst.msk [vmem:[#allocation3 + $0x20] sm:$0xf] %vm3245, %v3166
      %3255 = vst.msk [vmem:[#allocation3 + $0x24] sm:$0xf] %vm3245, %v3168
      %3256 = vst.msk [vmem:[#allocation3 + $0x28] sm:$0xf] %vm3245, %v3170
      %3257 = vst.msk [vmem:[#allocation3 + $0x2c] sm:$0xf] %vm3245, %v3172
      %3258 = vst.msk [vmem:[#allocation3 + $0x30] sm:$0xf] %vm3245, %v3174
      %3259 = vst.msk [vmem:[#allocation3 + $0x34] sm:$0xf] %vm3245, %v3176
      %3260 = vst.msk [vmem:[#allocation3 + $0x38] sm:$0xf] %vm3245, %v3178
      %3261 = vst.msk [vmem:[#allocation3 + $0x3c] sm:$0xf] %vm3245, %v3180
      %3262 = vst.msk [vmem:[#allocation3 + $0x40] sm:$0xf] %vm3245, %v3182
      %3263 = vst.msk [vmem:[#allocation3 + $0x44] sm:$0xf] %vm3245, %v3184
      %3264 = vst.msk [vmem:[#allocation3 + $0x48] sm:$0xf] %vm3245, %v3186
      %3265 = vst.msk [vmem:[#allocation3 + $0x4c] sm:$0xf] %vm3245, %v3188
      %3266 = vst.msk [vmem:[#allocation3 + $0x50] sm:$0xf] %vm3245, %v3190
      %3267 = vst.msk [vmem:[#allocation3 + $0x54] sm:$0xf] %vm3245, %v3192
      %3268 = vst.msk [vmem:[#allocation3 + $0x58] sm:$0xf] %vm3245, %v3194
      %3269 = vst.msk [vmem:[#allocation3 + $0x5c] sm:$0xf] %vm3245, %v3196
      %3270 = vst.msk [vmem:[#allocation3 + $0x60] sm:$0xf] %vm3245, %v3198
      %3271 = vst.msk [vmem:[#allocation3 + $0x64] sm:$0xf] %vm3245, %v3200
      %3272 = vst.msk [vmem:[#allocation3 + $0x68] sm:$0xf] %vm3245, %v3202
      %3273 = vst.msk [vmem:[#allocation3 + $0x6c] sm:$0xf] %vm3245, %v3204
      %3274 = vst.msk [vmem:[#allocation3 + $0x70] sm:$0xf] %vm3245, %v3206
      %3275 = vst.msk [vmem:[#allocation3 + $0x74] sm:$0xf] %vm3245, %v3208
      %3276 = vst.msk [vmem:[#allocation3 + $0x78] sm:$0xf] %vm3245, %v3210
      %3277 = vst.msk [vmem:[#allocation3 + $0x7c] sm:$0xf] %vm3245, %v3212
      %s3278 = scalar_lea.vmem [#allocation2], 24
      %v3279 = vld [vmem:[%s3278] sm:$0xf]
      %v3280 = vld [vmem:[%s3278 + $0x4] sm:$0xf]
      %v3281 = vld [vmem:[%s3278 + $0xc] sm:$0xf]
      %v3282 = vld [vmem:[%s3278 + $0x10] sm:$0xf]
      %v3283 = vld [vmem:[%s3278 + $0x18] sm:$0xf]
      %v3284 = vld [vmem:[%s3278 + $0x1c] sm:$0xf]
      %v3285 = vld [vmem:[%s3278 + $0x24] sm:$0xf]
      %v3286 = vld [vmem:[%s3278 + $0x28] sm:$0xf]
      %v3287 = vld [vmem:[%s3278 + $0x30] sm:$0xf]
      %v3288 = vld [vmem:[%s3278 + $0x34] sm:$0xf]
      %v3289 = vld [vmem:[%s3278 + $0x3c] sm:$0xf]
      %v3290 = vld [vmem:[%s3278 + $0x40] sm:$0xf]
      %v3291 = vld [vmem:[%s3278 + $0x48] sm:$0xf]
      %v3292 = vld [vmem:[%s3278 + $0x4c] sm:$0xf]
      %v3293 = vld [vmem:[%s3278 + $0x54] sm:$0xf]
      %v3294 = vld [vmem:[%s3278 + $0x58] sm:$0xf]
      %v3295 = vld [vmem:[%s3278 + $0x60] sm:$0xf]
      %v3296 = vld [vmem:[%s3278 + $0x64] sm:$0xf]
      %v3297 = vld [vmem:[%s3278 + $0x6c] sm:$0xf]
      %v3298 = vld [vmem:[%s3278 + $0x70] sm:$0xf]
      %v3299 = vld [vmem:[%s3278 + $0x78] sm:$0xf]
      %v3300 = vld [vmem:[%s3278 + $0x7c] sm:$0xf]
      %v3301 = vld [vmem:[%s3278 + $0x84] sm:$0xf]
      %v3302 = vld [vmem:[%s3278 + $0x88] sm:$0xf]
      %v3303 = vld [vmem:[%s3278 + $0x90] sm:$0xf]
      %v3304 = vld [vmem:[%s3278 + $0x94] sm:$0xf]
      %v3305 = vld [vmem:[%s3278 + $0x9c] sm:$0xf]
      %v3306 = vld [vmem:[%s3278 + $0xa0] sm:$0xf]
      %v3307 = vld [vmem:[%s3278 + $0xa8] sm:$0xf]
      %v3308 = vld [vmem:[%s3278 + $0xac] sm:$0xf]
      %v3309 = vld [vmem:[%s3278 + $0xb4] sm:$0xf]
      %v3310 = vld [vmem:[%s3278 + $0xb8] sm:$0xf]
      %3343 = vrot.lane.b32.xlu0 %v3279, 48
      %v3344 = vpop.permute.xlu0 %3343
      %3345 = vrot.lane.b32.xlu0 %v3280, 48
      %v3346 = vpop.permute.xlu0 %3345
      %3347 = vrot.lane.b32.xlu0 %v3281, 48
      %v3348 = vpop.permute.xlu0 %3347
      %3349 = vrot.lane.b32.xlu0 %v3282, 48
      %v3350 = vpop.permute.xlu0 %3349
      %3351 = vrot.lane.b32.xlu0 %v3283, 48
      %v3352 = vpop.permute.xlu0 %3351
      %3353 = vrot.lane.b32.xlu0 %v3284, 48
      %v3354 = vpop.permute.xlu0 %3353
      %3355 = vrot.lane.b32.xlu0 %v3285, 48
      %v3356 = vpop.permute.xlu0 %3355
      %3357 = vrot.lane.b32.xlu0 %v3286, 48
      %v3358 = vpop.permute.xlu0 %3357
      %3359 = vrot.lane.b32.xlu0 %v3287, 48
      %v3360 = vpop.permute.xlu0 %3359
      %3361 = vrot.lane.b32.xlu0 %v3288, 48
      %v3362 = vpop.permute.xlu0 %3361
      %3363 = vrot.lane.b32.xlu0 %v3289, 48
      %v3364 = vpop.permute.xlu0 %3363
      %3365 = vrot.lane.b32.xlu0 %v3290, 48
      %v3366 = vpop.permute.xlu0 %3365
      %3367 = vrot.lane.b32.xlu0 %v3291, 48
      %v3368 = vpop.permute.xlu0 %3367
      %3369 = vrot.lane.b32.xlu0 %v3292, 48
      %v3370 = vpop.permute.xlu0 %3369
      %3371 = vrot.lane.b32.xlu0 %v3293, 48
      %v3372 = vpop.permute.xlu0 %3371
      %3373 = vrot.lane.b32.xlu0 %v3294, 48
      %v3374 = vpop.permute.xlu0 %3373
      %3375 = vrot.lane.b32.xlu0 %v3295, 48
      %v3376 = vpop.permute.xlu0 %3375
      %3377 = vrot.lane.b32.xlu0 %v3296, 48
      %v3378 = vpop.permute.xlu0 %3377
      %3379 = vrot.lane.b32.xlu0 %v3297, 48
      %v3380 = vpop.permute.xlu0 %3379
      %3381 = vrot.lane.b32.xlu0 %v3298, 48
      %v3382 = vpop.permute.xlu0 %3381
      %3383 = vrot.lane.b32.xlu0 %v3299, 48
      %v3384 = vpop.permute.xlu0 %3383
      %3385 = vrot.lane.b32.xlu0 %v3300, 48
      %v3386 = vpop.permute.xlu0 %3385
      %3387 = vrot.lane.b32.xlu0 %v3301, 48
      %v3388 = vpop.permute.xlu0 %3387
      %3389 = vrot.lane.b32.xlu0 %v3302, 48
      %v3390 = vpop.permute.xlu0 %3389
      %3391 = vrot.lane.b32.xlu0 %v3303, 48
      %v3392 = vpop.permute.xlu0 %3391
      %3393 = vrot.lane.b32.xlu0 %v3304, 48
      %v3394 = vpop.permute.xlu0 %3393
      %3395 = vrot.lane.b32.xlu0 %v3305, 48
      %v3396 = vpop.permute.xlu0 %3395
      %3397 = vrot.lane.b32.xlu0 %v3306, 48
      %v3398 = vpop.permute.xlu0 %3397
      %3399 = vrot.lane.b32.xlu0 %v3307, 48
      %v3400 = vpop.permute.xlu0 %3399
      %3401 = vrot.lane.b32.xlu0 %v3308, 48
      %v3402 = vpop.permute.xlu0 %3401
      %3403 = vrot.lane.b32.xlu0 %v3309, 48
      %v3404 = vpop.permute.xlu0 %3403
      %3405 = vrot.lane.b32.xlu0 %v3310, 48
      %v3406 = vpop.permute.xlu0 %3405
      %vm3439 = vcmask 454016
      %3440 = vst.msk [vmem:[#allocation3] sm:$0xf] %vm3439, %v3344
      %3441 = vst.msk [vmem:[#allocation3 + $0x4] sm:$0xf] %vm3439, %v3346
      %3442 = vst.msk [vmem:[#allocation3 + $0x8] sm:$0xf] %vm3439, %v3348
      %3443 = vst.msk [vmem:[#allocation3 + $0xc] sm:$0xf] %vm3439, %v3350
      %3444 = vst.msk [vmem:[#allocation3 + $0x10] sm:$0xf] %vm3439, %v3352
      %3445 = vst.msk [vmem:[#allocation3 + $0x14] sm:$0xf] %vm3439, %v3354
      %3446 = vst.msk [vmem:[#allocation3 + $0x18] sm:$0xf] %vm3439, %v3356
      %3447 = vst.msk [vmem:[#allocation3 + $0x1c] sm:$0xf] %vm3439, %v3358
      %3448 = vst.msk [vmem:[#allocation3 + $0x20] sm:$0xf] %vm3439, %v3360
      %3449 = vst.msk [vmem:[#allocation3 + $0x24] sm:$0xf] %vm3439, %v3362
      %3450 = vst.msk [vmem:[#allocation3 + $0x28] sm:$0xf] %vm3439, %v3364
      %3451 = vst.msk [vmem:[#allocation3 + $0x2c] sm:$0xf] %vm3439, %v3366
      %3452 = vst.msk [vmem:[#allocation3 + $0x30] sm:$0xf] %vm3439, %v3368
      %3453 = vst.msk [vmem:[#allocation3 + $0x34] sm:$0xf] %vm3439, %v3370
      %3454 = vst.msk [vmem:[#allocation3 + $0x38] sm:$0xf] %vm3439, %v3372
      %3455 = vst.msk [vmem:[#allocation3 + $0x3c] sm:$0xf] %vm3439, %v3374
      %3456 = vst.msk [vmem:[#allocation3 + $0x40] sm:$0xf] %vm3439, %v3376
      %3457 = vst.msk [vmem:[#allocation3 + $0x44] sm:$0xf] %vm3439, %v3378
      %3458 = vst.msk [vmem:[#allocation3 + $0x48] sm:$0xf] %vm3439, %v3380
      %3459 = vst.msk [vmem:[#allocation3 + $0x4c] sm:$0xf] %vm3439, %v3382
      %3460 = vst.msk [vmem:[#allocation3 + $0x50] sm:$0xf] %vm3439, %v3384
      %3461 = vst.msk [vmem:[#allocation3 + $0x54] sm:$0xf] %vm3439, %v3386
      %3462 = vst.msk [vmem:[#allocation3 + $0x58] sm:$0xf] %vm3439, %v3388
      %3463 = vst.msk [vmem:[#allocation3 + $0x5c] sm:$0xf] %vm3439, %v3390
      %3464 = vst.msk [vmem:[#allocation3 + $0x60] sm:$0xf] %vm3439, %v3392
      %3465 = vst.msk [vmem:[#allocation3 + $0x64] sm:$0xf] %vm3439, %v3394
      %3466 = vst.msk [vmem:[#allocation3 + $0x68] sm:$0xf] %vm3439, %v3396
      %3467 = vst.msk [vmem:[#allocation3 + $0x6c] sm:$0xf] %vm3439, %v3398
      %3468 = vst.msk [vmem:[#allocation3 + $0x70] sm:$0xf] %vm3439, %v3400
      %3469 = vst.msk [vmem:[#allocation3 + $0x74] sm:$0xf] %vm3439, %v3402
      %3470 = vst.msk [vmem:[#allocation3 + $0x78] sm:$0xf] %vm3439, %v3404
      %3471 = vst.msk [vmem:[#allocation3 + $0x7c] sm:$0xf] %vm3439, %v3406
      %v3472 = vld [vmem:[%s3278] sm:$0xf]
      %v3473 = vld [vmem:[%s3278 + $0x4] sm:$0xf]
      %v3474 = vld [vmem:[%s3278 + $0x8] sm:$0x1]
      %v3475 = vld [vmem:[%s3278 + $0xc] sm:$0xf]
      %v3476 = vld [vmem:[%s3278 + $0x10] sm:$0xf]
      %v3477 = vld [vmem:[%s3278 + $0x14] sm:$0x1]
      %v3478 = vld [vmem:[%s3278 + $0x18] sm:$0xf]
      %v3479 = vld [vmem:[%s3278 + $0x1c] sm:$0xf]
      %v3480 = vld [vmem:[%s3278 + $0x20] sm:$0x1]
      %v3481 = vld [vmem:[%s3278 + $0x24] sm:$0xf]
      %v3482 = vld [vmem:[%s3278 + $0x28] sm:$0xf]
      %v3483 = vld [vmem:[%s3278 + $0x2c] sm:$0x1]
      %v3484 = vld [vmem:[%s3278 + $0x30] sm:$0xf]
      %v3485 = vld [vmem:[%s3278 + $0x34] sm:$0xf]
      %v3486 = vld [vmem:[%s3278 + $0x38] sm:$0x1]
      %v3487 = vld [vmem:[%s3278 + $0x3c] sm:$0xf]
      %v3488 = vld [vmem:[%s3278 + $0x40] sm:$0xf]
      %v3489 = vld [vmem:[%s3278 + $0x44] sm:$0x1]
      %v3490 = vld [vmem:[%s3278 + $0x48] sm:$0xf]
      %v3491 = vld [vmem:[%s3278 + $0x4c] sm:$0xf]
      %v3492 = vld [vmem:[%s3278 + $0x50] sm:$0x1]
      %v3493 = vld [vmem:[%s3278 + $0x54] sm:$0xf]
      %v3494 = vld [vmem:[%s3278 + $0x58] sm:$0xf]
      %v3495 = vld [vmem:[%s3278 + $0x5c] sm:$0x1]
      %v3496 = vld [vmem:[%s3278 + $0x60] sm:$0xf]
      %v3497 = vld [vmem:[%s3278 + $0x64] sm:$0xf]
      %v3498 = vld [vmem:[%s3278 + $0x68] sm:$0x1]
      %v3499 = vld [vmem:[%s3278 + $0x6c] sm:$0xf]
      %v3500 = vld [vmem:[%s3278 + $0x70] sm:$0xf]
      %v3501 = vld [vmem:[%s3278 + $0x74] sm:$0x1]
      %v3502 = vld [vmem:[%s3278 + $0x78] sm:$0xf]
      %v3503 = vld [vmem:[%s3278 + $0x7c] sm:$0xf]
      %v3504 = vld [vmem:[%s3278 + $0x80] sm:$0x1]
      %v3505 = vld [vmem:[%s3278 + $0x84] sm:$0xf]
      %v3506 = vld [vmem:[%s3278 + $0x88] sm:$0xf]
      %v3507 = vld [vmem:[%s3278 + $0x8c] sm:$0x1]
      %v3508 = vld [vmem:[%s3278 + $0x90] sm:$0xf]
      %v3509 = vld [vmem:[%s3278 + $0x94] sm:$0xf]
      %v3510 = vld [vmem:[%s3278 + $0x98] sm:$0x1]
      %v3511 = vld [vmem:[%s3278 + $0x9c] sm:$0xf]
      %v3512 = vld [vmem:[%s3278 + $0xa0] sm:$0xf]
      %v3513 = vld [vmem:[%s3278 + $0xa4] sm:$0x1]
      %v3514 = vld [vmem:[%s3278 + $0xa8] sm:$0xf]
      %v3515 = vld [vmem:[%s3278 + $0xac] sm:$0xf]
      %v3516 = vld [vmem:[%s3278 + $0xb0] sm:$0x1]
      %v3517 = vld [vmem:[%s3278 + $0xb4] sm:$0xf]
      %v3518 = vld [vmem:[%s3278 + $0xb8] sm:$0xf]
      %v3519 = vld [vmem:[%s3278 + $0xbc] sm:$0x1]
      %v3521 = vshrl.u32 %v3472, 16
      %v3523 = vrot.slane %v3521, 4
      %v3524 = vshll.u32 %v3472, 16
      %v3526 = vrot.slane %v3524, 5
      %v3527 = vor.u32 %v3523, %v3526
      %v3528 = vrot.slane %v3527, 4
      %v3530 = vshll.u32 %v3473, 16
      %v3532 = vrot.slane %v3530, 5
      %v3533 = vsel %vm1333, %v3528, %v3532
      %v3534 = vshrl.u32 %v3473, 16
      %v3536 = vrot.slane %v3534, 4
      %v3537 = vor.u32 %v3536, %v3532
      %v3538 = vrot.slane %v3537, 4
      %v3540 = vshll.u32 %v3474, 16
      %v3542 = vrot.slane %v3540, 5
      %v3543 = vsel %vm1333, %v3538, %v3542
      %v3545 = vshrl.u32 %v3475, 16
      %v3547 = vrot.slane %v3545, 4
      %v3548 = vshll.u32 %v3475, 16
      %v3550 = vrot.slane %v3548, 5
      %v3551 = vor.u32 %v3547, %v3550
      %v3552 = vrot.slane %v3551, 4
      %v3554 = vshll.u32 %v3476, 16
      %v3556 = vrot.slane %v3554, 5
      %v3557 = vsel %vm1333, %v3552, %v3556
      %v3558 = vshrl.u32 %v3476, 16
      %v3560 = vrot.slane %v3558, 4
      %v3561 = vor.u32 %v3560, %v3556
      %v3562 = vrot.slane %v3561, 4
      %v3564 = vshll.u32 %v3477, 16
      %v3566 = vrot.slane %v3564, 5
      %v3567 = vsel %vm1333, %v3562, %v3566
      %v3569 = vshrl.u32 %v3478, 16
      %v3571 = vrot.slane %v3569, 4
      %v3572 = vshll.u32 %v3478, 16
      %v3574 = vrot.slane %v3572, 5
      %v3575 = vor.u32 %v3571, %v3574
      %v3576 = vrot.slane %v3575, 4
      %v3578 = vshll.u32 %v3479, 16
      %v3580 = vrot.slane %v3578, 5
      %v3581 = vsel %vm1333, %v3576, %v3580
      %v3582 = vshrl.u32 %v3479, 16
      %v3584 = vrot.slane %v3582, 4
      %v3585 = vor.u32 %v3584, %v3580
      %v3586 = vrot.slane %v3585, 4
      %v3588 = vshll.u32 %v3480, 16
      %v3590 = vrot.slane %v3588, 5
      %v3591 = vsel %vm1333, %v3586, %v3590
      %v3593 = vshrl.u32 %v3481, 16
      %v3595 = vrot.slane %v3593, 4
      %v3596 = vshll.u32 %v3481, 16
      %v3598 = vrot.slane %v3596, 5
      %v3599 = vor.u32 %v3595, %v3598
      %v3600 = vrot.slane %v3599, 4
      %v3602 = vshll.u32 %v3482, 16
      %v3604 = vrot.slane %v3602, 5
      %v3605 = vsel %vm1333, %v3600, %v3604
      %v3606 = vshrl.u32 %v3482, 16
      %v3608 = vrot.slane %v3606, 4
      %v3609 = vor.u32 %v3608, %v3604
      %v3610 = vrot.slane %v3609, 4
      %v3612 = vshll.u32 %v3483, 16
      %v3614 = vrot.slane %v3612, 5
      %v3615 = vsel %vm1333, %v3610, %v3614
      %v3617 = vshrl.u32 %v3484, 16
      %v3619 = vrot.slane %v3617, 4
      %v3620 = vshll.u32 %v3484, 16
      %v3622 = vrot.slane %v3620, 5
      %v3623 = vor.u32 %v3619, %v3622
      %v3624 = vrot.slane %v3623, 4
      %v3626 = vshll.u32 %v3485, 16
      %v3628 = vrot.slane %v3626, 5
      %v3629 = vsel %vm1333, %v3624, %v3628
      %v3630 = vshrl.u32 %v3485, 16
      %v3632 = vrot.slane %v3630, 4
      %v3633 = vor.u32 %v3632, %v3628
      %v3634 = vrot.slane %v3633, 4
      %v3636 = vshll.u32 %v3486, 16
      %v3638 = vrot.slane %v3636, 5
      %v3639 = vsel %vm1333, %v3634, %v3638
      %v3641 = vshrl.u32 %v3487, 16
      %v3643 = vrot.slane %v3641, 4
      %v3644 = vshll.u32 %v3487, 16
      %v3646 = vrot.slane %v3644, 5
      %v3647 = vor.u32 %v3643, %v3646
      %v3648 = vrot.slane %v3647, 4
      %v3650 = vshll.u32 %v3488, 16
      %v3652 = vrot.slane %v3650, 5
      %v3653 = vsel %vm1333, %v3648, %v3652
      %v3654 = vshrl.u32 %v3488, 16
      %v3656 = vrot.slane %v3654, 4
      %v3657 = vor.u32 %v3656, %v3652
      %v3658 = vrot.slane %v3657, 4
      %v3660 = vshll.u32 %v3489, 16
      %v3662 = vrot.slane %v3660, 5
      %v3663 = vsel %vm1333, %v3658, %v3662
      %v3665 = vshrl.u32 %v3490, 16
      %v3667 = vrot.slane %v3665, 4
      %v3668 = vshll.u32 %v3490, 16
      %v3670 = vrot.slane %v3668, 5
      %v3671 = vor.u32 %v3667, %v3670
      %v3672 = vrot.slane %v3671, 4
      %v3674 = vshll.u32 %v3491, 16
      %v3676 = vrot.slane %v3674, 5
      %v3677 = vsel %vm1333, %v3672, %v3676
      %v3678 = vshrl.u32 %v3491, 16
      %v3680 = vrot.slane %v3678, 4
      %v3681 = vor.u32 %v3680, %v3676
      %v3682 = vrot.slane %v3681, 4
      %v3684 = vshll.u32 %v3492, 16
      %v3686 = vrot.slane %v3684, 5
      %v3687 = vsel %vm1333, %v3682, %v3686
      %v3689 = vshrl.u32 %v3493, 16
      %v3691 = vrot.slane %v3689, 4
      %v3692 = vshll.u32 %v3493, 16
      %v3694 = vrot.slane %v3692, 5
      %v3695 = vor.u32 %v3691, %v3694
      %v3696 = vrot.slane %v3695, 4
      %v3698 = vshll.u32 %v3494, 16
      %v3700 = vrot.slane %v3698, 5
      %v3701 = vsel %vm1333, %v3696, %v3700
      %v3702 = vshrl.u32 %v3494, 16
      %v3704 = vrot.slane %v3702, 4
      %v3705 = vor.u32 %v3704, %v3700
      %v3706 = vrot.slane %v3705, 4
      %v3708 = vshll.u32 %v3495, 16
      %v3710 = vrot.slane %v3708, 5
      %v3711 = vsel %vm1333, %v3706, %v3710
      %v3713 = vshrl.u32 %v3496, 16
      %v3715 = vrot.slane %v3713, 4
      %v3716 = vshll.u32 %v3496, 16
      %v3718 = vrot.slane %v3716, 5
      %v3719 = vor.u32 %v3715, %v3718
      %v3720 = vrot.slane %v3719, 4
      %v3722 = vshll.u32 %v3497, 16
      %v3724 = vrot.slane %v3722, 5
      %v3725 = vsel %vm1333, %v3720, %v3724
      %v3726 = vshrl.u32 %v3497, 16
      %v3728 = vrot.slane %v3726, 4
      %v3729 = vor.u32 %v3728, %v3724
      %v3730 = vrot.slane %v3729, 4
      %v3732 = vshll.u32 %v3498, 16
      %v3734 = vrot.slane %v3732, 5
      %v3735 = vsel %vm1333, %v3730, %v3734
      %v3737 = vshrl.u32 %v3499, 16
      %v3739 = vrot.slane %v3737, 4
      %v3740 = vshll.u32 %v3499, 16
      %v3742 = vrot.slane %v3740, 5
      %v3743 = vor.u32 %v3739, %v3742
      %v3744 = vrot.slane %v3743, 4
      %v3746 = vshll.u32 %v3500, 16
      %v3748 = vrot.slane %v3746, 5
      %v3749 = vsel %vm1333, %v3744, %v3748
      %v3750 = vshrl.u32 %v3500, 16
      %v3752 = vrot.slane %v3750, 4
      %v3753 = vor.u32 %v3752, %v3748
      %v3754 = vrot.slane %v3753, 4
      %v3756 = vshll.u32 %v3501, 16
      %v3758 = vrot.slane %v3756, 5
      %v3759 = vsel %vm1333, %v3754, %v3758
      %v3761 = vshrl.u32 %v3502, 16
      %v3763 = vrot.slane %v3761, 4
      %v3764 = vshll.u32 %v3502, 16
      %v3766 = vrot.slane %v3764, 5
      %v3767 = vor.u32 %v3763, %v3766
      %v3768 = vrot.slane %v3767, 4
      %v3770 = vshll.u32 %v3503, 16
      %v3772 = vrot.slane %v3770, 5
      %v3773 = vsel %vm1333, %v3768, %v3772
      %v3774 = vshrl.u32 %v3503, 16
      %v3776 = vrot.slane %v3774, 4
      %v3777 = vor.u32 %v3776, %v3772
      %v3778 = vrot.slane %v3777, 4
      %v3780 = vshll.u32 %v3504, 16
      %v3782 = vrot.slane %v3780, 5
      %v3783 = vsel %vm1333, %v3778, %v3782
      %v3785 = vshrl.u32 %v3505, 16
      %v3787 = vrot.slane %v3785, 4
      %v3788 = vshll.u32 %v3505, 16
      %v3790 = vrot.slane %v3788, 5
      %v3791 = vor.u32 %v3787, %v3790
      %v3792 = vrot.slane %v3791, 4
      %v3794 = vshll.u32 %v3506, 16
      %v3796 = vrot.slane %v3794, 5
      %v3797 = vsel %vm1333, %v3792, %v3796
      %v3798 = vshrl.u32 %v3506, 16
      %v3800 = vrot.slane %v3798, 4
      %v3801 = vor.u32 %v3800, %v3796
      %v3802 = vrot.slane %v3801, 4
      %v3804 = vshll.u32 %v3507, 16
      %v3806 = vrot.slane %v3804, 5
      %v3807 = vsel %vm1333, %v3802, %v3806
      %v3809 = vshrl.u32 %v3508, 16
      %v3811 = vrot.slane %v3809, 4
      %v3812 = vshll.u32 %v3508, 16
      %v3814 = vrot.slane %v3812, 5
      %v3815 = vor.u32 %v3811, %v3814
      %v3816 = vrot.slane %v3815, 4
      %v3818 = vshll.u32 %v3509, 16
      %v3820 = vrot.slane %v3818, 5
      %v3821 = vsel %vm1333, %v3816, %v3820
      %v3822 = vshrl.u32 %v3509, 16
      %v3824 = vrot.slane %v3822, 4
      %v3825 = vor.u32 %v3824, %v3820
      %v3826 = vrot.slane %v3825, 4
      %v3828 = vshll.u32 %v3510, 16
      %v3830 = vrot.slane %v3828, 5
      %v3831 = vsel %vm1333, %v3826, %v3830
      %v3833 = vshrl.u32 %v3511, 16
      %v3835 = vrot.slane %v3833, 4
      %v3836 = vshll.u32 %v3511, 16
      %v3838 = vrot.slane %v3836, 5
      %v3839 = vor.u32 %v3835, %v3838
      %v3840 = vrot.slane %v3839, 4
      %v3842 = vshll.u32 %v3512, 16
      %v3844 = vrot.slane %v3842, 5
      %v3845 = vsel %vm1333, %v3840, %v3844
      %v3846 = vshrl.u32 %v3512, 16
      %v3848 = vrot.slane %v3846, 4
      %v3849 = vor.u32 %v3848, %v3844
      %v3850 = vrot.slane %v3849, 4
      %v3852 = vshll.u32 %v3513, 16
      %v3854 = vrot.slane %v3852, 5
      %v3855 = vsel %vm1333, %v3850, %v3854
      %v3857 = vshrl.u32 %v3514, 16
      %v3859 = vrot.slane %v3857, 4
      %v3860 = vshll.u32 %v3514, 16
      %v3862 = vrot.slane %v3860, 5
      %v3863 = vor.u32 %v3859, %v3862
      %v3864 = vrot.slane %v3863, 4
      %v3866 = vshll.u32 %v3515, 16
      %v3868 = vrot.slane %v3866, 5
      %v3869 = vsel %vm1333, %v3864, %v3868
      %v3870 = vshrl.u32 %v3515, 16
      %v3872 = vrot.slane %v3870, 4
      %v3873 = vor.u32 %v3872, %v3868
      %v3874 = vrot.slane %v3873, 4
      %v3876 = vshll.u32 %v3516, 16
      %v3878 = vrot.slane %v3876, 5
      %v3879 = vsel %vm1333, %v3874, %v3878
      %v3881 = vshrl.u32 %v3517, 16
      %v3883 = vrot.slane %v3881, 4
      %v3884 = vshll.u32 %v3517, 16
      %v3886 = vrot.slane %v3884, 5
      %v3887 = vor.u32 %v3883, %v3886
      %v3888 = vrot.slane %v3887, 4
      %v3890 = vshll.u32 %v3518, 16
      %v3892 = vrot.slane %v3890, 5
      %v3893 = vsel %vm1333, %v3888, %v3892
      %v3894 = vshrl.u32 %v3518, 16
      %v3896 = vrot.slane %v3894, 4
      %v3897 = vor.u32 %v3896, %v3892
      %v3898 = vrot.slane %v3897, 4
      %v3900 = vshll.u32 %v3519, 16
      %v3902 = vrot.slane %v3900, 5
      %v3903 = vsel %vm1333, %v3898, %v3902
      %3904 = vrot.lane.b32.xlu0 %v3533, 56
      %v3905 = vpop.permute.xlu0 %3904
      %3906 = vrot.lane.b32.xlu0 %v3543, 56
      %v3907 = vpop.permute.xlu0 %3906
      %3908 = vrot.lane.b32.xlu0 %v3557, 56
      %v3909 = vpop.permute.xlu0 %3908
      %3910 = vrot.lane.b32.xlu0 %v3567, 56
      %v3911 = vpop.permute.xlu0 %3910
      %3912 = vrot.lane.b32.xlu0 %v3581, 56
      %v3913 = vpop.permute.xlu0 %3912
      %3914 = vrot.lane.b32.xlu0 %v3591, 56
      %v3915 = vpop.permute.xlu0 %3914
      %3916 = vrot.lane.b32.xlu0 %v3605, 56
      %v3917 = vpop.permute.xlu0 %3916
      %3918 = vrot.lane.b32.xlu0 %v3615, 56
      %v3919 = vpop.permute.xlu0 %3918
      %3920 = vrot.lane.b32.xlu0 %v3629, 56
      %v3921 = vpop.permute.xlu0 %3920
      %3922 = vrot.lane.b32.xlu0 %v3639, 56
      %v3923 = vpop.permute.xlu0 %3922
      %3924 = vrot.lane.b32.xlu0 %v3653, 56
      %v3925 = vpop.permute.xlu0 %3924
      %3926 = vrot.lane.b32.xlu0 %v3663, 56
      %v3927 = vpop.permute.xlu0 %3926
      %3928 = vrot.lane.b32.xlu0 %v3677, 56
      %v3929 = vpop.permute.xlu0 %3928
      %3930 = vrot.lane.b32.xlu0 %v3687, 56
      %v3931 = vpop.permute.xlu0 %3930
      %3932 = vrot.lane.b32.xlu0 %v3701, 56
      %v3933 = vpop.permute.xlu0 %3932
      %3934 = vrot.lane.b32.xlu0 %v3711, 56
      %v3935 = vpop.permute.xlu0 %3934
      %3936 = vrot.lane.b32.xlu0 %v3725, 56
      %v3937 = vpop.permute.xlu0 %3936
      %3938 = vrot.lane.b32.xlu0 %v3735, 56
      %v3939 = vpop.permute.xlu0 %3938
      %3940 = vrot.lane.b32.xlu0 %v3749, 56
      %v3941 = vpop.permute.xlu0 %3940
      %3942 = vrot.lane.b32.xlu0 %v3759, 56
      %v3943 = vpop.permute.xlu0 %3942
      %3944 = vrot.lane.b32.xlu0 %v3773, 56
      %v3945 = vpop.permute.xlu0 %3944
      %3946 = vrot.lane.b32.xlu0 %v3783, 56
      %v3947 = vpop.permute.xlu0 %3946
      %3948 = vrot.lane.b32.xlu0 %v3797, 56
      %v3949 = vpop.permute.xlu0 %3948
      %3950 = vrot.lane.b32.xlu0 %v3807, 56
      %v3951 = vpop.permute.xlu0 %3950
      %3952 = vrot.lane.b32.xlu0 %v3821, 56
      %v3953 = vpop.permute.xlu0 %3952
      %3954 = vrot.lane.b32.xlu0 %v3831, 56
      %v3955 = vpop.permute.xlu0 %3954
      %3956 = vrot.lane.b32.xlu0 %v3845, 56
      %v3957 = vpop.permute.xlu0 %3956
      %3958 = vrot.lane.b32.xlu0 %v3855, 56
      %v3959 = vpop.permute.xlu0 %3958
      %3960 = vrot.lane.b32.xlu0 %v3869, 56
      %v3961 = vpop.permute.xlu0 %3960
      %3962 = vrot.lane.b32.xlu0 %v3879, 56
      %v3963 = vpop.permute.xlu0 %3962
      %3964 = vrot.lane.b32.xlu0 %v3893, 56
      %v3965 = vpop.permute.xlu0 %3964
      %3966 = vrot.lane.b32.xlu0 %v3903, 56
      %v3967 = vpop.permute.xlu0 %3966
      %vm4000 = vcmask 519616
      %4001 = vst.msk [vmem:[#allocation3] sm:$0xf] %vm4000, %v3905
      %4002 = vst.msk [vmem:[#allocation3 + $0x4] sm:$0xf] %vm4000, %v3907
      %4003 = vst.msk [vmem:[#allocation3 + $0x8] sm:$0xf] %vm4000, %v3909
      %4004 = vst.msk [vmem:[#allocation3 + $0xc] sm:$0xf] %vm4000, %v3911
      %4005 = vst.msk [vmem:[#allocation3 + $0x10] sm:$0xf] %vm4000, %v3913
      %4006 = vst.msk [vmem:[#allocation3 + $0x14] sm:$0xf] %vm4000, %v3915
      %4007 = vst.msk [vmem:[#allocation3 + $0x18] sm:$0xf] %vm4000, %v3917
      %4008 = vst.msk [vmem:[#allocation3 + $0x1c] sm:$0xf] %vm4000, %v3919
      %4009 = vst.msk [vmem:[#allocation3 + $0x20] sm:$0xf] %vm4000, %v3921
      %4010 = vst.msk [vmem:[#allocation3 + $0x24] sm:$0xf] %vm4000, %v3923
      %4011 = vst.msk [vmem:[#allocation3 + $0x28] sm:$0xf] %vm4000, %v3925
      %4012 = vst.msk [vmem:[#allocation3 + $0x2c] sm:$0xf] %vm4000, %v3927
      %4013 = vst.msk [vmem:[#allocation3 + $0x30] sm:$0xf] %vm4000, %v3929
      %4014 = vst.msk [vmem:[#allocation3 + $0x34] sm:$0xf] %vm4000, %v3931
      %4015 = vst.msk [vmem:[#allocation3 + $0x38] sm:$0xf] %vm4000, %v3933
      %4016 = vst.msk [vmem:[#allocation3 + $0x3c] sm:$0xf] %vm4000, %v3935
      %4017 = vst.msk [vmem:[#allocation3 + $0x40] sm:$0xf] %vm4000, %v3937
      %4018 = vst.msk [vmem:[#allocation3 + $0x44] sm:$0xf] %vm4000, %v3939
      %4019 = vst.msk [vmem:[#allocation3 + $0x48] sm:$0xf] %vm4000, %v3941
      %4020 = vst.msk [vmem:[#allocation3 + $0x4c] sm:$0xf] %vm4000, %v3943
      %4021 = vst.msk [vmem:[#allocation3 + $0x50] sm:$0xf] %vm4000, %v3945
      %4022 = vst.msk [vmem:[#allocation3 + $0x54] sm:$0xf] %vm4000, %v3947
      %4023 = vst.msk [vmem:[#allocation3 + $0x58] sm:$0xf] %vm4000, %v3949
      %4024 = vst.msk [vmem:[#allocation3 + $0x5c] sm:$0xf] %vm4000, %v3951
      %4025 = vst.msk [vmem:[#allocation3 + $0x60] sm:$0xf] %vm4000, %v3953
      %4026 = vst.msk [vmem:[#allocation3 + $0x64] sm:$0xf] %vm4000, %v3955
      %4027 = vst.msk [vmem:[#allocation3 + $0x68] sm:$0xf] %vm4000, %v3957
      %4028 = vst.msk [vmem:[#allocation3 + $0x6c] sm:$0xf] %vm4000, %v3959
      %4029 = vst.msk [vmem:[#allocation3 + $0x70] sm:$0xf] %vm4000, %v3961
      %4030 = vst.msk [vmem:[#allocation3 + $0x74] sm:$0xf] %vm4000, %v3963
      %4031 = vst.msk [vmem:[#allocation3 + $0x78] sm:$0xf] %vm4000, %v3965
      %4032 = vst.msk [vmem:[#allocation3 + $0x7c] sm:$0xf] %vm4000, %v3967
      %v4033 = vld [vmem:[%s3278] sm:$0xe]
      %v4034 = vld [vmem:[%s3278 + $0x4] sm:$0xf]
      %v4035 = vld [vmem:[%s3278 + $0x8] sm:$0x1]
      %v4036 = vld [vmem:[%s3278 + $0xc] sm:$0xe]
      %v4037 = vld [vmem:[%s3278 + $0x10] sm:$0xf]
      %v4038 = vld [vmem:[%s3278 + $0x14] sm:$0x1]
      %v4039 = vld [vmem:[%s3278 + $0x18] sm:$0xe]
      %v4040 = vld [vmem:[%s3278 + $0x1c] sm:$0xf]
      %v4041 = vld [vmem:[%s3278 + $0x20] sm:$0x1]
      %v4042 = vld [vmem:[%s3278 + $0x24] sm:$0xe]
      %v4043 = vld [vmem:[%s3278 + $0x28] sm:$0xf]
      %v4044 = vld [vmem:[%s3278 + $0x2c] sm:$0x1]
      %v4045 = vld [vmem:[%s3278 + $0x30] sm:$0xe]
      %v4046 = vld [vmem:[%s3278 + $0x34] sm:$0xf]
      %v4047 = vld [vmem:[%s3278 + $0x38] sm:$0x1]
      %v4048 = vld [vmem:[%s3278 + $0x3c] sm:$0xe]
      %v4049 = vld [vmem:[%s3278 + $0x40] sm:$0xf]
      %v4050 = vld [vmem:[%s3278 + $0x44] sm:$0x1]
      %v4051 = vld [vmem:[%s3278 + $0x48] sm:$0xe]
      %v4052 = vld [vmem:[%s3278 + $0x4c] sm:$0xf]
      %v4053 = vld [vmem:[%s3278 + $0x50] sm:$0x1]
      %v4054 = vld [vmem:[%s3278 + $0x54] sm:$0xe]
      %v4055 = vld [vmem:[%s3278 + $0x58] sm:$0xf]
      %v4056 = vld [vmem:[%s3278 + $0x5c] sm:$0x1]
      %v4057 = vld [vmem:[%s3278 + $0x60] sm:$0xe]
      %v4058 = vld [vmem:[%s3278 + $0x64] sm:$0xf]
      %v4059 = vld [vmem:[%s3278 + $0x68] sm:$0x1]
      %v4060 = vld [vmem:[%s3278 + $0x6c] sm:$0xe]
      %v4061 = vld [vmem:[%s3278 + $0x70] sm:$0xf]
      %v4062 = vld [vmem:[%s3278 + $0x74] sm:$0x1]
      %v4063 = vld [vmem:[%s3278 + $0x78] sm:$0xe]
      %v4064 = vld [vmem:[%s3278 + $0x7c] sm:$0xf]
      %v4065 = vld [vmem:[%s3278 + $0x80] sm:$0x1]
      %v4066 = vld [vmem:[%s3278 + $0x84] sm:$0xe]
      %v4067 = vld [vmem:[%s3278 + $0x88] sm:$0xf]
      %v4068 = vld [vmem:[%s3278 + $0x8c] sm:$0x1]
      %v4069 = vld [vmem:[%s3278 + $0x90] sm:$0xe]
      %v4070 = vld [vmem:[%s3278 + $0x94] sm:$0xf]
      %v4071 = vld [vmem:[%s3278 + $0x98] sm:$0x1]
      %v4072 = vld [vmem:[%s3278 + $0x9c] sm:$0xe]
      %v4073 = vld [vmem:[%s3278 + $0xa0] sm:$0xf]
      %v4074 = vld [vmem:[%s3278 + $0xa4] sm:$0x1]
      %v4075 = vld [vmem:[%s3278 + $0xa8] sm:$0xe]
      %v4076 = vld [vmem:[%s3278 + $0xac] sm:$0xf]
      %v4077 = vld [vmem:[%s3278 + $0xb0] sm:$0x1]
      %v4078 = vld [vmem:[%s3278 + $0xb4] sm:$0xe]
      %v4079 = vld [vmem:[%s3278 + $0xb8] sm:$0xf]
      %v4080 = vld [vmem:[%s3278 + $0xbc] sm:$0x1]
      %v4129 = vrot.slane %v4033, 5
      %v4130 = vrot.slane %v4129, 4
      %v4131 = vrot.slane %v4034, 5
      %v4132 = vsel %vm1945, %v4130, %v4131
      %v4133 = vrot.slane %v4131, 4
      %v4134 = vrot.slane %v4035, 5
      %v4135 = vsel %vm1945, %v4133, %v4134
      %v4136 = vrot.slane %v4036, 5
      %v4137 = vrot.slane %v4136, 4
      %v4138 = vrot.slane %v4037, 5
      %v4139 = vsel %vm1945, %v4137, %v4138
      %v4140 = vrot.slane %v4138, 4
      %v4141 = vrot.slane %v4038, 5
      %v4142 = vsel %vm1945, %v4140, %v4141
      %v4143 = vrot.slane %v4039, 5
      %v4144 = vrot.slane %v4143, 4
      %v4145 = vrot.slane %v4040, 5
      %v4146 = vsel %vm1945, %v4144, %v4145
      %v4147 = vrot.slane %v4145, 4
      %v4148 = vrot.slane %v4041, 5
      %v4149 = vsel %vm1945, %v4147, %v4148
      %v4150 = vrot.slane %v4042, 5
      %v4151 = vrot.slane %v4150, 4
      %v4152 = vrot.slane %v4043, 5
      %v4153 = vsel %vm1945, %v4151, %v4152
      %v4154 = vrot.slane %v4152, 4
      %v4155 = vrot.slane %v4044, 5
      %v4156 = vsel %vm1945, %v4154, %v4155
      %v4157 = vrot.slane %v4045, 5
      %v4158 = vrot.slane %v4157, 4
      %v4159 = vrot.slane %v4046, 5
      %v4160 = vsel %vm1945, %v4158, %v4159
      %v4161 = vrot.slane %v4159, 4
      %v4162 = vrot.slane %v4047, 5
      %v4163 = vsel %vm1945, %v4161, %v4162
      %v4164 = vrot.slane %v4048, 5
      %v4165 = vrot.slane %v4164, 4
      %v4166 = vrot.slane %v4049, 5
      %v4167 = vsel %vm1945, %v4165, %v4166
      %v4168 = vrot.slane %v4166, 4
      %v4169 = vrot.slane %v4050, 5
      %v4170 = vsel %vm1945, %v4168, %v4169
      %v4171 = vrot.slane %v4051, 5
      %v4172 = vrot.slane %v4171, 4
      %v4173 = vrot.slane %v4052, 5
      %v4174 = vsel %vm1945, %v4172, %v4173
      %v4175 = vrot.slane %v4173, 4
      %v4176 = vrot.slane %v4053, 5
      %v4177 = vsel %vm1945, %v4175, %v4176
      %v4178 = vrot.slane %v4054, 5
      %v4179 = vrot.slane %v4178, 4
      %v4180 = vrot.slane %v4055, 5
      %v4181 = vsel %vm1945, %v4179, %v4180
      %v4182 = vrot.slane %v4180, 4
      %v4183 = vrot.slane %v4056, 5
      %v4184 = vsel %vm1945, %v4182, %v4183
      %v4185 = vrot.slane %v4057, 5
      %v4186 = vrot.slane %v4185, 4
      %v4187 = vrot.slane %v4058, 5
      %v4188 = vsel %vm1945, %v4186, %v4187
      %v4189 = vrot.slane %v4187, 4
      %v4190 = vrot.slane %v4059, 5
      %v4191 = vsel %vm1945, %v4189, %v4190
      %v4192 = vrot.slane %v4060, 5
      %v4193 = vrot.slane %v4192, 4
      %v4194 = vrot.slane %v4061, 5
      %v4195 = vsel %vm1945, %v4193, %v4194
      %v4196 = vrot.slane %v4194, 4
      %v4197 = vrot.slane %v4062, 5
      %v4198 = vsel %vm1945, %v4196, %v4197
      %v4199 = vrot.slane %v4063, 5
      %v4200 = vrot.slane %v4199, 4
      %v4201 = vrot.slane %v4064, 5
      %v4202 = vsel %vm1945, %v4200, %v4201
      %v4203 = vrot.slane %v4201, 4
      %v4204 = vrot.slane %v4065, 5
      %v4205 = vsel %vm1945, %v4203, %v4204
      %v4206 = vrot.slane %v4066, 5
      %v4207 = vrot.slane %v4206, 4
      %v4208 = vrot.slane %v4067, 5
      %v4209 = vsel %vm1945, %v4207, %v4208
      %v4210 = vrot.slane %v4208, 4
      %v4211 = vrot.slane %v4068, 5
      %v4212 = vsel %vm1945, %v4210, %v4211
      %v4213 = vrot.slane %v4069, 5
      %v4214 = vrot.slane %v4213, 4
      %v4215 = vrot.slane %v4070, 5
      %v4216 = vsel %vm1945, %v4214, %v4215
      %v4217 = vrot.slane %v4215, 4
      %v4218 = vrot.slane %v4071, 5
      %v4219 = vsel %vm1945, %v4217, %v4218
      %v4220 = vrot.slane %v4072, 5
      %v4221 = vrot.slane %v4220, 4
      %v4222 = vrot.slane %v4073, 5
      %v4223 = vsel %vm1945, %v4221, %v4222
      %v4224 = vrot.slane %v4222, 4
      %v4225 = vrot.slane %v4074, 5
      %v4226 = vsel %vm1945, %v4224, %v4225
      %v4227 = vrot.slane %v4075, 5
      %v4228 = vrot.slane %v4227, 4
      %v4229 = vrot.slane %v4076, 5
      %v4230 = vsel %vm1945, %v4228, %v4229
      %v4231 = vrot.slane %v4229, 4
      %v4232 = vrot.slane %v4077, 5
      %v4233 = vsel %vm1945, %v4231, %v4232
      %v4234 = vrot.slane %v4078, 5
      %v4235 = vrot.slane %v4234, 4
      %v4236 = vrot.slane %v4079, 5
      %v4237 = vsel %vm1945, %v4235, %v4236
      %v4238 = vrot.slane %v4236, 4
      %v4239 = vrot.slane %v4080, 5
      %v4240 = vsel %vm1945, %v4238, %v4239
      %4241 = vrot.lane.b32.xlu0 %v4132, 64
      %v4242 = vpop.permute.xlu0 %4241
      %4243 = vrot.lane.b32.xlu0 %v4135, 64
      %v4244 = vpop.permute.xlu0 %4243
      %4245 = vrot.lane.b32.xlu0 %v4139, 64
      %v4246 = vpop.permute.xlu0 %4245
      %4247 = vrot.lane.b32.xlu0 %v4142, 64
      %v4248 = vpop.permute.xlu0 %4247
      %4249 = vrot.lane.b32.xlu0 %v4146, 64
      %v4250 = vpop.permute.xlu0 %4249
      %4251 = vrot.lane.b32.xlu0 %v4149, 64
      %v4252 = vpop.permute.xlu0 %4251
      %4253 = vrot.lane.b32.xlu0 %v4153, 64
      %v4254 = vpop.permute.xlu0 %4253
      %4255 = vrot.lane.b32.xlu0 %v4156, 64
      %v4256 = vpop.permute.xlu0 %4255
      %4257 = vrot.lane.b32.xlu0 %v4160, 64
      %v4258 = vpop.permute.xlu0 %4257
      %4259 = vrot.lane.b32.xlu0 %v4163, 64
      %v4260 = vpop.permute.xlu0 %4259
      %4261 = vrot.lane.b32.xlu0 %v4167, 64
      %v4262 = vpop.permute.xlu0 %4261
      %4263 = vrot.lane.b32.xlu0 %v4170, 64
      %v4264 = vpop.permute.xlu0 %4263
      %4265 = vrot.lane.b32.xlu0 %v4174, 64
      %v4266 = vpop.permute.xlu0 %4265
      %4267 = vrot.lane.b32.xlu0 %v4177, 64
      %v4268 = vpop.permute.xlu0 %4267
      %4269 = vrot.lane.b32.xlu0 %v4181, 64
      %v4270 = vpop.permute.xlu0 %4269
      %4271 = vrot.lane.b32.xlu0 %v4184, 64
      %v4272 = vpop.permute.xlu0 %4271
      %4273 = vrot.lane.b32.xlu0 %v4188, 64
      %v4274 = vpop.permute.xlu0 %4273
      %4275 = vrot.lane.b32.xlu0 %v4191, 64
      %v4276 = vpop.permute.xlu0 %4275
      %4277 = vrot.lane.b32.xlu0 %v4195, 64
      %v4278 = vpop.permute.xlu0 %4277
      %4279 = vrot.lane.b32.xlu0 %v4198, 64
      %v4280 = vpop.permute.xlu0 %4279
      %4281 = vrot.lane.b32.xlu0 %v4202, 64
      %v4282 = vpop.permute.xlu0 %4281
      %4283 = vrot.lane.b32.xlu0 %v4205, 64
      %v4284 = vpop.permute.xlu0 %4283
      %4285 = vrot.lane.b32.xlu0 %v4209, 64
      %v4286 = vpop.permute.xlu0 %4285
      %4287 = vrot.lane.b32.xlu0 %v4212, 64
      %v4288 = vpop.permute.xlu0 %4287
      %4289 = vrot.lane.b32.xlu0 %v4216, 64
      %v4290 = vpop.permute.xlu0 %4289
      %4291 = vrot.lane.b32.xlu0 %v4219, 64
      %v4292 = vpop.permute.xlu0 %4291
      %4293 = vrot.lane.b32.xlu0 %v4223, 64
      %v4294 = vpop.permute.xlu0 %4293
      %4295 = vrot.lane.b32.xlu0 %v4226, 64
      %v4296 = vpop.permute.xlu0 %4295
      %4297 = vrot.lane.b32.xlu0 %v4230, 64
      %v4298 = vpop.permute.xlu0 %4297
      %4299 = vrot.lane.b32.xlu0 %v4233, 64
      %v4300 = vpop.permute.xlu0 %4299
      %4301 = vrot.lane.b32.xlu0 %v4237, 64
      %v4302 = vpop.permute.xlu0 %4301
      %4303 = vrot.lane.b32.xlu0 %v4240, 64
      %v4304 = vpop.permute.xlu0 %4303
      %vm4337 = vcmask 585216
      %4338 = vst.msk [vmem:[#allocation3] sm:$0xf] %vm4337, %v4242
      %4339 = vst.msk [vmem:[#allocation3 + $0x4] sm:$0xf] %vm4337, %v4244
      %4340 = vst.msk [vmem:[#allocation3 + $0x8] sm:$0xf] %vm4337, %v4246
      %4341 = vst.msk [vmem:[#allocation3 + $0xc] sm:$0xf] %vm4337, %v4248
      %4342 = vst.msk [vmem:[#allocation3 + $0x10] sm:$0xf] %vm4337, %v4250
      %4343 = vst.msk [vmem:[#allocation3 + $0x14] sm:$0xf] %vm4337, %v4252
      %4344 = vst.msk [vmem:[#allocation3 + $0x18] sm:$0xf] %vm4337, %v4254
      %4345 = vst.msk [vmem:[#allocation3 + $0x1c] sm:$0xf] %vm4337, %v4256
      %4346 = vst.msk [vmem:[#allocation3 + $0x20] sm:$0xf] %vm4337, %v4258
      %4347 = vst.msk [vmem:[#allocation3 + $0x24] sm:$0xf] %vm4337, %v4260
      %4348 = vst.msk [vmem:[#allocation3 + $0x28] sm:$0xf] %vm4337, %v4262
      %4349 = vst.msk [vmem:[#allocation3 + $0x2c] sm:$0xf] %vm4337, %v4264
      %4350 = vst.msk [vmem:[#allocation3 + $0x30] sm:$0xf] %vm4337, %v4266
      %4351 = vst.msk [vmem:[#allocation3 + $0x34] sm:$0xf] %vm4337, %v4268
      %4352 = vst.msk [vmem:[#allocation3 + $0x38] sm:$0xf] %vm4337, %v4270
      %4353 = vst.msk [vmem:[#allocation3 + $0x3c] sm:$0xf] %vm4337, %v4272
      %4354 = vst.msk [vmem:[#allocation3 + $0x40] sm:$0xf] %vm4337, %v4274
      %4355 = vst.msk [vmem:[#allocation3 + $0x44] sm:$0xf] %vm4337, %v4276
      %4356 = vst.msk [vmem:[#allocation3 + $0x48] sm:$0xf] %vm4337, %v4278
      %4357 = vst.msk [vmem:[#allocation3 + $0x4c] sm:$0xf] %vm4337, %v4280
      %4358 = vst.msk [vmem:[#allocation3 + $0x50] sm:$0xf] %vm4337, %v4282
      %4359 = vst.msk [vmem:[#allocation3 + $0x54] sm:$0xf] %vm4337, %v4284
      %4360 = vst.msk [vmem:[#allocation3 + $0x58] sm:$0xf] %vm4337, %v4286
      %4361 = vst.msk [vmem:[#allocation3 + $0x5c] sm:$0xf] %vm4337, %v4288
      %4362 = vst.msk [vmem:[#allocation3 + $0x60] sm:$0xf] %vm4337, %v4290
      %4363 = vst.msk [vmem:[#allocation3 + $0x64] sm:$0xf] %vm4337, %v4292
      %4364 = vst.msk [vmem:[#allocation3 + $0x68] sm:$0xf] %vm4337, %v4294
      %4365 = vst.msk [vmem:[#allocation3 + $0x6c] sm:$0xf] %vm4337, %v4296
      %4366 = vst.msk [vmem:[#allocation3 + $0x70] sm:$0xf] %vm4337, %v4298
      %4367 = vst.msk [vmem:[#allocation3 + $0x74] sm:$0xf] %vm4337, %v4300
      %4368 = vst.msk [vmem:[#allocation3 + $0x78] sm:$0xf] %vm4337, %v4302
      %4369 = vst.msk [vmem:[#allocation3 + $0x7c] sm:$0xf] %vm4337, %v4304
      %v4370 = vld [vmem:[#allocation3] sm:$0xf]
      %v4371 = vld [vmem:[#allocation3 + $0x4] sm:$0xf]
      %v4372 = vld [vmem:[#allocation3 + $0x8] sm:$0xf]
      %v4373 = vld [vmem:[#allocation3 + $0xc] sm:$0xf]
      %v4374 = vld [vmem:[#allocation3 + $0x10] sm:$0xf]
      %v4375 = vld [vmem:[#allocation3 + $0x14] sm:$0xf]
      %v4376 = vld [vmem:[#allocation3 + $0x18] sm:$0xf]
      %v4377 = vld [vmem:[#allocation3 + $0x1c] sm:$0xf]
      %v4378 = vld [vmem:[#allocation3 + $0x20] sm:$0xf]
      %v4379 = vld [vmem:[#allocation3 + $0x24] sm:$0xf]
      %v4380 = vld [vmem:[#allocation3 + $0x28] sm:$0xf]
      %v4381 = vld [vmem:[#allocation3 + $0x2c] sm:$0xf]
      %v4382 = vld [vmem:[#allocation3 + $0x30] sm:$0xf]
      %v4383 = vld [vmem:[#allocation3 + $0x34] sm:$0xf]
      %v4384 = vld [vmem:[#allocation3 + $0x38] sm:$0xf]
      %v4385 = vld [vmem:[#allocation3 + $0x3c] sm:$0xf]
      %v4386 = vld [vmem:[#allocation3 + $0x40] sm:$0xf]
      %v4387 = vld [vmem:[#allocation3 + $0x44] sm:$0xf]
      %v4388 = vld [vmem:[#allocation3 + $0x48] sm:$0xf]
      %v4389 = vld [vmem:[#allocation3 + $0x4c] sm:$0xf]
      %v4390 = vld [vmem:[#allocation3 + $0x50] sm:$0xf]
      %v4391 = vld [vmem:[#allocation3 + $0x54] sm:$0xf]
      %v4392 = vld [vmem:[#allocation3 + $0x58] sm:$0xf]
      %v4393 = vld [vmem:[#allocation3 + $0x5c] sm:$0xf]
      %v4394 = vld [vmem:[#allocation3 + $0x60] sm:$0xf]
      %v4395 = vld [vmem:[#allocation3 + $0x64] sm:$0xf]
      %v4396 = vld [vmem:[#allocation3 + $0x68] sm:$0xf]
      %v4397 = vld [vmem:[#allocation3 + $0x6c] sm:$0xf]
      %v4398 = vld [vmem:[#allocation3 + $0x70] sm:$0xf]
      %v4399 = vld [vmem:[#allocation3 + $0x74] sm:$0xf]
      %v4400 = vld [vmem:[#allocation3 + $0x78] sm:$0xf]
      %v4401 = vld [vmem:[#allocation3 + $0x7c] sm:$0xf]
      %v4402 = vld [vmem:[%s3] sm:$0xf]
      %v4403 = vld [vmem:[%s3 + $0x4] sm:$0xf]
      %v4404 = vld [vmem:[%s3 + $0x8] sm:$0xf]
      %v4405 = vld [vmem:[%s3 + $0xc] sm:$0xf]
      %v4406 = vld [vmem:[%s3 + $0x10] sm:$0xf]
      %v4407 = vld [vmem:[%s3 + $0x14] sm:$0xf]
      %v4408 = vld [vmem:[%s3 + $0x18] sm:$0xf]
      %v4409 = vld [vmem:[%s3 + $0x1c] sm:$0xf]
      %v4410 = vld [vmem:[%s3 + $0x20] sm:$0xf]
      %v4411 = vld [vmem:[%s4] sm:$0x1]
      %v4413 = vlaneseq
      %v4414 = vshrl.u32 %v4413, 7
      %v4415 = vsub.s32 0, %v4414
      %v4416 = vrot.slane %v4411, %v4415
      %v4450 = vunpack.c.l.b16 %v4370
      %v4451 = vunpack.c.l.b16 %v4371
      %v4452 = vunpack.c.l.b16 %v4372
      %v4453 = vunpack.c.l.b16 %v4373
      %v4454 = vunpack.c.l.b16 %v4374
      %v4455 = vunpack.c.l.b16 %v4375
      %v4456 = vunpack.c.l.b16 %v4376
      %v4457 = vunpack.c.l.b16 %v4377
      %v4458 = vunpack.c.l.b16 %v4378
      %v4459 = vunpack.c.l.b16 %v4379
      %v4460 = vunpack.c.l.b16 %v4380
      %v4461 = vunpack.c.l.b16 %v4381
      %v4462 = vunpack.c.l.b16 %v4382
      %v4463 = vunpack.c.l.b16 %v4383
      %v4464 = vunpack.c.l.b16 %v4384
      %v4465 = vunpack.c.l.b16 %v4385
      %v4466 = vunpack.c.l.b16 %v4386
      %v4467 = vunpack.c.l.b16 %v4387
      %v4468 = vunpack.c.l.b16 %v4388
      %v4469 = vunpack.c.l.b16 %v4389
      %v4470 = vunpack.c.l.b16 %v4390
      %v4471 = vunpack.c.l.b16 %v4391
      %v4472 = vunpack.c.l.b16 %v4392
      %v4473 = vunpack.c.l.b16 %v4393
      %v4474 = vunpack.c.l.b16 %v4394
      %v4475 = vunpack.c.l.b16 %v4395
      %v4476 = vunpack.c.l.b16 %v4396
      %v4477 = vunpack.c.l.b16 %v4397
      %v4478 = vunpack.c.l.b16 %v4398
      %v4479 = vunpack.c.l.b16 %v4399
      %v4480 = vunpack.c.l.b16 %v4400
      %v4481 = vunpack.c.l.b16 %v4401
      %v4482 = vpack.c.b16 %v4451, %v4450
      %v4483 = vpack.c.b16 %v4453, %v4452
      %v4484 = vpack.c.b16 %v4455, %v4454
      %v4485 = vpack.c.b16 %v4457, %v4456
      %v4486 = vpack.c.b16 %v4459, %v4458
      %v4487 = vpack.c.b16 %v4461, %v4460
      %v4488 = vpack.c.b16 %v4463, %v4462
      %v4489 = vpack.c.b16 %v4465, %v4464
      %v4490 = vpack.c.b16 %v4467, %v4466
      %v4491 = vpack.c.b16 %v4469, %v4468
      %v4492 = vpack.c.b16 %v4471, %v4470
      %v4493 = vpack.c.b16 %v4473, %v4472
      %v4494 = vpack.c.b16 %v4475, %v4474
      %v4495 = vpack.c.b16 %v4477, %v4476
      %v4496 = vpack.c.b16 %v4479, %v4478
      %v4497 = vpack.c.b16 %v4481, %v4480
      %v4507 = vunpack.c.l.b16 %v4402
      %v4508 = vunpack.c.l.b16 %v4403
      %v4509 = vunpack.c.l.b16 %v4404
      %v4510 = vunpack.c.l.b16 %v4405
      %v4511 = vunpack.c.l.b16 %v4406
      %v4512 = vunpack.c.l.b16 %v4407
      %v4513 = vunpack.c.l.b16 %v4408
      %v4514 = vunpack.c.l.b16 %v4409
      %v4515 = vunpack.c.l.b16 %v4410
      %v4516 = vpack.c.b16 %v4508, %v4507
      %v4517 = vpack.c.b16 %v4510, %v4509
      %v4518 = vpack.c.b16 %v4512, %v4511
      %v4519 = vpack.c.b16 %v4514, %v4513
      %v4520 = vpack.c.b16 %v4515, %v4515
      %vm4525 = vcmask 588800
      %v4527 = vsel %vm4525, %v4482, 0
      %v4530 = vsel %vm4525, %v4483, 0
      %v4533 = vsel %vm4525, %v4484, 0
      %v4536 = vsel %vm4525, %v4485, 0
      %v4539 = vsel %vm4525, %v4486, 0
      %v4542 = vsel %vm4525, %v4487, 0
      %v4545 = vsel %vm4525, %v4488, 0
      %v4548 = vsel %vm4525, %v4489, 0
      %v4551 = vsel %vm4525, %v4490, 0
      %v4554 = vsel %vm4525, %v4491, 0
      %v4557 = vsel %vm4525, %v4492, 0
      %v4560 = vsel %vm4525, %v4493, 0
      %v4563 = vsel %vm4525, %v4494, 0
      %v4566 = vsel %vm4525, %v4495, 0
      %v4569 = vsel %vm4525, %v4496, 0
      %v4572 = vsel %vm4525, %v4497, 0
      %vm4574 = vcmask 1043456
      %v4576 = vsel %vm4574, %v4520, 0
      %4578 = vmatprep.subr.bf16.mxu0 0
      %4579 = vmatpush1.bf16.msra.mxu0 0
      %4580 = vmatprep.subr.bf16.mxu0 0
      %4581 = vmatpush1.bf16.msra.mxu0 0
      %4582 = vmatprep.subr.bf16.mxu0 0
      %4583 = vmatpush1.bf16.msra.mxu0 0
      %4584 = vmatprep.subr.bf16.mxu0 0
      %4585 = vmatpush1.bf16.msra.mxu0 %v4576
      %4586 = vmatprep.subr.bf16.mxu0 0
      %4587 = vmatpush1.bf16.msra.mxu0 %v4519
      %4588 = vmatprep.subr.bf16.mxu0 0
      %4589 = vmatpush1.bf16.msra.mxu0 %v4518
      %4590 = vmatprep.subr.bf16.mxu0 0
      %4591 = vmatpush1.bf16.msra.mxu0 %v4517
      %4592 = vmatprep.subr.bf16.mxu0 0
      %4593 = vmatpush1.bf16.msra.mxu0 %v4516
      %4594 = vmatprep.subr.bf16.mxu0 0
      %4595 = vmatpush2.bf16.msra.mxu0 0
      %4596 = vmatprep.subr.bf16.mxu0 0
      %4597 = vmatpush2.bf16.msra.mxu0 0
      %4598 = vmatprep.subr.bf16.mxu0 0
      %4599 = vmatpush2.bf16.msra.mxu0 0
      %4600 = vmatprep.subr.bf16.mxu0 0
      %4601 = vmatpush2.bf16.msra.mxu0 0
      %4602 = vmatprep.subr.bf16.mxu0 0
      %4603 = vmatpush2.bf16.msra.mxu0 0
      %4604 = vmatprep.subr.bf16.mxu0 0
      %4605 = vmatpush2.bf16.msra.mxu0 0
      %4606 = vmatprep.subr.bf16.mxu0 0
      %4607 = vmatpush2.bf16.msra.mxu0 0
      %4608 = vmatprep.subr.bf16.mxu0 0
      %4609 = vmatpush2.bf16.msra.mxu0 0
      %4610 = vmatprep.mubr.bf16.mxu0 0
      %4611 = vmatmul.mubr.bf16.gmra.mxu0 %v4527
      %v4612 = vpop.f32.mrf.mxu0
      %v4613 = vadd.f32 %v4416, %v4612
      %v4614 = vpop.f32.mrf.mxu0
      %v4615 = vpop.f32.mrf.mxu0
      %v4616 = vadd.f32 %v4416, %v4615
      %v4617 = vpop.f32.mrf.mxu0
      %4618 = vmatprep.mubr.bf16.mxu0 0
      %4619 = vmatmul.mubr.bf16.gmra.mxu0 %v4530
      %v4620 = vpop.f32.mrf.mxu0
      %v4621 = vadd.f32 %v4416, %v4620
      %v4622 = vpop.f32.mrf.mxu0
      %v4623 = vpop.f32.mrf.mxu0
      %v4624 = vadd.f32 %v4416, %v4623
      %v4625 = vpop.f32.mrf.mxu0
      %4626 = vmatprep.mubr.bf16.mxu0 0
      %4627 = vmatmul.mubr.bf16.gmra.mxu0 %v4533
      %v4628 = vpop.f32.mrf.mxu0
      %v4629 = vadd.f32 %v4416, %v4628
      %v4630 = vpop.f32.mrf.mxu0
      %v4631 = vpop.f32.mrf.mxu0
      %v4632 = vadd.f32 %v4416, %v4631
      %v4633 = vpop.f32.mrf.mxu0
      %4634 = vmatprep.mubr.bf16.mxu0 0
      %4635 = vmatmul.mubr.bf16.gmra.mxu0 %v4536
      %v4636 = vpop.f32.mrf.mxu0
      %v4637 = vadd.f32 %v4416, %v4636
      %v4638 = vpop.f32.mrf.mxu0
      %v4639 = vpop.f32.mrf.mxu0
      %v4640 = vadd.f32 %v4416, %v4639
      %v4641 = vpop.f32.mrf.mxu0
      %4642 = vmatprep.mubr.bf16.mxu0 0
      %4643 = vmatmul.mubr.bf16.gmra.mxu0 %v4539
      %v4644 = vpop.f32.mrf.mxu0
      %v4645 = vadd.f32 %v4416, %v4644
      %v4646 = vpop.f32.mrf.mxu0
      %v4647 = vpop.f32.mrf.mxu0
      %v4648 = vadd.f32 %v4416, %v4647
      %v4649 = vpop.f32.mrf.mxu0
      %4650 = vmatprep.mubr.bf16.mxu0 0
      %4651 = vmatmul.mubr.bf16.gmra.mxu0 %v4542
      %v4652 = vpop.f32.mrf.mxu0
      %v4653 = vadd.f32 %v4416, %v4652
      %v4654 = vpop.f32.mrf.mxu0
      %v4655 = vpop.f32.mrf.mxu0
      %v4656 = vadd.f32 %v4416, %v4655
      %v4657 = vpop.f32.mrf.mxu0
      %4658 = vmatprep.mubr.bf16.mxu0 0
      %4659 = vmatmul.mubr.bf16.gmra.mxu0 %v4545
      %v4660 = vpop.f32.mrf.mxu0
      %v4661 = vadd.f32 %v4416, %v4660
      %v4662 = vpop.f32.mrf.mxu0
      %v4663 = vpop.f32.mrf.mxu0
      %v4664 = vadd.f32 %v4416, %v4663
      %v4665 = vpop.f32.mrf.mxu0
      %4666 = vmatprep.mubr.bf16.mxu0 0
      %4667 = vmatmul.mubr.bf16.gmra.mxu0 %v4548
      %v4668 = vpop.f32.mrf.mxu0
      %v4669 = vadd.f32 %v4416, %v4668
      %v4670 = vpop.f32.mrf.mxu0
      %v4671 = vpop.f32.mrf.mxu0
      %v4672 = vadd.f32 %v4416, %v4671
      %v4673 = vpop.f32.mrf.mxu0
      %4674 = vmatprep.mubr.bf16.mxu0 0
      %4675 = vmatmul.mubr.bf16.gmra.mxu0 %v4551
      %v4676 = vpop.f32.mrf.mxu0
      %v4677 = vadd.f32 %v4416, %v4676
      %v4678 = vpop.f32.mrf.mxu0
      %v4679 = vpop.f32.mrf.mxu0
      %v4680 = vadd.f32 %v4416, %v4679
      %v4681 = vpop.f32.mrf.mxu0
      %4682 = vmatprep.mubr.bf16.mxu0 0
      %4683 = vmatmul.mubr.bf16.gmra.mxu0 %v4554
      %v4684 = vpop.f32.mrf.mxu0
      %v4685 = vadd.f32 %v4416, %v4684
      %v4686 = vpop.f32.mrf.mxu0
      %v4687 = vpop.f32.mrf.mxu0
      %v4688 = vadd.f32 %v4416, %v4687
      %v4689 = vpop.f32.mrf.mxu0
      %4690 = vmatprep.mubr.bf16.mxu0 0
      %4691 = vmatmul.mubr.bf16.gmra.mxu0 %v4557
      %v4692 = vpop.f32.mrf.mxu0
      %v4693 = vadd.f32 %v4416, %v4692
      %v4694 = vpop.f32.mrf.mxu0
      %v4695 = vpop.f32.mrf.mxu0
      %v4696 = vadd.f32 %v4416, %v4695
      %v4697 = vpop.f32.mrf.mxu0
      %4698 = vmatprep.mubr.bf16.mxu0 0
      %4699 = vmatmul.mubr.bf16.gmra.mxu0 %v4560
      %v4700 = vpop.f32.mrf.mxu0
      %v4701 = vadd.f32 %v4416, %v4700
      %v4702 = vpop.f32.mrf.mxu0
      %v4703 = vpop.f32.mrf.mxu0
      %v4704 = vadd.f32 %v4416, %v4703
      %v4705 = vpop.f32.mrf.mxu0
      %4706 = vmatprep.mubr.bf16.mxu0 0
      %4707 = vmatmul.mubr.bf16.gmra.mxu0 %v4563
      %v4708 = vpop.f32.mrf.mxu0
      %v4709 = vadd.f32 %v4416, %v4708
      %v4710 = vpop.f32.mrf.mxu0
      %v4711 = vpop.f32.mrf.mxu0
      %v4712 = vadd.f32 %v4416, %v4711
      %v4713 = vpop.f32.mrf.mxu0
      %4714 = vmatprep.mubr.bf16.mxu0 0
      %4715 = vmatmul.mubr.bf16.gmra.mxu0 %v4566
      %v4716 = vpop.f32.mrf.mxu0
      %v4717 = vadd.f32 %v4416, %v4716
      %v4718 = vpop.f32.mrf.mxu0
      %v4719 = vpop.f32.mrf.mxu0
      %v4720 = vadd.f32 %v4416, %v4719
      %v4721 = vpop.f32.mrf.mxu0
      %4722 = vmatprep.mubr.bf16.mxu0 0
      %4723 = vmatmul.mubr.bf16.gmra.mxu0 %v4569
      %v4724 = vpop.f32.mrf.mxu0
      %v4725 = vadd.f32 %v4416, %v4724
      %v4726 = vpop.f32.mrf.mxu0
      %v4727 = vpop.f32.mrf.mxu0
      %v4728 = vadd.f32 %v4416, %v4727
      %v4729 = vpop.f32.mrf.mxu0
      %4730 = vmatprep.mubr.bf16.mxu0 0
      %4731 = vmatmul.mubr.bf16.gmra.mxu0 %v4572
      %v4732 = vpop.f32.mrf.mxu0
      %v4733 = vadd.f32 %v4416, %v4732
      %v4734 = vpop.f32.mrf.mxu0
      %v4735 = vpop.f32.mrf.mxu0
      %v4736 = vadd.f32 %v4416, %v4735
      %v4737 = vpop.f32.mrf.mxu0
      %4738 = vdwg.mxu0
      %v4739 = vxor.u32 %v4613, 2147483648
      %v4740 = vxor.u32 %v4616, 2147483648
      %v4741 = vxor.u32 %v4621, 2147483648
      %v4742 = vxor.u32 %v4624, 2147483648
      %v4743 = vxor.u32 %v4629, 2147483648
      %v4744 = vxor.u32 %v4632, 2147483648
      %v4745 = vxor.u32 %v4637, 2147483648
      %v4746 = vxor.u32 %v4640, 2147483648
      %v4747 = vxor.u32 %v4645, 2147483648
      %v4748 = vxor.u32 %v4648, 2147483648
      %v4749 = vxor.u32 %v4653, 2147483648
      %v4750 = vxor.u32 %v4656, 2147483648
      %v4751 = vxor.u32 %v4661, 2147483648
      %v4752 = vxor.u32 %v4664, 2147483648
      %v4753 = vxor.u32 %v4669, 2147483648
      %v4754 = vxor.u32 %v4672, 2147483648
      %v4755 = vxor.u32 %v4677, 2147483648
      %v4756 = vxor.u32 %v4680, 2147483648
      %v4757 = vxor.u32 %v4685, 2147483648
      %v4758 = vxor.u32 %v4688, 2147483648
      %v4759 = vxor.u32 %v4693, 2147483648
      %v4760 = vxor.u32 %v4696, 2147483648
      %v4761 = vxor.u32 %v4701, 2147483648
      %v4762 = vxor.u32 %v4704, 2147483648
      %v4763 = vxor.u32 %v4709, 2147483648
      %v4764 = vxor.u32 %v4712, 2147483648
      %v4765 = vxor.u32 %v4717, 2147483648
      %v4766 = vxor.u32 %v4720, 2147483648
      %v4767 = vxor.u32 %v4725, 2147483648
      %v4768 = vxor.u32 %v4728, 2147483648
      %v4769 = vxor.u32 %v4733, 2147483648
      %v4770 = vxor.u32 %v4736, 2147483648
      %v4771 = vmul.f32 %v4739, 1.442695
      %v4772 = vpow.pop %v4771
      %v4773 = vmul.f32 %v4740, 1.442695
      %v4774 = vpow.pop %v4773
      %v4775 = vmul.f32 %v4741, 1.442695
      %v4776 = vpow.pop %v4775
      %v4777 = vmul.f32 %v4742, 1.442695
      %v4778 = vpow.pop %v4777
      %v4779 = vmul.f32 %v4743, 1.442695
      %v4780 = vpow.pop %v4779
      %v4781 = vmul.f32 %v4744, 1.442695
      %v4782 = vpow.pop %v4781
      %v4783 = vmul.f32 %v4745, 1.442695
      %v4784 = vpow.pop %v4783
      %v4785 = vmul.f32 %v4746, 1.442695
      %v4786 = vpow.pop %v4785
      %v4787 = vmul.f32 %v4747, 1.442695
      %v4788 = vpow.pop %v4787
      %v4789 = vmul.f32 %v4748, 1.442695
      %v4790 = vpow.pop %v4789
      %v4791 = vmul.f32 %v4749, 1.442695
      %v4792 = vpow.pop %v4791
      %v4793 = vmul.f32 %v4750, 1.442695
      %v4794 = vpow.pop %v4793
      %v4795 = vmul.f32 %v4751, 1.442695
      %v4796 = vpow.pop %v4795
      %v4797 = vmul.f32 %v4752, 1.442695
      %v4798 = vpow.pop %v4797
      %v4799 = vmul.f32 %v4753, 1.442695
      %v4800 = vpow.pop %v4799
      %v4801 = vmul.f32 %v4754, 1.442695
      %v4802 = vpow.pop %v4801
      %v4803 = vmul.f32 %v4755, 1.442695
      %v4804 = vpow.pop %v4803
      %v4805 = vmul.f32 %v4756, 1.442695
      %v4806 = vpow.pop %v4805
      %v4807 = vmul.f32 %v4757, 1.442695
      %v4808 = vpow.pop %v4807
      %v4809 = vmul.f32 %v4758, 1.442695
      %v4810 = vpow.pop %v4809
      %v4811 = vmul.f32 %v4759, 1.442695
      %v4812 = vpow.pop %v4811
      %v4813 = vmul.f32 %v4760, 1.442695
      %v4814 = vpow.pop %v4813
      %v4815 = vmul.f32 %v4761, 1.442695
      %v4816 = vpow.pop %v4815
      %v4817 = vmul.f32 %v4762, 1.442695
      %v4818 = vpow.pop %v4817
      %v4819 = vmul.f32 %v4763, 1.442695
      %v4820 = vpow.pop %v4819
      %v4821 = vmul.f32 %v4764, 1.442695
      %v4822 = vpow.pop %v4821
      %v4823 = vmul.f32 %v4765, 1.442695
      %v4824 = vpow.pop %v4823
      %v4825 = vmul.f32 %v4766, 1.442695
      %v4826 = vpow.pop %v4825
      %v4827 = vmul.f32 %v4767, 1.442695
      %v4828 = vpow.pop %v4827
      %v4829 = vmul.f32 %v4768, 1.442695
      %v4830 = vpow.pop %v4829
      %v4831 = vmul.f32 %v4769, 1.442695
      %v4832 = vpow.pop %v4831
      %v4833 = vmul.f32 %v4770, 1.442695
      %v4834 = vpow.pop %v4833
      %v4835 = vadd.f32 %v4772, 1.0
      %v4836 = vadd.f32 %v4774, 1.0
      %v4837 = vadd.f32 %v4776, 1.0
      %v4838 = vadd.f32 %v4778, 1.0
      %v4839 = vadd.f32 %v4780, 1.0
      %v4840 = vadd.f32 %v4782, 1.0
      %v4841 = vadd.f32 %v4784, 1.0
      %v4842 = vadd.f32 %v4786, 1.0
      %v4843 = vadd.f32 %v4788, 1.0
      %v4844 = vadd.f32 %v4790, 1.0
      %v4845 = vadd.f32 %v4792, 1.0
      %v4846 = vadd.f32 %v4794, 1.0
      %v4847 = vadd.f32 %v4796, 1.0
      %v4848 = vadd.f32 %v4798, 1.0
      %v4849 = vadd.f32 %v4800, 1.0
      %v4850 = vadd.f32 %v4802, 1.0
      %v4851 = vadd.f32 %v4804, 1.0
      %v4852 = vadd.f32 %v4806, 1.0
      %v4853 = vadd.f32 %v4808, 1.0
      %v4854 = vadd.f32 %v4810, 1.0
      %v4855 = vadd.f32 %v4812, 1.0
      %v4856 = vadd.f32 %v4814, 1.0
      %v4857 = vadd.f32 %v4816, 1.0
      %v4858 = vadd.f32 %v4818, 1.0
      %v4859 = vadd.f32 %v4820, 1.0
      %v4860 = vadd.f32 %v4822, 1.0
      %v4861 = vadd.f32 %v4824, 1.0
      %v4862 = vadd.f32 %v4826, 1.0
      %v4863 = vadd.f32 %v4828, 1.0
      %v4864 = vadd.f32 %v4830, 1.0
      %v4865 = vadd.f32 %v4832, 1.0
      %v4866 = vadd.f32 %v4834, 1.0
      %v4867 = vrcp.pop %v4835
      %v4868 = vmul.f32 1.0, %v4867
      %v4869 = vrcp.pop %v4836
      %v4870 = vmul.f32 1.0, %v4869
      %v4871 = vrcp.pop %v4837
      %v4872 = vmul.f32 1.0, %v4871
      %v4873 = vrcp.pop %v4838
      %v4874 = vmul.f32 1.0, %v4873
      %v4875 = vrcp.pop %v4839
      %v4876 = vmul.f32 1.0, %v4875
      %v4877 = vrcp.pop %v4840
      %v4878 = vmul.f32 1.0, %v4877
      %v4879 = vrcp.pop %v4841
      %v4880 = vmul.f32 1.0, %v4879
      %v4881 = vrcp.pop %v4842
      %v4882 = vmul.f32 1.0, %v4881
      %v4883 = vrcp.pop %v4843
      %v4884 = vmul.f32 1.0, %v4883
      %v4885 = vrcp.pop %v4844
      %v4886 = vmul.f32 1.0, %v4885
      %v4887 = vrcp.pop %v4845
      %v4888 = vmul.f32 1.0, %v4887
      %v4889 = vrcp.pop %v4846
      %v4890 = vmul.f32 1.0, %v4889
      %v4891 = vrcp.pop %v4847
      %v4892 = vmul.f32 1.0, %v4891
      %v4893 = vrcp.pop %v4848
      %v4894 = vmul.f32 1.0, %v4893
      %v4895 = vrcp.pop %v4849
      %v4896 = vmul.f32 1.0, %v4895
      %v4897 = vrcp.pop %v4850
      %v4898 = vmul.f32 1.0, %v4897
      %v4899 = vrcp.pop %v4851
      %v4900 = vmul.f32 1.0, %v4899
      %v4901 = vrcp.pop %v4852
      %v4902 = vmul.f32 1.0, %v4901
      %v4903 = vrcp.pop %v4853
      %v4904 = vmul.f32 1.0, %v4903
      %v4905 = vrcp.pop %v4854
      %v4906 = vmul.f32 1.0, %v4905
      %v4907 = vrcp.pop %v4855
      %v4908 = vmul.f32 1.0, %v4907
      %v4909 = vrcp.pop %v4856
      %v4910 = vmul.f32 1.0, %v4909
      %v4911 = vrcp.pop %v4857
      %v4912 = vmul.f32 1.0, %v4911
      %v4913 = vrcp.pop %v4858
      %v4914 = vmul.f32 1.0, %v4913
      %v4915 = vrcp.pop %v4859
      %v4916 = vmul.f32 1.0, %v4915
      %v4917 = vrcp.pop %v4860
      %v4918 = vmul.f32 1.0, %v4917
      %v4919 = vrcp.pop %v4861
      %v4920 = vmul.f32 1.0, %v4919
      %v4921 = vrcp.pop %v4862
      %v4922 = vmul.f32 1.0, %v4921
      %v4923 = vrcp.pop %v4863
      %v4924 = vmul.f32 1.0, %v4923
      %v4925 = vrcp.pop %v4864
      %v4926 = vmul.f32 1.0, %v4925
      %v4927 = vrcp.pop %v4865
      %v4928 = vmul.f32 1.0, %v4927
      %v4929 = vrcp.pop %v4866
      %v4930 = vmul.f32 1.0, %v4929
      %v4931 = vmul.f32 %v4613, %v4868
      %v4932 = vmul.f32 %v4616, %v4870
      %v4933 = vmul.f32 %v4621, %v4872
      %v4934 = vmul.f32 %v4624, %v4874
      %v4935 = vmul.f32 %v4629, %v4876
      %v4936 = vmul.f32 %v4632, %v4878
      %v4937 = vmul.f32 %v4637, %v4880
      %v4938 = vmul.f32 %v4640, %v4882
      %v4939 = vmul.f32 %v4645, %v4884
      %v4940 = vmul.f32 %v4648, %v4886
      %v4941 = vmul.f32 %v4653, %v4888
      %v4942 = vmul.f32 %v4656, %v4890
      %v4943 = vmul.f32 %v4661, %v4892
      %v4944 = vmul.f32 %v4664, %v4894
      %v4945 = vmul.f32 %v4669, %v4896
      %v4946 = vmul.f32 %v4672, %v4898
      %v4947 = vmul.f32 %v4677, %v4900
      %v4948 = vmul.f32 %v4680, %v4902
      %v4949 = vmul.f32 %v4685, %v4904
      %v4950 = vmul.f32 %v4688, %v4906
      %v4951 = vmul.f32 %v4693, %v4908
      %v4952 = vmul.f32 %v4696, %v4910
      %v4953 = vmul.f32 %v4701, %v4912
      %v4954 = vmul.f32 %v4704, %v4914
      %v4955 = vmul.f32 %v4709, %v4916
      %v4956 = vmul.f32 %v4712, %v4918
      %v4957 = vmul.f32 %v4717, %v4920
      %v4958 = vmul.f32 %v4720, %v4922
      %v4959 = vmul.f32 %v4725, %v4924
      %v4960 = vmul.f32 %v4728, %v4926
      %v4961 = vmul.f32 %v4733, %v4928
      %v4962 = vmul.f32 %v4736, %v4930
      %v4963 = vunpack.c.l.bf16 %v229
      %v4964 = vunpack.c.l.bf16 %v230
      %v4965 = vunpack.c.l.bf16 %v231
      %v4966 = vunpack.c.l.bf16 %v232
      %v4967 = vunpack.c.l.bf16 %v233
      %v4968 = vunpack.c.l.bf16 %v234
      %v4969 = vunpack.c.l.bf16 %v235
      %v4970 = vunpack.c.l.bf16 %v236
      %v4971 = vunpack.c.l.bf16 %v237
      %v4972 = vunpack.c.l.bf16 %v238
      %v4973 = vunpack.c.l.bf16 %v239
      %v4974 = vunpack.c.l.bf16 %v240
      %v4975 = vunpack.c.l.bf16 %v241
      %v4976 = vunpack.c.l.bf16 %v242
      %v4977 = vunpack.c.l.bf16 %v243
      %v4978 = vunpack.c.l.bf16 %v244
      %v4979 = vunpack.c.l.bf16 %v245
      %v4980 = vunpack.c.l.bf16 %v246
      %v4981 = vunpack.c.l.bf16 %v247
      %v4982 = vunpack.c.l.bf16 %v248
      %v4983 = vunpack.c.l.bf16 %v249
      %v4984 = vunpack.c.l.bf16 %v250
      %v4985 = vunpack.c.l.bf16 %v251
      %v4986 = vunpack.c.l.bf16 %v252
      %v4987 = vunpack.c.l.bf16 %v253
      %v4988 = vunpack.c.l.bf16 %v254
      %v4989 = vunpack.c.l.bf16 %v255
      %v4990 = vunpack.c.l.bf16 %v256
      %v4991 = vunpack.c.l.bf16 %v257
      %v4992 = vunpack.c.l.bf16 %v258
      %v4993 = vunpack.c.l.bf16 %v259
      %v4994 = vunpack.c.l.bf16 %v260
      %v4995 = vadd.f32 %v4931, %v4963
      %v4996 = vadd.f32 %v4932, %v4964
      %v4997 = vadd.f32 %v4933, %v4965
      %v4998 = vadd.f32 %v4934, %v4966
      %v4999 = vadd.f32 %v4935, %v4967
      %v5000 = vadd.f32 %v4936, %v4968
      %v5001 = vadd.f32 %v4937, %v4969
      %v5002 = vadd.f32 %v4938, %v4970
      %v5003 = vadd.f32 %v4939, %v4971
      %v5004 = vadd.f32 %v4940, %v4972
      %v5005 = vadd.f32 %v4941, %v4973
      %v5006 = vadd.f32 %v4942, %v4974
      %v5007 = vadd.f32 %v4943, %v4975
      %v5008 = vadd.f32 %v4944, %v4976
      %v5009 = vadd.f32 %v4945, %v4977
      %v5010 = vadd.f32 %v4946, %v4978
      %v5011 = vadd.f32 %v4947, %v4979
      %v5012 = vadd.f32 %v4948, %v4980
      %v5013 = vadd.f32 %v4949, %v4981
      %v5014 = vadd.f32 %v4950, %v4982
      %v5015 = vadd.f32 %v4951, %v4983
      %v5016 = vadd.f32 %v4952, %v4984
      %v5017 = vadd.f32 %v4953, %v4985
      %v5018 = vadd.f32 %v4954, %v4986
      %v5019 = vadd.f32 %v4955, %v4987
      %v5020 = vadd.f32 %v4956, %v4988
      %v5021 = vadd.f32 %v4957, %v4989
      %v5022 = vadd.f32 %v4958, %v4990
      %v5023 = vadd.f32 %v4959, %v4991
      %v5024 = vadd.f32 %v4960, %v4992
      %v5025 = vadd.f32 %v4961, %v4993
      %v5026 = vadd.f32 %v4962, %v4994
      %5027 = vst.msk [vmem:[%s226] sm:$0xff] %vm356, %v4995
      %5028 = vst.msk [vmem:[%s226 + $0x8] sm:$0xff] %vm356, %v4996
      %5029 = vst.msk [vmem:[%s226 + $0x10] sm:$0xff] %vm356, %v4997
      %5030 = vst.msk [vmem:[%s226 + $0x18] sm:$0xff] %vm356, %v4998
      %5031 = vst.msk [vmem:[%s226 + $0x20] sm:$0xff] %vm356, %v4999
      %5032 = vst.msk [vmem:[%s226 + $0x28] sm:$0xff] %vm356, %v5000
      %5033 = vst.msk [vmem:[%s226 + $0x30] sm:$0xff] %vm356, %v5001
      %5034 = vst.msk [vmem:[%s226 + $0x38] sm:$0xff] %vm356, %v5002
      %5035 = vst.msk [vmem:[%s226 + $0x40] sm:$0xff] %vm356, %v5003
      %5036 = vst.msk [vmem:[%s226 + $0x48] sm:$0xff] %vm356, %v5004
      %5037 = vst.msk [vmem:[%s226 + $0x50] sm:$0xff] %vm356, %v5005
      %5038 = vst.msk [vmem:[%s226 + $0x58] sm:$0xff] %vm356, %v5006
      %5039 = vst.msk [vmem:[%s226 + $0x60] sm:$0xff] %vm356, %v5007
      %5040 = vst.msk [vmem:[%s226 + $0x68] sm:$0xff] %vm356, %v5008
      %5041 = vst.msk [vmem:[%s226 + $0x70] sm:$0xff] %vm356, %v5009
      %5042 = vst.msk [vmem:[%s226 + $0x78] sm:$0xff] %vm356, %v5010
      %5043 = vst.msk [vmem:[%s226 + $0x80] sm:$0xff] %vm356, %v5011
      %5044 = vst.msk [vmem:[%s226 + $0x88] sm:$0xff] %vm356, %v5012
      %5045 = vst.msk [vmem:[%s226 + $0x90] sm:$0xff] %vm356, %v5013
      %5046 = vst.msk [vmem:[%s226 + $0x98] sm:$0xff] %vm356, %v5014
      %5047 = vst.msk [vmem:[%s226 + $0xa0] sm:$0xff] %vm356, %v5015
      %5048 = vst.msk [vmem:[%s226 + $0xa8] sm:$0xff] %vm356, %v5016
      %5049 = vst.msk [vmem:[%s226 + $0xb0] sm:$0xff] %vm356, %v5017
      %5050 = vst.msk [vmem:[%s226 + $0xb8] sm:$0xff] %vm356, %v5018
      %5051 = vst.msk [vmem:[%s226 + $0xc0] sm:$0xff] %vm356, %v5019
      %5052 = vst.msk [vmem:[%s226 + $0xc8] sm:$0xff] %vm356, %v5020
      %5053 = vst.msk [vmem:[%s226 + $0xd0] sm:$0xff] %vm356, %v5021
      %5054 = vst.msk [vmem:[%s226 + $0xd8] sm:$0xff] %vm356, %v5022
      %5055 = vst.msk [vmem:[%s226 + $0xe0] sm:$0xff] %vm356, %v5023
      %5056 = vst.msk [vmem:[%s226 + $0xe8] sm:$0xff] %vm356, %v5024
      %5057 = vst.msk [vmem:[%s226 + $0xf0] sm:$0xff] %vm356, %v5025
      %5058 = vst.msk [vmem:[%s226 + $0xf8] sm:$0xff] %vm356, %v5026
      %s5059 = smul.u32 32, %s16
      %p5060 = scmp.lt.s32.totalorder %s5059, 63
      %s5061 = scalar_select %p5060, %s5059, 63
      %s5062 = smul.addr %s5061, 8
      %s5063 = scalar_lea.vmem %s5, %s5062
      // Predicated region
      $region41: #{tpu_custom_call.1} parent=39 // pred_check
        %p5064 = pneg %p144
      $region42: #{tpu_custom_call.1} parent=39 // pred_check_branch
        %5066 = sbr.rel (%p5064) target = $region44
      $region43: #{tpu_custom_call.1} parent=39 // pred_region
        %s5067 = smul.u32 32, %s16
      $region44: #{tpu_custom_call.1} parent=39 // pred_fallthru
        _
    $region40: #{tpu_custom_call.1} parent=5 // pred_fallthru
      _
    %p5068 = scmp.le.s32.totalorder 2, %s11
    // Predicated region
    $region45: #{tpu_custom_call.1} parent=5 // pred_check
      %p5069 = pneg %p5068
    $region46: #{tpu_custom_call.1} parent=5 // pred_check_branch
      %5071 = sbr.rel (%p5069) target = $region48
    $region47: #{tpu_custom_call.1} parent=5 // pred_region
      %s5072 = ssub.s32 %s11, 2
      // Predicated region
      $region49: #{tpu_custom_call.1} parent=47 // pred_check
        %p5073 = pneg %p150
      $region50: #{tpu_custom_call.1} parent=47 // pred_check_branch
        %5075 = sbr.rel (%p5073) target = $region52
      $region51: #{tpu_custom_call.1} parent=47 // pred_region
        %s5076 = smul.u32 32, %s17
        %p5077 = scmp.lt.s32.totalorder %s5076, 63
        %s5078 = scalar_select %p5077, %s5076, 63
        %s5079 = smul.addr %s5078, 8
        %s5080 = scalar_lea.vmem %s5, %s5079
      $region52: #{tpu_custom_call.1} parent=47 // pred_fallthru
        _
    $region48: #{tpu_custom_call.1} parent=5 // pred_fallthru
      _
  $region6: #{tpu_custom_call.1} parent=0 // loop_footer
    %s15 = sadd.s32 1, %s11
  $region7: #{tpu_custom_call.1} parent=0 // loop_footer_branch
    %10 = sbr.rel target = $region3
  $region8: #{tpu_custom_call.1} parent=0 // loop_exit
    _

</llo_original>
